<compile_context>
chip_gen: v6e
topology: v6e:2x2x1
jax: 0.10.0
libtpu: 0.0.40
codegen_flags: <defaults>
</compile_context>

<pallas_src>
import functools

import jax
import jax.numpy as jnp
import numpy as np
from jax import lax
from jax.experimental import pallas as pl
from jax.experimental.pallas import tpu as pltpu


# ----------------------------------------------------------------------------
# activation helpers (F.relu / F.hardswish / F.hardsigmoid semantics)
# ----------------------------------------------------------------------------
def _act(y, name):
    if name == "relu":
        return jnp.maximum(y, 0.0)
    if name == "hardswish":
        return y * jnp.clip(y + 3.0, 0.0, 6.0) * (1.0 / 6.0)
    if name is None:
        return y
    raise ValueError(f"unsupported activation {name}")


# ----------------------------------------------------------------------------
# fused ResidualUnit kernel (one grid step == one batch element)
# all math is 2-D, channel-major: rows = channels (sublanes), cols = H*W lanes
# ----------------------------------------------------------------------------
def _residual_unit_kernel(*refs, H, W, Ho, Wo, k, stride, pad, cin, cmid,
                          cout, act, use_se, use_shortcut):
    if use_se:
        (x_ref, we_ref, s1_ref, b1_ref, wdw_ref, s2_ref, b2_ref,
         sew1_ref, seb1_ref, sew2_ref, seb2_ref,
         wl_ref, s3_ref, b3_ref,
         o_ref, pad_ref, flat_ref) = refs
    else:
        (x_ref, we_ref, s1_ref, b1_ref, wdw_ref, s2_ref, b2_ref,
         wl_ref, s3_ref, b3_ref,
         o_ref, pad_ref, flat_ref) = refs

    Wp = W + 2 * pad

    x = x_ref[0]                                    # (Cin, H*W), lane-dense

    # ---- expand 1x1 conv + BN + act: VPU broadcast-FMAs over Cin ----------
    we = we_ref[...]                                # (Cmid, Cin)
    y = jnp.zeros((cmid, H * W), jnp.float32)
    for ci in range(cin):
        y = y + we[:, ci:ci + 1] * x[ci:ci + 1, :]
    y = _act(y * s1_ref[...] + b1_ref[...], act)

    # ---- depthwise kxk conv + BN + act -------------------------------------
    # in-kernel halo padding: scatter rows of the flat activation into a
    # zero-padded flat (Cmid, Hp*Wp) VMEM scratch (doubles as the
    # flat->spatial "reshape" without any relayout op).
    pad_ref[...] = jnp.zeros_like(pad_ref)
    for h in range(H):
        dst = (pad + h) * Wp + pad
        pad_ref[:, dst:dst + W] = y[:, h * W:(h + 1) * W]

    wtaps = [wdw_ref[:, t:t + 1] for t in range(k * k)]   # each (Cmid, 1)
    for ho in range(Ho):
        row = jnp.zeros((cmid, Wo), jnp.float32)
        for dy in range(k):
            base = (ho * stride + dy) * Wp
            for dx in range(k):
                lo = base + dx
                if stride == 1:
                    seg = pad_ref[:, lo:lo + Wo]
                else:
                    # TODO(synk): lane-strided ref read for stride>1; if a
                    # target rejects it, gather per output column instead.
                    seg = pad_ref[:, lo:lo + (Wo - 1) * stride + 1:stride]
                row = row + seg * wtaps[dy * k + dx]
        flat_ref[:, ho * Wo:(ho + 1) * Wo] = row

    z = _act(flat_ref[...] * s2_ref[...] + b2_ref[...], act)   # (Cmid, Ho*Wo)

    # ---- squeeze-excite: pool -> 1x1+relu -> 1x1+hardsigmoid -> rescale ----
    if use_se:
        pooled = jnp.mean(z, axis=1, keepdims=True)                     # (Cmid,1)
        hrow = jnp.sum(sew1_ref[...] * pooled, axis=0, keepdims=True)   # (1,Cr)
        hrow = jnp.maximum(hrow + seb1_ref[...], 0.0)
        scol = jnp.sum(sew2_ref[...] * hrow, axis=1, keepdims=True)     # (Cmid,1)
        scol = jnp.clip(scol + seb2_ref[...] + 3.0, 0.0, 6.0) * (1.0 / 6.0)
        z = z * scol

    # ---- linear 1x1 conv + BN (no act) + optional shortcut ------------------
    wl = wl_ref[...]                                # (Cout, Cmid)
    out = jnp.zeros((cout, Ho * Wo), jnp.float32)
    for cm in range(cmid):
        out = out + wl[:, cm:cm + 1] * z[cm:cm + 1, :]
    out = out * s3_ref[...] + b3_ref[...]
    if use_shortcut:
        out = out + x
    o_ref[0] = out


# ----------------------------------------------------------------------------
# wrapper: NCHW in / NCHW out, only free reshapes at the boundary
# ----------------------------------------------------------------------------
def residual_unit_forward(x_nchw, p, *, kernel_size, stride, use_se,
                          activation):
    N, Cin, H, W = x_nchw.shape
    Cmid = p["w_expand"].shape[0]
    Cout = p["w_linear"].shape[0]
    k = kernel_size
    pad = (k - 1) // 2
    Ho = (H + 2 * pad - k) // stride + 1
    Wo = (W + 2 * pad - k) // stride + 1
    use_shortcut = (stride == 1 and Cin == Cout)

    x_flat = x_nchw.reshape(N, Cin, H * W).astype(jnp.float32)  # free reshape

    def full(shape):
        return pl.BlockSpec(shape, lambda n: (0,) * len(shape))

    in_specs = [pl.BlockSpec((1, Cin, H * W), lambda n: (n, 0, 0)),
                full((Cmid, Cin)), full((Cmid, 1)), full((Cmid, 1)),
                full((Cmid, k * k)), full((Cmid, 1)), full((Cmid, 1))]
    args = [x_flat, p["w_expand"], p["bn1_scale"], p["bn1_bias"],
            p["w_dw"], p["bn2_scale"], p["bn2_bias"]]
    if use_se:
        Cr = p["se_w1t"].shape[1]
        in_specs += [full((Cmid, Cr)), full((1, Cr)),
                     full((Cmid, Cr)), full((Cmid, 1))]
        args += [p["se_w1t"], p["se_b1"], p["se_w2"], p["se_b2"]]
    in_specs += [full((Cout, Cmid)), full((Cout, 1)), full((Cout, 1))]
    args += [p["w_linear"], p["bn3_scale"], p["bn3_bias"]]

    kern = functools.partial(
        _residual_unit_kernel, H=H, W=W, Ho=Ho, Wo=Wo, k=k, stride=stride,
        pad=pad, cin=Cin, cmid=Cmid, cout=Cout, act=activation,
        use_se=use_se, use_shortcut=use_shortcut)

    out = pl.pallas_call(
        kern,
        out_shape=jax.ShapeDtypeStruct((N, Cout, Ho * Wo), jnp.float32),
        grid=(N,),
        in_specs=in_specs,
        out_specs=pl.BlockSpec((1, Cout, Ho * Wo), lambda n: (n, 0, 0)),
        scratch_shapes=[
            pltpu.VMEM((Cmid, (H + 2 * pad) * (W + 2 * pad)), jnp.float32),
            pltpu.VMEM((Cmid, Ho * Wo), jnp.float32),
        ],
        compiler_params=pltpu.CompilerParams(
            dimension_semantics=("parallel",),
            vmem_limit_bytes=32 * 1024 * 1024),
    )(*args)
    return out.reshape(N, Cout, Ho, Wo)   # free reshape -> NCHW output


# ----------------------------------------------------------------------------
# pure-JAX reference for verification
# ----------------------------------------------------------------------------
def ref_forward(x_nchw, p, *, kernel_size, stride, use_se, activation):
    x = jnp.transpose(x_nchw, (0, 2, 3, 1)).astype(jnp.float32)  # NHWC
    Cmid = p["w_expand"].shape[0]
    bc = lambda v: v.reshape(1, 1, 1, -1)
    y = jnp.einsum("nhwc,oc->nhwo", x, p["w_expand"])
    y = _act(y * bc(p["bn1_scale"]) + bc(p["bn1_bias"]), activation)
    pad = (kernel_size - 1) // 2
    w_dw = p["w_dw"].T.reshape(kernel_size, kernel_size, 1, Cmid)   # HWIO
    y = lax.conv_general_dilated(
        y, w_dw, (stride, stride), [(pad, pad), (pad, pad)],
        dimension_numbers=("NHWC", "HWIO", "NHWC"), feature_group_count=Cmid)
    y = _act(y * bc(p["bn2_scale"]) + bc(p["bn2_bias"]), activation)
    if use_se:
        pooled = jnp.mean(y, axis=(1, 2))                           # (N, Cmid)
        h = jnp.maximum(pooled @ p["se_w1t"] + p["se_b1"].reshape(1, -1), 0.0)
        s = jnp.clip(h @ p["se_w2"].T + p["se_b2"].reshape(1, -1) + 3.0,
                     0.0, 6.0) / 6.0
        y = y * s[:, None, None, :]
    out = jnp.einsum("nhwc,oc->nhwo", y, p["w_linear"])
    out = out * bc(p["bn3_scale"]) + bc(p["bn3_bias"])
    if stride == 1 and x.shape[-1] == out.shape[-1]:
        out = out + x
    return jnp.transpose(out, (0, 3, 1, 2))


# ----------------------------------------------------------------------------
# deterministic parameter construction (BN already folded, inference mode)
# ----------------------------------------------------------------------------
def _folded_bn(key, c):
    k1, k2, k3, k4 = jax.random.split(key, 4)
    gamma = jax.random.uniform(k1, (c,), jnp.float32, 0.5, 1.5)
    beta = jax.random.normal(k2, (c,), jnp.float32) * 0.1
    mean = jax.random.normal(k3, (c,), jnp.float32) * 0.1
    var = jax.random.uniform(k4, (c,), jnp.float32, 0.5, 1.5)
    scale = gamma / jnp.sqrt(var + 1e-5)
    bias = beta - mean * scale
    return scale.reshape(c, 1), bias.reshape(c, 1)


def make_params(key, cin, cmid, cout, kernel_size, reduction=4):
    ks = jax.random.split(key, 10)
    cr = cmid // reduction
    p = {}
    p["w_expand"] = jax.random.normal(ks[0], (cmid, cin), jnp.float32) / np.sqrt(cin)
    p["bn1_scale"], p["bn1_bias"] = _folded_bn(ks[1], cmid)
    p["w_dw"] = jax.random.normal(
        ks[2], (cmid, kernel_size * kernel_size), jnp.float32) / kernel_size
    p["bn2_scale"], p["bn2_bias"] = _folded_bn(ks[3], cmid)
    p["se_w1t"] = jax.random.normal(ks[4], (cmid, cr), jnp.float32) / np.sqrt(cmid)
    p["se_b1"] = (jax.random.normal(ks[5], (cr,), jnp.float32) * 0.1).reshape(1, cr)
    p["se_w2"] = jax.random.normal(ks[6], (cmid, cr), jnp.float32) / np.sqrt(cr)
    p["se_b2"] = (jax.random.normal(ks[7], (cmid,), jnp.float32) * 0.1).reshape(cmid, 1)
    p["w_linear"] = jax.random.normal(ks[8], (cout, cmid), jnp.float32) / np.sqrt(cmid)
    p["bn3_scale"], p["bn3_bias"] = _folded_bn(ks[9], cout)
    return p


if __name__ == "__main__":
    # ResidualUnit(in_channels=8, mid_channels=16, out_channels=8,
    #              kernel_size=3, stride=1, use_se=True, activation='hardswish')
    N, Cin, H, W = 2, 8, 16, 16
    Cmid, Cout = 16, 8
    kernel_size, stride = 3, 1
    use_se, activation = True, "hardswish"

    key = jax.random.PRNGKey(0)
    kx, kp = jax.random.split(key)
    x = jax.random.normal(kx, (N, Cin, H, W), jnp.float32)  # NCHW like PyTorch
    params = make_params(kp, Cin, Cmid, Cout, kernel_size)

    out = residual_unit_forward(x, params, kernel_size=kernel_size,
                                stride=stride, use_se=use_se,
                                activation=activation)
    out = jax.block_until_ready(out)

    ref = jax.block_until_ready(
        ref_forward(x, params, kernel_size=kernel_size, stride=stride,
                    use_se=use_se, activation=activation))

    assert out.shape == (N, Cout, H, W), out.shape
    if not np.allclose(np.asarray(out), np.asarray(ref), atol=1e-3, rtol=1e-3):
        raise AssertionError("Pallas output does not match JAX reference")
    print("KERNEL_OK")
</pallas_src>

<mosaic_0001>
module attributes {stable_mosaic.version = 11 : i64} {
  func.func @_residual_unit_kernel(%arg0: i32, %arg1: memref<1x8x256xf32, #tpu.memory_space<vmem>>, %arg2: memref<16x8xf32, #tpu.memory_space<vmem>>, %arg3: memref<16x1xf32, #tpu.memory_space<vmem>>, %arg4: memref<16x1xf32, #tpu.memory_space<vmem>>, %arg5: memref<16x9xf32, #tpu.memory_space<vmem>>, %arg6: memref<16x1xf32, #tpu.memory_space<vmem>>, %arg7: memref<16x1xf32, #tpu.memory_space<vmem>>, %arg8: memref<16x4xf32, #tpu.memory_space<vmem>>, %arg9: memref<1x4xf32, #tpu.memory_space<vmem>>, %arg10: memref<16x4xf32, #tpu.memory_space<vmem>>, %arg11: memref<16x1xf32, #tpu.memory_space<vmem>>, %arg12: memref<8x16xf32, #tpu.memory_space<vmem>>, %arg13: memref<8x1xf32, #tpu.memory_space<vmem>>, %arg14: memref<8x1xf32, #tpu.memory_space<vmem>>, %arg15: memref<1x8x256xf32, #tpu.memory_space<vmem>>, %arg16: memref<16x324xf32, #tpu.memory_space<vmem>>, %arg17: memref<16x256xf32, #tpu.memory_space<vmem>>) attributes {dimension_semantics = [#tpu.dimension_semantics<parallel>], iteration_bounds = array<i64: 2>, scalar_prefetch = 0 : i64, scratch_operands = 2 : i64, tpu.core_type = #tpu.core_type<tc>, window_params = [{transform_indices = @transform_0, window_bounds = array<i64: 1, 8, 256>}, {pipeline_mode = #tpu.pipeline_mode<synchronous>, transform_indices = @transform_1, window_bounds = array<i64: 16, 8>}, {pipeline_mode = #tpu.pipeline_mode<synchronous>, transform_indices = @transform_2, window_bounds = array<i64: 16, 1>}, {pipeline_mode = #tpu.pipeline_mode<synchronous>, transform_indices = @transform_3, window_bounds = array<i64: 16, 1>}, {pipeline_mode = #tpu.pipeline_mode<synchronous>, transform_indices = @transform_4, window_bounds = array<i64: 16, 9>}, {pipeline_mode = #tpu.pipeline_mode<synchronous>, transform_indices = @transform_5, window_bounds = array<i64: 16, 1>}, {pipeline_mode = #tpu.pipeline_mode<synchronous>, transform_indices = @transform_6, window_bounds = array<i64: 16, 1>}, {pipeline_mode = #tpu.pipeline_mode<synchronous>, transform_indices = @transform_7, window_bounds = array<i64: 16, 4>}, {pipeline_mode = #tpu.pipeline_mode<synchronous>, transform_indices = @transform_8, window_bounds = array<i64: 1, 4>}, {pipeline_mode = #tpu.pipeline_mode<synchronous>, transform_indices = @transform_9, window_bounds = array<i64: 16, 4>}, {pipeline_mode = #tpu.pipeline_mode<synchronous>, transform_indices = @transform_10, window_bounds = array<i64: 16, 1>}, {pipeline_mode = #tpu.pipeline_mode<synchronous>, transform_indices = @transform_11, window_bounds = array<i64: 8, 16>}, {pipeline_mode = #tpu.pipeline_mode<synchronous>, transform_indices = @transform_12, window_bounds = array<i64: 8, 1>}, {pipeline_mode = #tpu.pipeline_mode<synchronous>, transform_indices = @transform_13, window_bounds = array<i64: 8, 1>}, {transform_indices = @transform_14, window_bounds = array<i64: 1, 8, 256>}]} {
    %c0 = arith.constant 0 : index
    %c0_0 = arith.constant 0 : index
    %c0_1 = arith.constant 0 : index
    %0 = vector.load %arg1[%c0, %c0_0, %c0_1] : memref<1x8x256xf32, #tpu.memory_space<vmem>>, vector<1x8x256xf32>
    %1 = vector.shape_cast %0 : vector<1x8x256xf32> to vector<8x256xf32>
    %c0_2 = arith.constant 0 : index
    %c0_3 = arith.constant 0 : index
    %2 = vector.load %arg2[%c0_2, %c0_3] : memref<16x8xf32, #tpu.memory_space<vmem>>, vector<16x8xf32>
    %cst = arith.constant 0.000000e+00 : f32
    %3 = vector.broadcast %cst : f32 to vector<16x256xf32>
    %4 = vector.extract_strided_slice %2 {offsets = [0, 0], sizes = [16, 1], strides = [1, 1]} : vector<16x8xf32> to vector<16x1xf32>
    %5 = vector.extract_strided_slice %1 {offsets = [0, 0], sizes = [1, 256], strides = [1, 1]} : vector<8x256xf32> to vector<1x256xf32>
    %6 = vector.broadcast %4 : vector<16x1xf32> to vector<16x256xf32>
    %7 = vector.broadcast %5 : vector<1x256xf32> to vector<16x256xf32>
    %8 = arith.mulf %6, %7 : vector<16x256xf32>
    %9 = arith.addf %3, %8 : vector<16x256xf32>
    %10 = vector.extract_strided_slice %2 {offsets = [0, 1], sizes = [16, 1], strides = [1, 1]} : vector<16x8xf32> to vector<16x1xf32>
    %11 = vector.extract_strided_slice %1 {offsets = [1, 0], sizes = [1, 256], strides = [1, 1]} : vector<8x256xf32> to vector<1x256xf32>
    %12 = vector.broadcast %10 : vector<16x1xf32> to vector<16x256xf32>
    %13 = vector.broadcast %11 : vector<1x256xf32> to vector<16x256xf32>
    %14 = arith.mulf %12, %13 : vector<16x256xf32>
    %15 = arith.addf %9, %14 : vector<16x256xf32>
    %16 = vector.extract_strided_slice %2 {offsets = [0, 2], sizes = [16, 1], strides = [1, 1]} : vector<16x8xf32> to vector<16x1xf32>
    %17 = vector.extract_strided_slice %1 {offsets = [2, 0], sizes = [1, 256], strides = [1, 1]} : vector<8x256xf32> to vector<1x256xf32>
    %18 = vector.broadcast %16 : vector<16x1xf32> to vector<16x256xf32>
    %19 = vector.broadcast %17 : vector<1x256xf32> to vector<16x256xf32>
    %20 = arith.mulf %18, %19 : vector<16x256xf32>
    %21 = arith.addf %15, %20 : vector<16x256xf32>
    %22 = vector.extract_strided_slice %2 {offsets = [0, 3], sizes = [16, 1], strides = [1, 1]} : vector<16x8xf32> to vector<16x1xf32>
    %23 = vector.extract_strided_slice %1 {offsets = [3, 0], sizes = [1, 256], strides = [1, 1]} : vector<8x256xf32> to vector<1x256xf32>
    %24 = vector.broadcast %22 : vector<16x1xf32> to vector<16x256xf32>
    %25 = vector.broadcast %23 : vector<1x256xf32> to vector<16x256xf32>
    %26 = arith.mulf %24, %25 : vector<16x256xf32>
    %27 = arith.addf %21, %26 : vector<16x256xf32>
    %28 = vector.extract_strided_slice %2 {offsets = [0, 4], sizes = [16, 1], strides = [1, 1]} : vector<16x8xf32> to vector<16x1xf32>
    %29 = vector.extract_strided_slice %1 {offsets = [4, 0], sizes = [1, 256], strides = [1, 1]} : vector<8x256xf32> to vector<1x256xf32>
    %30 = vector.broadcast %28 : vector<16x1xf32> to vector<16x256xf32>
    %31 = vector.broadcast %29 : vector<1x256xf32> to vector<16x256xf32>
    %32 = arith.mulf %30, %31 : vector<16x256xf32>
    %33 = arith.addf %27, %32 : vector<16x256xf32>
    %34 = vector.extract_strided_slice %2 {offsets = [0, 5], sizes = [16, 1], strides = [1, 1]} : vector<16x8xf32> to vector<16x1xf32>
    %35 = vector.extract_strided_slice %1 {offsets = [5, 0], sizes = [1, 256], strides = [1, 1]} : vector<8x256xf32> to vector<1x256xf32>
    %36 = vector.broadcast %34 : vector<16x1xf32> to vector<16x256xf32>
    %37 = vector.broadcast %35 : vector<1x256xf32> to vector<16x256xf32>
    %38 = arith.mulf %36, %37 : vector<16x256xf32>
    %39 = arith.addf %33, %38 : vector<16x256xf32>
    %40 = vector.extract_strided_slice %2 {offsets = [0, 6], sizes = [16, 1], strides = [1, 1]} : vector<16x8xf32> to vector<16x1xf32>
    %41 = vector.extract_strided_slice %1 {offsets = [6, 0], sizes = [1, 256], strides = [1, 1]} : vector<8x256xf32> to vector<1x256xf32>
    %42 = vector.broadcast %40 : vector<16x1xf32> to vector<16x256xf32>
    %43 = vector.broadcast %41 : vector<1x256xf32> to vector<16x256xf32>
    %44 = arith.mulf %42, %43 : vector<16x256xf32>
    %45 = arith.addf %39, %44 : vector<16x256xf32>
    %46 = vector.extract_strided_slice %2 {offsets = [0, 7], sizes = [16, 1], strides = [1, 1]} : vector<16x8xf32> to vector<16x1xf32>
    %47 = vector.extract_strided_slice %1 {offsets = [7, 0], sizes = [1, 256], strides = [1, 1]} : vector<8x256xf32> to vector<1x256xf32>
    %48 = vector.broadcast %46 : vector<16x1xf32> to vector<16x256xf32>
    %49 = vector.broadcast %47 : vector<1x256xf32> to vector<16x256xf32>
    %50 = arith.mulf %48, %49 : vector<16x256xf32>
    %51 = arith.addf %45, %50 : vector<16x256xf32>
    %c0_4 = arith.constant 0 : index
    %c0_5 = arith.constant 0 : index
    %52 = vector.load %arg3[%c0_4, %c0_5] : memref<16x1xf32, #tpu.memory_space<vmem>>, vector<16x1xf32>
    %53 = vector.broadcast %52 : vector<16x1xf32> to vector<16x256xf32>
    %54 = arith.mulf %51, %53 : vector<16x256xf32>
    %c0_6 = arith.constant 0 : index
    %c0_7 = arith.constant 0 : index
    %55 = vector.load %arg4[%c0_6, %c0_7] : memref<16x1xf32, #tpu.memory_space<vmem>>, vector<16x1xf32>
    %56 = vector.broadcast %55 : vector<16x1xf32> to vector<16x256xf32>
    %57 = arith.addf %54, %56 : vector<16x256xf32>
    %cst_8 = arith.constant 3.000000e+00 : f32
    %58 = vector.broadcast %cst_8 : f32 to vector<16x256xf32>
    %59 = arith.addf %57, %58 : vector<16x256xf32>
    %cst_9 = arith.constant 0.000000e+00 : f32
    %cst_10 = arith.constant 6.000000e+00 : f32
    %60 = vector.broadcast %cst_9 : f32 to vector<16x256xf32>
    %61 = arith.maximumf %60, %59 : vector<16x256xf32>
    %62 = vector.broadcast %cst_10 : f32 to vector<16x256xf32>
    %63 = arith.minimumf %62, %61 : vector<16x256xf32>
    %64 = arith.mulf %57, %63 : vector<16x256xf32>
    %cst_11 = arith.constant 0.166666672 : f32
    %65 = vector.broadcast %cst_11 : f32 to vector<16x256xf32>
    %66 = arith.mulf %64, %65 : vector<16x256xf32>
    %cst_12 = arith.constant 0.000000e+00 : f32
    %67 = vector.broadcast %cst_12 : f32 to vector<16x324xf32>
    %c0_13 = arith.constant 0 : index
    %c0_14 = arith.constant 0 : index
    %68 = vector.load %arg16[%c0_13, %c0_14] : memref<16x324xf32, #tpu.memory_space<vmem>>, vector<16x324xf32>
    tpu.vector_store %arg16[%c0_13, %c0_14], %67 {strides = array<i32>} : memref<16x324xf32, #tpu.memory_space<vmem>>, vector<16x324xf32>,
    %69 = vector.extract_strided_slice %66 {offsets = [0, 0], sizes = [16, 16], strides = [1, 1]} : vector<16x256xf32> to vector<16x16xf32>
    %c0_15 = arith.constant 0 : index
    %c19 = arith.constant 19 : index
    %70 = vector.load %arg16[%c0_15, %c19] : memref<16x324xf32, #tpu.memory_space<vmem>>, vector<16x16xf32>
    tpu.vector_store %arg16[%c0_15, %c19], %69 {strides = array<i32>} : memref<16x324xf32, #tpu.memory_space<vmem>>, vector<16x16xf32>,
    %71 = vector.extract_strided_slice %66 {offsets = [0, 16], sizes = [16, 16], strides = [1, 1]} : vector<16x256xf32> to vector<16x16xf32>
    %c0_16 = arith.constant 0 : index
    %c37 = arith.constant 37 : index
    %72 = vector.load %arg16[%c0_16, %c37] : memref<16x324xf32, #tpu.memory_space<vmem>>, vector<16x16xf32>
    tpu.vector_store %arg16[%c0_16, %c37], %71 {strides = array<i32>} : memref<16x324xf32, #tpu.memory_space<vmem>>, vector<16x16xf32>,
    %73 = vector.extract_strided_slice %66 {offsets = [0, 32], sizes = [16, 16], strides = [1, 1]} : vector<16x256xf32> to vector<16x16xf32>
    %c0_17 = arith.constant 0 : index
    %c55 = arith.constant 55 : index
    %74 = vector.load %arg16[%c0_17, %c55] : memref<16x324xf32, #tpu.memory_space<vmem>>, vector<16x16xf32>
    tpu.vector_store %arg16[%c0_17, %c55], %73 {strides = array<i32>} : memref<16x324xf32, #tpu.memory_space<vmem>>, vector<16x16xf32>,
    %75 = vector.extract_strided_slice %66 {offsets = [0, 48], sizes = [16, 16], strides = [1, 1]} : vector<16x256xf32> to vector<16x16xf32>
    %c0_18 = arith.constant 0 : index
    %c73 = arith.constant 73 : index
    %76 = vector.load %arg16[%c0_18, %c73] : memref<16x324xf32, #tpu.memory_space<vmem>>, vector<16x16xf32>
    tpu.vector_store %arg16[%c0_18, %c73], %75 {strides = array<i32>} : memref<16x324xf32, #tpu.memory_space<vmem>>, vector<16x16xf32>,
    %77 = vector.extract_strided_slice %66 {offsets = [0, 64], sizes = [16, 16], strides = [1, 1]} : vector<16x256xf32> to vector<16x16xf32>
    %c0_19 = arith.constant 0 : index
    %c91 = arith.constant 91 : index
    %78 = vector.load %arg16[%c0_19, %c91] : memref<16x324xf32, #tpu.memory_space<vmem>>, vector<16x16xf32>
    tpu.vector_store %arg16[%c0_19, %c91], %77 {strides = array<i32>} : memref<16x324xf32, #tpu.memory_space<vmem>>, vector<16x16xf32>,
    %79 = vector.extract_strided_slice %66 {offsets = [0, 80], sizes = [16, 16], strides = [1, 1]} : vector<16x256xf32> to vector<16x16xf32>
    %c0_20 = arith.constant 0 : index
    %c109 = arith.constant 109 : index
    %80 = vector.load %arg16[%c0_20, %c109] : memref<16x324xf32, #tpu.memory_space<vmem>>, vector<16x16xf32>
    tpu.vector_store %arg16[%c0_20, %c109], %79 {strides = array<i32>} : memref<16x324xf32, #tpu.memory_space<vmem>>, vector<16x16xf32>,
    %81 = vector.extract_strided_slice %66 {offsets = [0, 96], sizes = [16, 16], strides = [1, 1]} : vector<16x256xf32> to vector<16x16xf32>
    %c0_21 = arith.constant 0 : index
    %c127 = arith.constant 127 : index
    %82 = vector.load %arg16[%c0_21, %c127] : memref<16x324xf32, #tpu.memory_space<vmem>>, vector<16x16xf32>
    tpu.vector_store %arg16[%c0_21, %c127], %81 {strides = array<i32>} : memref<16x324xf32, #tpu.memory_space<vmem>>, vector<16x16xf32>,
    %83 = vector.extract_strided_slice %66 {offsets = [0, 112], sizes = [16, 16], strides = [1, 1]} : vector<16x256xf32> to vector<16x16xf32>
    %c0_22 = arith.constant 0 : index
    %c145 = arith.constant 145 : index
    %84 = vector.load %arg16[%c0_22, %c145] : memref<16x324xf32, #tpu.memory_space<vmem>>, vector<16x16xf32>
    tpu.vector_store %arg16[%c0_22, %c145], %83 {strides = array<i32>} : memref<16x324xf32, #tpu.memory_space<vmem>>, vector<16x16xf32>,
    %85 = vector.extract_strided_slice %66 {offsets = [0, 128], sizes = [16, 16], strides = [1, 1]} : vector<16x256xf32> to vector<16x16xf32>
    %c0_23 = arith.constant 0 : index
    %c163 = arith.constant 163 : index
    %86 = vector.load %arg16[%c0_23, %c163] : memref<16x324xf32, #tpu.memory_space<vmem>>, vector<16x16xf32>
    tpu.vector_store %arg16[%c0_23, %c163], %85 {strides = array<i32>} : memref<16x324xf32, #tpu.memory_space<vmem>>, vector<16x16xf32>,
    %87 = vector.extract_strided_slice %66 {offsets = [0, 144], sizes = [16, 16], strides = [1, 1]} : vector<16x256xf32> to vector<16x16xf32>
    %c0_24 = arith.constant 0 : index
    %c181 = arith.constant 181 : index
    %88 = vector.load %arg16[%c0_24, %c181] : memref<16x324xf32, #tpu.memory_space<vmem>>, vector<16x16xf32>
    tpu.vector_store %arg16[%c0_24, %c181], %87 {strides = array<i32>} : memref<16x324xf32, #tpu.memory_space<vmem>>, vector<16x16xf32>,
    %89 = vector.extract_strided_slice %66 {offsets = [0, 160], sizes = [16, 16], strides = [1, 1]} : vector<16x256xf32> to vector<16x16xf32>
    %c0_25 = arith.constant 0 : index
    %c199 = arith.constant 199 : index
    %90 = vector.load %arg16[%c0_25, %c199] : memref<16x324xf32, #tpu.memory_space<vmem>>, vector<16x16xf32>
    tpu.vector_store %arg16[%c0_25, %c199], %89 {strides = array<i32>} : memref<16x324xf32, #tpu.memory_space<vmem>>, vector<16x16xf32>,
    %91 = vector.extract_strided_slice %66 {offsets = [0, 176], sizes = [16, 16], strides = [1, 1]} : vector<16x256xf32> to vector<16x16xf32>
    %c0_26 = arith.constant 0 : index
    %c217 = arith.constant 217 : index
    %92 = vector.load %arg16[%c0_26, %c217] : memref<16x324xf32, #tpu.memory_space<vmem>>, vector<16x16xf32>
    tpu.vector_store %arg16[%c0_26, %c217], %91 {strides = array<i32>} : memref<16x324xf32, #tpu.memory_space<vmem>>, vector<16x16xf32>,
    %93 = vector.extract_strided_slice %66 {offsets = [0, 192], sizes = [16, 16], strides = [1, 1]} : vector<16x256xf32> to vector<16x16xf32>
    %c0_27 = arith.constant 0 : index
    %c235 = arith.constant 235 : index
    %94 = vector.load %arg16[%c0_27, %c235] : memref<16x324xf32, #tpu.memory_space<vmem>>, vector<16x16xf32>
    tpu.vector_store %arg16[%c0_27, %c235], %93 {strides = array<i32>} : memref<16x324xf32, #tpu.memory_space<vmem>>, vector<16x16xf32>,
    %95 = vector.extract_strided_slice %66 {offsets = [0, 208], sizes = [16, 16], strides = [1, 1]} : vector<16x256xf32> to vector<16x16xf32>
    %c0_28 = arith.constant 0 : index
    %c253 = arith.constant 253 : index
    %96 = vector.load %arg16[%c0_28, %c253] : memref<16x324xf32, #tpu.memory_space<vmem>>, vector<16x16xf32>
    tpu.vector_store %arg16[%c0_28, %c253], %95 {strides = array<i32>} : memref<16x324xf32, #tpu.memory_space<vmem>>, vector<16x16xf32>,
    %97 = vector.extract_strided_slice %66 {offsets = [0, 224], sizes = [16, 16], strides = [1, 1]} : vector<16x256xf32> to vector<16x16xf32>
    %c0_29 = arith.constant 0 : index
    %c271 = arith.constant 271 : index
    %98 = vector.load %arg16[%c0_29, %c271] : memref<16x324xf32, #tpu.memory_space<vmem>>, vector<16x16xf32>
    tpu.vector_store %arg16[%c0_29, %c271], %97 {strides = array<i32>} : memref<16x324xf32, #tpu.memory_space<vmem>>, vector<16x16xf32>,
    %99 = vector.extract_strided_slice %66 {offsets = [0, 240], sizes = [16, 16], strides = [1, 1]} : vector<16x256xf32> to vector<16x16xf32>
    %c0_30 = arith.constant 0 : index
    %c289 = arith.constant 289 : index
    %100 = vector.load %arg16[%c0_30, %c289] : memref<16x324xf32, #tpu.memory_space<vmem>>, vector<16x16xf32>
    tpu.vector_store %arg16[%c0_30, %c289], %99 {strides = array<i32>} : memref<16x324xf32, #tpu.memory_space<vmem>>, vector<16x16xf32>,
    %c0_31 = arith.constant 0 : index
    %c0_32 = arith.constant 0 : index
    %101 = vector.load %arg5[%c0_31, %c0_32] : memref<16x9xf32, #tpu.memory_space<vmem>>, vector<16x1xf32>
    %c0_33 = arith.constant 0 : index
    %c1 = arith.constant 1 : index
    %102 = vector.load %arg5[%c0_33, %c1] : memref<16x9xf32, #tpu.memory_space<vmem>>, vector<16x1xf32>
    %c0_34 = arith.constant 0 : index
    %c2 = arith.constant 2 : index
    %103 = vector.load %arg5[%c0_34, %c2] : memref<16x9xf32, #tpu.memory_space<vmem>>, vector<16x1xf32>
    %c0_35 = arith.constant 0 : index
    %c3 = arith.constant 3 : index
    %104 = vector.load %arg5[%c0_35, %c3] : memref<16x9xf32, #tpu.memory_space<vmem>>, vector<16x1xf32>
    %c0_36 = arith.constant 0 : index
    %c4 = arith.constant 4 : index
    %105 = vector.load %arg5[%c0_36, %c4] : memref<16x9xf32, #tpu.memory_space<vmem>>, vector<16x1xf32>
    %c0_37 = arith.constant 0 : index
    %c5 = arith.constant 5 : index
    %106 = vector.load %arg5[%c0_37, %c5] : memref<16x9xf32, #tpu.memory_space<vmem>>, vector<16x1xf32>
    %c0_38 = arith.constant 0 : index
    %c6 = arith.constant 6 : index
    %107 = vector.load %arg5[%c0_38, %c6] : memref<16x9xf32, #tpu.memory_space<vmem>>, vector<16x1xf32>
    %c0_39 = arith.constant 0 : index
    %c7 = arith.constant 7 : index
    %108 = vector.load %arg5[%c0_39, %c7] : memref<16x9xf32, #tpu.memory_space<vmem>>, vector<16x1xf32>
    %c0_40 = arith.constant 0 : index
    %c8 = arith.constant 8 : index
    %109 = vector.load %arg5[%c0_40, %c8] : memref<16x9xf32, #tpu.memory_space<vmem>>, vector<16x1xf32>
    %cst_41 = arith.constant 0.000000e+00 : f32
    %110 = vector.broadcast %cst_41 : f32 to vector<16x16xf32>
    %c0_42 = arith.constant 0 : index
    %c0_43 = arith.constant 0 : index
    %111 = vector.load %arg16[%c0_42, %c0_43] : memref<16x324xf32, #tpu.memory_space<vmem>>, vector<16x16xf32>
    %112 = vector.broadcast %101 : vector<16x1xf32> to vector<16x16xf32>
    %113 = arith.mulf %111, %112 : vector<16x16xf32>
    %114 = arith.addf %110, %113 : vector<16x16xf32>
    %c0_44 = arith.constant 0 : index
    %c1_45 = arith.constant 1 : index
    %115 = vector.load %arg16[%c0_44, %c1_45] : memref<16x324xf32, #tpu.memory_space<vmem>>, vector<16x16xf32>
    %116 = vector.broadcast %102 : vector<16x1xf32> to vector<16x16xf32>
    %117 = arith.mulf %115, %116 : vector<16x16xf32>
    %118 = arith.addf %114, %117 : vector<16x16xf32>
    %c0_46 = arith.constant 0 : index
    %c2_47 = arith.constant 2 : index
    %119 = vector.load %arg16[%c0_46, %c2_47] : memref<16x324xf32, #tpu.memory_space<vmem>>, vector<16x16xf32>
    %120 = vector.broadcast %103 : vector<16x1xf32> to vector<16x16xf32>
    %121 = arith.mulf %119, %120 : vector<16x16xf32>
    %122 = arith.addf %118, %121 : vector<16x16xf32>
    %c0_48 = arith.constant 0 : index
    %c18 = arith.constant 18 : index
    %123 = vector.load %arg16[%c0_48, %c18] : memref<16x324xf32, #tpu.memory_space<vmem>>, vector<16x16xf32>
    %124 = vector.broadcast %104 : vector<16x1xf32> to vector<16x16xf32>
    %125 = arith.mulf %123, %124 : vector<16x16xf32>
    %126 = arith.addf %122, %125 : vector<16x16xf32>
    %c0_49 = arith.constant 0 : index
    %c19_50 = arith.constant 19 : index
    %127 = vector.load %arg16[%c0_49, %c19_50] : memref<16x324xf32, #tpu.memory_space<vmem>>, vector<16x16xf32>
    %128 = vector.broadcast %105 : vector<16x1xf32> to vector<16x16xf32>
    %129 = arith.mulf %127, %128 : vector<16x16xf32>
    %130 = arith.addf %126, %129 : vector<16x16xf32>
    %c0_51 = arith.constant 0 : index
    %c20 = arith.constant 20 : index
    %131 = vector.load %arg16[%c0_51, %c20] : memref<16x324xf32, #tpu.memory_space<vmem>>, vector<16x16xf32>
    %132 = vector.broadcast %106 : vector<16x1xf32> to vector<16x16xf32>
    %133 = arith.mulf %131, %132 : vector<16x16xf32>
    %134 = arith.addf %130, %133 : vector<16x16xf32>
    %c0_52 = arith.constant 0 : index
    %c36 = arith.constant 36 : index
    %135 = vector.load %arg16[%c0_52, %c36] : memref<16x324xf32, #tpu.memory_space<vmem>>, vector<16x16xf32>
    %136 = vector.broadcast %107 : vector<16x1xf32> to vector<16x16xf32>
    %137 = arith.mulf %135, %136 : vector<16x16xf32>
    %138 = arith.addf %134, %137 : vector<16x16xf32>
    %c0_53 = arith.constant 0 : index
    %c37_54 = arith.constant 37 : index
    %139 = vector.load %arg16[%c0_53, %c37_54] : memref<16x324xf32, #tpu.memory_space<vmem>>, vector<16x16xf32>
    %140 = vector.broadcast %108 : vector<16x1xf32> to vector<16x16xf32>
    %141 = arith.mulf %139, %140 : vector<16x16xf32>
    %142 = arith.addf %138, %141 : vector<16x16xf32>
    %c0_55 = arith.constant 0 : index
    %c38 = arith.constant 38 : index
    %143 = vector.load %arg16[%c0_55, %c38] : memref<16x324xf32, #tpu.memory_space<vmem>>, vector<16x16xf32>
    %144 = vector.broadcast %109 : vector<16x1xf32> to vector<16x16xf32>
    %145 = arith.mulf %143, %144 : vector<16x16xf32>
    %146 = arith.addf %142, %145 : vector<16x16xf32>
    %c0_56 = arith.constant 0 : index
    %c0_57 = arith.constant 0 : index
    %147 = vector.load %arg17[%c0_56, %c0_57] : memref<16x256xf32, #tpu.memory_space<vmem>>, vector<16x16xf32>
    tpu.vector_store %arg17[%c0_56, %c0_57], %146 {strides = array<i32>} : memref<16x256xf32, #tpu.memory_space<vmem>>, vector<16x16xf32>,
    %cst_58 = arith.constant 0.000000e+00 : f32
    %148 = vector.broadcast %cst_58 : f32 to vector<16x16xf32>
    %c0_59 = arith.constant 0 : index
    %c18_60 = arith.constant 18 : index
    %149 = vector.load %arg16[%c0_59, %c18_60] : memref<16x324xf32, #tpu.memory_space<vmem>>, vector<16x16xf32>
    %150 = vector.broadcast %101 : vector<16x1xf32> to vector<16x16xf32>
    %151 = arith.mulf %149, %150 : vector<16x16xf32>
    %152 = arith.addf %148, %151 : vector<16x16xf32>
    %c0_61 = arith.constant 0 : index
    %c19_62 = arith.constant 19 : index
    %153 = vector.load %arg16[%c0_61, %c19_62] : memref<16x324xf32, #tpu.memory_space<vmem>>, vector<16x16xf32>
    %154 = vector.broadcast %102 : vector<16x1xf32> to vector<16x16xf32>
    %155 = arith.mulf %153, %154 : vector<16x16xf32>
    %156 = arith.addf %152, %155 : vector<16x16xf32>
    %c0_63 = arith.constant 0 : index
    %c20_64 = arith.constant 20 : index
    %157 = vector.load %arg16[%c0_63, %c20_64] : memref<16x324xf32, #tpu.memory_space<vmem>>, vector<16x16xf32>
    %158 = vector.broadcast %103 : vector<16x1xf32> to vector<16x16xf32>
    %159 = arith.mulf %157, %158 : vector<16x16xf32>
    %160 = arith.addf %156, %159 : vector<16x16xf32>
    %c0_65 = arith.constant 0 : index
    %c36_66 = arith.constant 36 : index
    %161 = vector.load %arg16[%c0_65, %c36_66] : memref<16x324xf32, #tpu.memory_space<vmem>>, vector<16x16xf32>
    %162 = vector.broadcast %104 : vector<16x1xf32> to vector<16x16xf32>
    %163 = arith.mulf %161, %162 : vector<16x16xf32>
    %164 = arith.addf %160, %163 : vector<16x16xf32>
    %c0_67 = arith.constant 0 : index
    %c37_68 = arith.constant 37 : index
    %165 = vector.load %arg16[%c0_67, %c37_68] : memref<16x324xf32, #tpu.memory_space<vmem>>, vector<16x16xf32>
    %166 = vector.broadcast %105 : vector<16x1xf32> to vector<16x16xf32>
    %167 = arith.mulf %165, %166 : vector<16x16xf32>
    %168 = arith.addf %164, %167 : vector<16x16xf32>
    %c0_69 = arith.constant 0 : index
    %c38_70 = arith.constant 38 : index
    %169 = vector.load %arg16[%c0_69, %c38_70] : memref<16x324xf32, #tpu.memory_space<vmem>>, vector<16x16xf32>
    %170 = vector.broadcast %106 : vector<16x1xf32> to vector<16x16xf32>
    %171 = arith.mulf %169, %170 : vector<16x16xf32>
    %172 = arith.addf %168, %171 : vector<16x16xf32>
    %c0_71 = arith.constant 0 : index
    %c54 = arith.constant 54 : index
    %173 = vector.load %arg16[%c0_71, %c54] : memref<16x324xf32, #tpu.memory_space<vmem>>, vector<16x16xf32>
    %174 = vector.broadcast %107 : vector<16x1xf32> to vector<16x16xf32>
    %175 = arith.mulf %173, %174 : vector<16x16xf32>
    %176 = arith.addf %172, %175 : vector<16x16xf32>
    %c0_72 = arith.constant 0 : index
    %c55_73 = arith.constant 55 : index
    %177 = vector.load %arg16[%c0_72, %c55_73] : memref<16x324xf32, #tpu.memory_space<vmem>>, vector<16x16xf32>
    %178 = vector.broadcast %108 : vector<16x1xf32> to vector<16x16xf32>
    %179 = arith.mulf %177, %178 : vector<16x16xf32>
    %180 = arith.addf %176, %179 : vector<16x16xf32>
    %c0_74 = arith.constant 0 : index
    %c56 = arith.constant 56 : index
    %181 = vector.load %arg16[%c0_74, %c56] : memref<16x324xf32, #tpu.memory_space<vmem>>, vector<16x16xf32>
    %182 = vector.broadcast %109 : vector<16x1xf32> to vector<16x16xf32>
    %183 = arith.mulf %181, %182 : vector<16x16xf32>
    %184 = arith.addf %180, %183 : vector<16x16xf32>
    %c0_75 = arith.constant 0 : index
    %c16 = arith.constant 16 : index
    %185 = vector.load %arg17[%c0_75, %c16] : memref<16x256xf32, #tpu.memory_space<vmem>>, vector<16x16xf32>
    tpu.vector_store %arg17[%c0_75, %c16], %184 {strides = array<i32>} : memref<16x256xf32, #tpu.memory_space<vmem>>, vector<16x16xf32>,
    %cst_76 = arith.constant 0.000000e+00 : f32
    %186 = vector.broadcast %cst_76 : f32 to vector<16x16xf32>
    %c0_77 = arith.constant 0 : index
    %c36_78 = arith.constant 36 : index
    %187 = vector.load %arg16[%c0_77, %c36_78] : memref<16x324xf32, #tpu.memory_space<vmem>>, vector<16x16xf32>
    %188 = vector.broadcast %101 : vector<16x1xf32> to vector<16x16xf32>
    %189 = arith.mulf %187, %188 : vector<16x16xf32>
    %190 = arith.addf %186, %189 : vector<16x16xf32>
    %c0_79 = arith.constant 0 : index
    %c37_80 = arith.constant 37 : index
    %191 = vector.load %arg16[%c0_79, %c37_80] : memref<16x324xf32, #tpu.memory_space<vmem>>, vector<16x16xf32>
    %192 = vector.broadcast %102 : vector<16x1xf32> to vector<16x16xf32>
    %193 = arith.mulf %191, %192 : vector<16x16xf32>
    %194 = arith.addf %190, %193 : vector<16x16xf32>
    %c0_81 = arith.constant 0 : index
    %c38_82 = arith.constant 38 : index
    %195 = vector.load %arg16[%c0_81, %c38_82] : memref<16x324xf32, #tpu.memory_space<vmem>>, vector<16x16xf32>
    %196 = vector.broadcast %103 : vector<16x1xf32> to vector<16x16xf32>
    %197 = arith.mulf %195, %196 : vector<16x16xf32>
    %198 = arith.addf %194, %197 : vector<16x16xf32>
    %c0_83 = arith.constant 0 : index
    %c54_84 = arith.constant 54 : index
    %199 = vector.load %arg16[%c0_83, %c54_84] : memref<16x324xf32, #tpu.memory_space<vmem>>, vector<16x16xf32>
    %200 = vector.broadcast %104 : vector<16x1xf32> to vector<16x16xf32>
    %201 = arith.mulf %199, %200 : vector<16x16xf32>
    %202 = arith.addf %198, %201 : vector<16x16xf32>
    %c0_85 = arith.constant 0 : index
    %c55_86 = arith.constant 55 : index
    %203 = vector.load %arg16[%c0_85, %c55_86] : memref<16x324xf32, #tpu.memory_space<vmem>>, vector<16x16xf32>
    %204 = vector.broadcast %105 : vector<16x1xf32> to vector<16x16xf32>
    %205 = arith.mulf %203, %204 : vector<16x16xf32>
    %206 = arith.addf %202, %205 : vector<16x16xf32>
    %c0_87 = arith.constant 0 : index
    %c56_88 = arith.constant 56 : index
    %207 = vector.load %arg16[%c0_87, %c56_88] : memref<16x324xf32, #tpu.memory_space<vmem>>, vector<16x16xf32>
    %208 = vector.broadcast %106 : vector<16x1xf32> to vector<16x16xf32>
    %209 = arith.mulf %207, %208 : vector<16x16xf32>
    %210 = arith.addf %206, %209 : vector<16x16xf32>
    %c0_89 = arith.constant 0 : index
    %c72 = arith.constant 72 : index
    %211 = vector.load %arg16[%c0_89, %c72] : memref<16x324xf32, #tpu.memory_space<vmem>>, vector<16x16xf32>
    %212 = vector.broadcast %107 : vector<16x1xf32> to vector<16x16xf32>
    %213 = arith.mulf %211, %212 : vector<16x16xf32>
    %214 = arith.addf %210, %213 : vector<16x16xf32>
    %c0_90 = arith.constant 0 : index
    %c73_91 = arith.constant 73 : index
    %215 = vector.load %arg16[%c0_90, %c73_91] : memref<16x324xf32, #tpu.memory_space<vmem>>, vector<16x16xf32>
    %216 = vector.broadcast %108 : vector<16x1xf32> to vector<16x16xf32>
    %217 = arith.mulf %215, %216 : vector<16x16xf32>
    %218 = arith.addf %214, %217 : vector<16x16xf32>
    %c0_92 = arith.constant 0 : index
    %c74 = arith.constant 74 : index
    %219 = vector.load %arg16[%c0_92, %c74] : memref<16x324xf32, #tpu.memory_space<vmem>>, vector<16x16xf32>
    %220 = vector.broadcast %109 : vector<16x1xf32> to vector<16x16xf32>
    %221 = arith.mulf %219, %220 : vector<16x16xf32>
    %222 = arith.addf %218, %221 : vector<16x16xf32>
    %c0_93 = arith.constant 0 : index
    %c32 = arith.constant 32 : index
    %223 = vector.load %arg17[%c0_93, %c32] : memref<16x256xf32, #tpu.memory_space<vmem>>, vector<16x16xf32>
    tpu.vector_store %arg17[%c0_93, %c32], %222 {strides = array<i32>} : memref<16x256xf32, #tpu.memory_space<vmem>>, vector<16x16xf32>,
    %cst_94 = arith.constant 0.000000e+00 : f32
    %224 = vector.broadcast %cst_94 : f32 to vector<16x16xf32>
    %c0_95 = arith.constant 0 : index
    %c54_96 = arith.constant 54 : index
    %225 = vector.load %arg16[%c0_95, %c54_96] : memref<16x324xf32, #tpu.memory_space<vmem>>, vector<16x16xf32>
    %226 = vector.broadcast %101 : vector<16x1xf32> to vector<16x16xf32>
    %227 = arith.mulf %225, %226 : vector<16x16xf32>
    %228 = arith.addf %224, %227 : vector<16x16xf32>
    %c0_97 = arith.constant 0 : index
    %c55_98 = arith.constant 55 : index
    %229 = vector.load %arg16[%c0_97, %c55_98] : memref<16x324xf32, #tpu.memory_space<vmem>>, vector<16x16xf32>
    %230 = vector.broadcast %102 : vector<16x1xf32> to vector<16x16xf32>
    %231 = arith.mulf %229, %230 : vector<16x16xf32>
    %232 = arith.addf %228, %231 : vector<16x16xf32>
    %c0_99 = arith.constant 0 : index
    %c56_100 = arith.constant 56 : index
    %233 = vector.load %arg16[%c0_99, %c56_100] : memref<16x324xf32, #tpu.memory_space<vmem>>, vector<16x16xf32>
    %234 = vector.broadcast %103 : vector<16x1xf32> to vector<16x16xf32>
    %235 = arith.mulf %233, %234 : vector<16x16xf32>
    %236 = arith.addf %232, %235 : vector<16x16xf32>
    %c0_101 = arith.constant 0 : index
    %c72_102 = arith.constant 72 : index
    %237 = vector.load %arg16[%c0_101, %c72_102] : memref<16x324xf32, #tpu.memory_space<vmem>>, vector<16x16xf32>
    %238 = vector.broadcast %104 : vector<16x1xf32> to vector<16x16xf32>
    %239 = arith.mulf %237, %238 : vector<16x16xf32>
    %240 = arith.addf %236, %239 : vector<16x16xf32>
    %c0_103 = arith.constant 0 : index
    %c73_104 = arith.constant 73 : index
    %241 = vector.load %arg16[%c0_103, %c73_104] : memref<16x324xf32, #tpu.memory_space<vmem>>, vector<16x16xf32>
    %242 = vector.broadcast %105 : vector<16x1xf32> to vector<16x16xf32>
    %243 = arith.mulf %241, %242 : vector<16x16xf32>
    %244 = arith.addf %240, %243 : vector<16x16xf32>
    %c0_105 = arith.constant 0 : index
    %c74_106 = arith.constant 74 : index
    %245 = vector.load %arg16[%c0_105, %c74_106] : memref<16x324xf32, #tpu.memory_space<vmem>>, vector<16x16xf32>
    %246 = vector.broadcast %106 : vector<16x1xf32> to vector<16x16xf32>
    %247 = arith.mulf %245, %246 : vector<16x16xf32>
    %248 = arith.addf %244, %247 : vector<16x16xf32>
    %c0_107 = arith.constant 0 : index
    %c90 = arith.constant 90 : index
    %249 = vector.load %arg16[%c0_107, %c90] : memref<16x324xf32, #tpu.memory_space<vmem>>, vector<16x16xf32>
    %250 = vector.broadcast %107 : vector<16x1xf32> to vector<16x16xf32>
    %251 = arith.mulf %249, %250 : vector<16x16xf32>
    %252 = arith.addf %248, %251 : vector<16x16xf32>
    %c0_108 = arith.constant 0 : index
    %c91_109 = arith.constant 91 : index
    %253 = vector.load %arg16[%c0_108, %c91_109] : memref<16x324xf32, #tpu.memory_space<vmem>>, vector<16x16xf32>
    %254 = vector.broadcast %108 : vector<16x1xf32> to vector<16x16xf32>
    %255 = arith.mulf %253, %254 : vector<16x16xf32>
    %256 = arith.addf %252, %255 : vector<16x16xf32>
    %c0_110 = arith.constant 0 : index
    %c92 = arith.constant 92 : index
    %257 = vector.load %arg16[%c0_110, %c92] : memref<16x324xf32, #tpu.memory_space<vmem>>, vector<16x16xf32>
    %258 = vector.broadcast %109 : vector<16x1xf32> to vector<16x16xf32>
    %259 = arith.mulf %257, %258 : vector<16x16xf32>
    %260 = arith.addf %256, %259 : vector<16x16xf32>
    %c0_111 = arith.constant 0 : index
    %c48 = arith.constant 48 : index
    %261 = vector.load %arg17[%c0_111, %c48] : memref<16x256xf32, #tpu.memory_space<vmem>>, vector<16x16xf32>
    tpu.vector_store %arg17[%c0_111, %c48], %260 {strides = array<i32>} : memref<16x256xf32, #tpu.memory_space<vmem>>, vector<16x16xf32>,
    %cst_112 = arith.constant 0.000000e+00 : f32
    %262 = vector.broadcast %cst_112 : f32 to vector<16x16xf32>
    %c0_113 = arith.constant 0 : index
    %c72_114 = arith.constant 72 : index
    %263 = vector.load %arg16[%c0_113, %c72_114] : memref<16x324xf32, #tpu.memory_space<vmem>>, vector<16x16xf32>
    %264 = vector.broadcast %101 : vector<16x1xf32> to vector<16x16xf32>
    %265 = arith.mulf %263, %264 : vector<16x16xf32>
    %266 = arith.addf %262, %265 : vector<16x16xf32>
    %c0_115 = arith.constant 0 : index
    %c73_116 = arith.constant 73 : index
    %267 = vector.load %arg16[%c0_115, %c73_116] : memref<16x324xf32, #tpu.memory_space<vmem>>, vector<16x16xf32>
    %268 = vector.broadcast %102 : vector<16x1xf32> to vector<16x16xf32>
    %269 = arith.mulf %267, %268 : vector<16x16xf32>
    %270 = arith.addf %266, %269 : vector<16x16xf32>
    %c0_117 = arith.constant 0 : index
    %c74_118 = arith.constant 74 : index
    %271 = vector.load %arg16[%c0_117, %c74_118] : memref<16x324xf32, #tpu.memory_space<vmem>>, vector<16x16xf32>
    %272 = vector.broadcast %103 : vector<16x1xf32> to vector<16x16xf32>
    %273 = arith.mulf %271, %272 : vector<16x16xf32>
    %274 = arith.addf %270, %273 : vector<16x16xf32>
    %c0_119 = arith.constant 0 : index
    %c90_120 = arith.constant 90 : index
    %275 = vector.load %arg16[%c0_119, %c90_120] : memref<16x324xf32, #tpu.memory_space<vmem>>, vector<16x16xf32>
    %276 = vector.broadcast %104 : vector<16x1xf32> to vector<16x16xf32>
    %277 = arith.mulf %275, %276 : vector<16x16xf32>
    %278 = arith.addf %274, %277 : vector<16x16xf32>
    %c0_121 = arith.constant 0 : index
    %c91_122 = arith.constant 91 : index
    %279 = vector.load %arg16[%c0_121, %c91_122] : memref<16x324xf32, #tpu.memory_space<vmem>>, vector<16x16xf32>
    %280 = vector.broadcast %105 : vector<16x1xf32> to vector<16x16xf32>
    %281 = arith.mulf %279, %280 : vector<16x16xf32>
    %282 = arith.addf %278, %281 : vector<16x16xf32>
    %c0_123 = arith.constant 0 : index
    %c92_124 = arith.constant 92 : index
    %283 = vector.load %arg16[%c0_123, %c92_124] : memref<16x324xf32, #tpu.memory_space<vmem>>, vector<16x16xf32>
    %284 = vector.broadcast %106 : vector<16x1xf32> to vector<16x16xf32>
    %285 = arith.mulf %283, %284 : vector<16x16xf32>
    %286 = arith.addf %282, %285 : vector<16x16xf32>
    %c0_125 = arith.constant 0 : index
    %c108 = arith.constant 108 : index
    %287 = vector.load %arg16[%c0_125, %c108] : memref<16x324xf32, #tpu.memory_space<vmem>>, vector<16x16xf32>
    %288 = vector.broadcast %107 : vector<16x1xf32> to vector<16x16xf32>
    %289 = arith.mulf %287, %288 : vector<16x16xf32>
    %290 = arith.addf %286, %289 : vector<16x16xf32>
    %c0_126 = arith.constant 0 : index
    %c109_127 = arith.constant 109 : index
    %291 = vector.load %arg16[%c0_126, %c109_127] : memref<16x324xf32, #tpu.memory_space<vmem>>, vector<16x16xf32>
    %292 = vector.broadcast %108 : vector<16x1xf32> to vector<16x16xf32>
    %293 = arith.mulf %291, %292 : vector<16x16xf32>
    %294 = arith.addf %290, %293 : vector<16x16xf32>
    %c0_128 = arith.constant 0 : index
    %c110 = arith.constant 110 : index
    %295 = vector.load %arg16[%c0_128, %c110] : memref<16x324xf32, #tpu.memory_space<vmem>>, vector<16x16xf32>
    %296 = vector.broadcast %109 : vector<16x1xf32> to vector<16x16xf32>
    %297 = arith.mulf %295, %296 : vector<16x16xf32>
    %298 = arith.addf %294, %297 : vector<16x16xf32>
    %c0_129 = arith.constant 0 : index
    %c64 = arith.constant 64 : index
    %299 = vector.load %arg17[%c0_129, %c64] : memref<16x256xf32, #tpu.memory_space<vmem>>, vector<16x16xf32>
    tpu.vector_store %arg17[%c0_129, %c64], %298 {strides = array<i32>} : memref<16x256xf32, #tpu.memory_space<vmem>>, vector<16x16xf32>,
    %cst_130 = arith.constant 0.000000e+00 : f32
    %300 = vector.broadcast %cst_130 : f32 to vector<16x16xf32>
    %c0_131 = arith.constant 0 : index
    %c90_132 = arith.constant 90 : index
    %301 = vector.load %arg16[%c0_131, %c90_132] : memref<16x324xf32, #tpu.memory_space<vmem>>, vector<16x16xf32>
    %302 = vector.broadcast %101 : vector<16x1xf32> to vector<16x16xf32>
    %303 = arith.mulf %301, %302 : vector<16x16xf32>
    %304 = arith.addf %300, %303 : vector<16x16xf32>
    %c0_133 = arith.constant 0 : index
    %c91_134 = arith.constant 91 : index
    %305 = vector.load %arg16[%c0_133, %c91_134] : memref<16x324xf32, #tpu.memory_space<vmem>>, vector<16x16xf32>
    %306 = vector.broadcast %102 : vector<16x1xf32> to vector<16x16xf32>
    %307 = arith.mulf %305, %306 : vector<16x16xf32>
    %308 = arith.addf %304, %307 : vector<16x16xf32>
    %c0_135 = arith.constant 0 : index
    %c92_136 = arith.constant 92 : index
    %309 = vector.load %arg16[%c0_135, %c92_136] : memref<16x324xf32, #tpu.memory_space<vmem>>, vector<16x16xf32>
    %310 = vector.broadcast %103 : vector<16x1xf32> to vector<16x16xf32>
    %311 = arith.mulf %309, %310 : vector<16x16xf32>
    %312 = arith.addf %308, %311 : vector<16x16xf32>
    %c0_137 = arith.constant 0 : index
    %c108_138 = arith.constant 108 : index
    %313 = vector.load %arg16[%c0_137, %c108_138] : memref<16x324xf32, #tpu.memory_space<vmem>>, vector<16x16xf32>
    %314 = vector.broadcast %104 : vector<16x1xf32> to vector<16x16xf32>
    %315 = arith.mulf %313, %314 : vector<16x16xf32>
    %316 = arith.addf %312, %315 : vector<16x16xf32>
    %c0_139 = arith.constant 0 : index
    %c109_140 = arith.constant 109 : index
    %317 = vector.load %arg16[%c0_139, %c109_140] : memref<16x324xf32, #tpu.memory_space<vmem>>, vector<16x16xf32>
    %318 = vector.broadcast %105 : vector<16x1xf32> to vector<16x16xf32>
    %319 = arith.mulf %317, %318 : vector<16x16xf32>
    %320 = arith.addf %316, %319 : vector<16x16xf32>
    %c0_141 = arith.constant 0 : index
    %c110_142 = arith.constant 110 : index
    %321 = vector.load %arg16[%c0_141, %c110_142] : memref<16x324xf32, #tpu.memory_space<vmem>>, vector<16x16xf32>
    %322 = vector.broadcast %106 : vector<16x1xf32> to vector<16x16xf32>
    %323 = arith.mulf %321, %322 : vector<16x16xf32>
    %324 = arith.addf %320, %323 : vector<16x16xf32>
    %c0_143 = arith.constant 0 : index
    %c126 = arith.constant 126 : index
    %325 = vector.load %arg16[%c0_143, %c126] : memref<16x324xf32, #tpu.memory_space<vmem>>, vector<16x16xf32>
    %326 = vector.broadcast %107 : vector<16x1xf32> to vector<16x16xf32>
    %327 = arith.mulf %325, %326 : vector<16x16xf32>
    %328 = arith.addf %324, %327 : vector<16x16xf32>
    %c0_144 = arith.constant 0 : index
    %c127_145 = arith.constant 127 : index
    %329 = vector.load %arg16[%c0_144, %c127_145] : memref<16x324xf32, #tpu.memory_space<vmem>>, vector<16x16xf32>
    %330 = vector.broadcast %108 : vector<16x1xf32> to vector<16x16xf32>
    %331 = arith.mulf %329, %330 : vector<16x16xf32>
    %332 = arith.addf %328, %331 : vector<16x16xf32>
    %c0_146 = arith.constant 0 : index
    %c128 = arith.constant 128 : index
    %333 = vector.load %arg16[%c0_146, %c128] : memref<16x324xf32, #tpu.memory_space<vmem>>, vector<16x16xf32>
    %334 = vector.broadcast %109 : vector<16x1xf32> to vector<16x16xf32>
    %335 = arith.mulf %333, %334 : vector<16x16xf32>
    %336 = arith.addf %332, %335 : vector<16x16xf32>
    %c0_147 = arith.constant 0 : index
    %c80 = arith.constant 80 : index
    %337 = vector.load %arg17[%c0_147, %c80] : memref<16x256xf32, #tpu.memory_space<vmem>>, vector<16x16xf32>
    tpu.vector_store %arg17[%c0_147, %c80], %336 {strides = array<i32>} : memref<16x256xf32, #tpu.memory_space<vmem>>, vector<16x16xf32>,
    %cst_148 = arith.constant 0.000000e+00 : f32
    %338 = vector.broadcast %cst_148 : f32 to vector<16x16xf32>
    %c0_149 = arith.constant 0 : index
    %c108_150 = arith.constant 108 : index
    %339 = vector.load %arg16[%c0_149, %c108_150] : memref<16x324xf32, #tpu.memory_space<vmem>>, vector<16x16xf32>
    %340 = vector.broadcast %101 : vector<16x1xf32> to vector<16x16xf32>
    %341 = arith.mulf %339, %340 : vector<16x16xf32>
    %342 = arith.addf %338, %341 : vector<16x16xf32>
    %c0_151 = arith.constant 0 : index
    %c109_152 = arith.constant 109 : index
    %343 = vector.load %arg16[%c0_151, %c109_152] : memref<16x324xf32, #tpu.memory_space<vmem>>, vector<16x16xf32>
    %344 = vector.broadcast %102 : vector<16x1xf32> to vector<16x16xf32>
    %345 = arith.mulf %343, %344 : vector<16x16xf32>
    %346 = arith.addf %342, %345 : vector<16x16xf32>
    %c0_153 = arith.constant 0 : index
    %c110_154 = arith.constant 110 : index
    %347 = vector.load %arg16[%c0_153, %c110_154] : memref<16x324xf32, #tpu.memory_space<vmem>>, vector<16x16xf32>
    %348 = vector.broadcast %103 : vector<16x1xf32> to vector<16x16xf32>
    %349 = arith.mulf %347, %348 : vector<16x16xf32>
    %350 = arith.addf %346, %349 : vector<16x16xf32>
    %c0_155 = arith.constant 0 : index
    %c126_156 = arith.constant 126 : index
    %351 = vector.load %arg16[%c0_155, %c126_156] : memref<16x324xf32, #tpu.memory_space<vmem>>, vector<16x16xf32>
    %352 = vector.broadcast %104 : vector<16x1xf32> to vector<16x16xf32>
    %353 = arith.mulf %351, %352 : vector<16x16xf32>
    %354 = arith.addf %350, %353 : vector<16x16xf32>
    %c0_157 = arith.constant 0 : index
    %c127_158 = arith.constant 127 : index
    %355 = vector.load %arg16[%c0_157, %c127_158] : memref<16x324xf32, #tpu.memory_space<vmem>>, vector<16x16xf32>
    %356 = vector.broadcast %105 : vector<16x1xf32> to vector<16x16xf32>
    %357 = arith.mulf %355, %356 : vector<16x16xf32>
    %358 = arith.addf %354, %357 : vector<16x16xf32>
    %c0_159 = arith.constant 0 : index
    %c128_160 = arith.constant 128 : index
    %359 = vector.load %arg16[%c0_159, %c128_160] : memref<16x324xf32, #tpu.memory_space<vmem>>, vector<16x16xf32>
    %360 = vector.broadcast %106 : vector<16x1xf32> to vector<16x16xf32>
    %361 = arith.mulf %359, %360 : vector<16x16xf32>
    %362 = arith.addf %358, %361 : vector<16x16xf32>
    %c0_161 = arith.constant 0 : index
    %c144 = arith.constant 144 : index
    %363 = vector.load %arg16[%c0_161, %c144] : memref<16x324xf32, #tpu.memory_space<vmem>>, vector<16x16xf32>
    %364 = vector.broadcast %107 : vector<16x1xf32> to vector<16x16xf32>
    %365 = arith.mulf %363, %364 : vector<16x16xf32>
    %366 = arith.addf %362, %365 : vector<16x16xf32>
    %c0_162 = arith.constant 0 : index
    %c145_163 = arith.constant 145 : index
    %367 = vector.load %arg16[%c0_162, %c145_163] : memref<16x324xf32, #tpu.memory_space<vmem>>, vector<16x16xf32>
    %368 = vector.broadcast %108 : vector<16x1xf32> to vector<16x16xf32>
    %369 = arith.mulf %367, %368 : vector<16x16xf32>
    %370 = arith.addf %366, %369 : vector<16x16xf32>
    %c0_164 = arith.constant 0 : index
    %c146 = arith.constant 146 : index
    %371 = vector.load %arg16[%c0_164, %c146] : memref<16x324xf32, #tpu.memory_space<vmem>>, vector<16x16xf32>
    %372 = vector.broadcast %109 : vector<16x1xf32> to vector<16x16xf32>
    %373 = arith.mulf %371, %372 : vector<16x16xf32>
    %374 = arith.addf %370, %373 : vector<16x16xf32>
    %c0_165 = arith.constant 0 : index
    %c96 = arith.constant 96 : index
    %375 = vector.load %arg17[%c0_165, %c96] : memref<16x256xf32, #tpu.memory_space<vmem>>, vector<16x16xf32>
    tpu.vector_store %arg17[%c0_165, %c96], %374 {strides = array<i32>} : memref<16x256xf32, #tpu.memory_space<vmem>>, vector<16x16xf32>,
    %cst_166 = arith.constant 0.000000e+00 : f32
    %376 = vector.broadcast %cst_166 : f32 to vector<16x16xf32>
    %c0_167 = arith.constant 0 : index
    %c126_168 = arith.constant 126 : index
    %377 = vector.load %arg16[%c0_167, %c126_168] : memref<16x324xf32, #tpu.memory_space<vmem>>, vector<16x16xf32>
    %378 = vector.broadcast %101 : vector<16x1xf32> to vector<16x16xf32>
    %379 = arith.mulf %377, %378 : vector<16x16xf32>
    %380 = arith.addf %376, %379 : vector<16x16xf32>
    %c0_169 = arith.constant 0 : index
    %c127_170 = arith.constant 127 : index
    %381 = vector.load %arg16[%c0_169, %c127_170] : memref<16x324xf32, #tpu.memory_space<vmem>>, vector<16x16xf32>
    %382 = vector.broadcast %102 : vector<16x1xf32> to vector<16x16xf32>
    %383 = arith.mulf %381, %382 : vector<16x16xf32>
    %384 = arith.addf %380, %383 : vector<16x16xf32>
    %c0_171 = arith.constant 0 : index
    %c128_172 = arith.constant 128 : index
    %385 = vector.load %arg16[%c0_171, %c128_172] : memref<16x324xf32, #tpu.memory_space<vmem>>, vector<16x16xf32>
    %386 = vector.broadcast %103 : vector<16x1xf32> to vector<16x16xf32>
    %387 = arith.mulf %385, %386 : vector<16x16xf32>
    %388 = arith.addf %384, %387 : vector<16x16xf32>
    %c0_173 = arith.constant 0 : index
    %c144_174 = arith.constant 144 : index
    %389 = vector.load %arg16[%c0_173, %c144_174] : memref<16x324xf32, #tpu.memory_space<vmem>>, vector<16x16xf32>
    %390 = vector.broadcast %104 : vector<16x1xf32> to vector<16x16xf32>
    %391 = arith.mulf %389, %390 : vector<16x16xf32>
    %392 = arith.addf %388, %391 : vector<16x16xf32>
    %c0_175 = arith.constant 0 : index
    %c145_176 = arith.constant 145 : index
    %393 = vector.load %arg16[%c0_175, %c145_176] : memref<16x324xf32, #tpu.memory_space<vmem>>, vector<16x16xf32>
    %394 = vector.broadcast %105 : vector<16x1xf32> to vector<16x16xf32>
    %395 = arith.mulf %393, %394 : vector<16x16xf32>
    %396 = arith.addf %392, %395 : vector<16x16xf32>
    %c0_177 = arith.constant 0 : index
    %c146_178 = arith.constant 146 : index
    %397 = vector.load %arg16[%c0_177, %c146_178] : memref<16x324xf32, #tpu.memory_space<vmem>>, vector<16x16xf32>
    %398 = vector.broadcast %106 : vector<16x1xf32> to vector<16x16xf32>
    %399 = arith.mulf %397, %398 : vector<16x16xf32>
    %400 = arith.addf %396, %399 : vector<16x16xf32>
    %c0_179 = arith.constant 0 : index
    %c162 = arith.constant 162 : index
    %401 = vector.load %arg16[%c0_179, %c162] : memref<16x324xf32, #tpu.memory_space<vmem>>, vector<16x16xf32>
    %402 = vector.broadcast %107 : vector<16x1xf32> to vector<16x16xf32>
    %403 = arith.mulf %401, %402 : vector<16x16xf32>
    %404 = arith.addf %400, %403 : vector<16x16xf32>
    %c0_180 = arith.constant 0 : index
    %c163_181 = arith.constant 163 : index
    %405 = vector.load %arg16[%c0_180, %c163_181] : memref<16x324xf32, #tpu.memory_space<vmem>>, vector<16x16xf32>
    %406 = vector.broadcast %108 : vector<16x1xf32> to vector<16x16xf32>
    %407 = arith.mulf %405, %406 : vector<16x16xf32>
    %408 = arith.addf %404, %407 : vector<16x16xf32>
    %c0_182 = arith.constant 0 : index
    %c164 = arith.constant 164 : index
    %409 = vector.load %arg16[%c0_182, %c164] : memref<16x324xf32, #tpu.memory_space<vmem>>, vector<16x16xf32>
    %410 = vector.broadcast %109 : vector<16x1xf32> to vector<16x16xf32>
    %411 = arith.mulf %409, %410 : vector<16x16xf32>
    %412 = arith.addf %408, %411 : vector<16x16xf32>
    %c0_183 = arith.constant 0 : index
    %c112 = arith.constant 112 : index
    %413 = vector.load %arg17[%c0_183, %c112] : memref<16x256xf32, #tpu.memory_space<vmem>>, vector<16x16xf32>
    tpu.vector_store %arg17[%c0_183, %c112], %412 {strides = array<i32>} : memref<16x256xf32, #tpu.memory_space<vmem>>, vector<16x16xf32>,
    %cst_184 = arith.constant 0.000000e+00 : f32
    %414 = vector.broadcast %cst_184 : f32 to vector<16x16xf32>
    %c0_185 = arith.constant 0 : index
    %c144_186 = arith.constant 144 : index
    %415 = vector.load %arg16[%c0_185, %c144_186] : memref<16x324xf32, #tpu.memory_space<vmem>>, vector<16x16xf32>
    %416 = vector.broadcast %101 : vector<16x1xf32> to vector<16x16xf32>
    %417 = arith.mulf %415, %416 : vector<16x16xf32>
    %418 = arith.addf %414, %417 : vector<16x16xf32>
    %c0_187 = arith.constant 0 : index
    %c145_188 = arith.constant 145 : index
    %419 = vector.load %arg16[%c0_187, %c145_188] : memref<16x324xf32, #tpu.memory_space<vmem>>, vector<16x16xf32>
    %420 = vector.broadcast %102 : vector<16x1xf32> to vector<16x16xf32>
    %421 = arith.mulf %419, %420 : vector<16x16xf32>
    %422 = arith.addf %418, %421 : vector<16x16xf32>
    %c0_189 = arith.constant 0 : index
    %c146_190 = arith.constant 146 : index
    %423 = vector.load %arg16[%c0_189, %c146_190] : memref<16x324xf32, #tpu.memory_space<vmem>>, vector<16x16xf32>
    %424 = vector.broadcast %103 : vector<16x1xf32> to vector<16x16xf32>
    %425 = arith.mulf %423, %424 : vector<16x16xf32>
    %426 = arith.addf %422, %425 : vector<16x16xf32>
    %c0_191 = arith.constant 0 : index
    %c162_192 = arith.constant 162 : index
    %427 = vector.load %arg16[%c0_191, %c162_192] : memref<16x324xf32, #tpu.memory_space<vmem>>, vector<16x16xf32>
    %428 = vector.broadcast %104 : vector<16x1xf32> to vector<16x16xf32>
    %429 = arith.mulf %427, %428 : vector<16x16xf32>
    %430 = arith.addf %426, %429 : vector<16x16xf32>
    %c0_193 = arith.constant 0 : index
    %c163_194 = arith.constant 163 : index
    %431 = vector.load %arg16[%c0_193, %c163_194] : memref<16x324xf32, #tpu.memory_space<vmem>>, vector<16x16xf32>
    %432 = vector.broadcast %105 : vector<16x1xf32> to vector<16x16xf32>
    %433 = arith.mulf %431, %432 : vector<16x16xf32>
    %434 = arith.addf %430, %433 : vector<16x16xf32>
    %c0_195 = arith.constant 0 : index
    %c164_196 = arith.constant 164 : index
    %435 = vector.load %arg16[%c0_195, %c164_196] : memref<16x324xf32, #tpu.memory_space<vmem>>, vector<16x16xf32>
    %436 = vector.broadcast %106 : vector<16x1xf32> to vector<16x16xf32>
    %437 = arith.mulf %435, %436 : vector<16x16xf32>
    %438 = arith.addf %434, %437 : vector<16x16xf32>
    %c0_197 = arith.constant 0 : index
    %c180 = arith.constant 180 : index
    %439 = vector.load %arg16[%c0_197, %c180] : memref<16x324xf32, #tpu.memory_space<vmem>>, vector<16x16xf32>
    %440 = vector.broadcast %107 : vector<16x1xf32> to vector<16x16xf32>
    %441 = arith.mulf %439, %440 : vector<16x16xf32>
    %442 = arith.addf %438, %441 : vector<16x16xf32>
    %c0_198 = arith.constant 0 : index
    %c181_199 = arith.constant 181 : index
    %443 = vector.load %arg16[%c0_198, %c181_199] : memref<16x324xf32, #tpu.memory_space<vmem>>, vector<16x16xf32>
    %444 = vector.broadcast %108 : vector<16x1xf32> to vector<16x16xf32>
    %445 = arith.mulf %443, %444 : vector<16x16xf32>
    %446 = arith.addf %442, %445 : vector<16x16xf32>
    %c0_200 = arith.constant 0 : index
    %c182 = arith.constant 182 : index
    %447 = vector.load %arg16[%c0_200, %c182] : memref<16x324xf32, #tpu.memory_space<vmem>>, vector<16x16xf32>
    %448 = vector.broadcast %109 : vector<16x1xf32> to vector<16x16xf32>
    %449 = arith.mulf %447, %448 : vector<16x16xf32>
    %450 = arith.addf %446, %449 : vector<16x16xf32>
    %c0_201 = arith.constant 0 : index
    %c128_202 = arith.constant 128 : index
    %451 = vector.load %arg17[%c0_201, %c128_202] : memref<16x256xf32, #tpu.memory_space<vmem>>, vector<16x16xf32>
    tpu.vector_store %arg17[%c0_201, %c128_202], %450 {strides = array<i32>} : memref<16x256xf32, #tpu.memory_space<vmem>>, vector<16x16xf32>,
    %cst_203 = arith.constant 0.000000e+00 : f32
    %452 = vector.broadcast %cst_203 : f32 to vector<16x16xf32>
    %c0_204 = arith.constant 0 : index
    %c162_205 = arith.constant 162 : index
    %453 = vector.load %arg16[%c0_204, %c162_205] : memref<16x324xf32, #tpu.memory_space<vmem>>, vector<16x16xf32>
    %454 = vector.broadcast %101 : vector<16x1xf32> to vector<16x16xf32>
    %455 = arith.mulf %453, %454 : vector<16x16xf32>
    %456 = arith.addf %452, %455 : vector<16x16xf32>
    %c0_206 = arith.constant 0 : index
    %c163_207 = arith.constant 163 : index
    %457 = vector.load %arg16[%c0_206, %c163_207] : memref<16x324xf32, #tpu.memory_space<vmem>>, vector<16x16xf32>
    %458 = vector.broadcast %102 : vector<16x1xf32> to vector<16x16xf32>
    %459 = arith.mulf %457, %458 : vector<16x16xf32>
    %460 = arith.addf %456, %459 : vector<16x16xf32>
    %c0_208 = arith.constant 0 : index
    %c164_209 = arith.constant 164 : index
    %461 = vector.load %arg16[%c0_208, %c164_209] : memref<16x324xf32, #tpu.memory_space<vmem>>, vector<16x16xf32>
    %462 = vector.broadcast %103 : vector<16x1xf32> to vector<16x16xf32>
    %463 = arith.mulf %461, %462 : vector<16x16xf32>
    %464 = arith.addf %460, %463 : vector<16x16xf32>
    %c0_210 = arith.constant 0 : index
    %c180_211 = arith.constant 180 : index
    %465 = vector.load %arg16[%c0_210, %c180_211] : memref<16x324xf32, #tpu.memory_space<vmem>>, vector<16x16xf32>
    %466 = vector.broadcast %104 : vector<16x1xf32> to vector<16x16xf32>
    %467 = arith.mulf %465, %466 : vector<16x16xf32>
    %468 = arith.addf %464, %467 : vector<16x16xf32>
    %c0_212 = arith.constant 0 : index
    %c181_213 = arith.constant 181 : index
    %469 = vector.load %arg16[%c0_212, %c181_213] : memref<16x324xf32, #tpu.memory_space<vmem>>, vector<16x16xf32>
    %470 = vector.broadcast %105 : vector<16x1xf32> to vector<16x16xf32>
    %471 = arith.mulf %469, %470 : vector<16x16xf32>
    %472 = arith.addf %468, %471 : vector<16x16xf32>
    %c0_214 = arith.constant 0 : index
    %c182_215 = arith.constant 182 : index
    %473 = vector.load %arg16[%c0_214, %c182_215] : memref<16x324xf32, #tpu.memory_space<vmem>>, vector<16x16xf32>
    %474 = vector.broadcast %106 : vector<16x1xf32> to vector<16x16xf32>
    %475 = arith.mulf %473, %474 : vector<16x16xf32>
    %476 = arith.addf %472, %475 : vector<16x16xf32>
    %c0_216 = arith.constant 0 : index
    %c198 = arith.constant 198 : index
    %477 = vector.load %arg16[%c0_216, %c198] : memref<16x324xf32, #tpu.memory_space<vmem>>, vector<16x16xf32>
    %478 = vector.broadcast %107 : vector<16x1xf32> to vector<16x16xf32>
    %479 = arith.mulf %477, %478 : vector<16x16xf32>
    %480 = arith.addf %476, %479 : vector<16x16xf32>
    %c0_217 = arith.constant 0 : index
    %c199_218 = arith.constant 199 : index
    %481 = vector.load %arg16[%c0_217, %c199_218] : memref<16x324xf32, #tpu.memory_space<vmem>>, vector<16x16xf32>
    %482 = vector.broadcast %108 : vector<16x1xf32> to vector<16x16xf32>
    %483 = arith.mulf %481, %482 : vector<16x16xf32>
    %484 = arith.addf %480, %483 : vector<16x16xf32>
    %c0_219 = arith.constant 0 : index
    %c200 = arith.constant 200 : index
    %485 = vector.load %arg16[%c0_219, %c200] : memref<16x324xf32, #tpu.memory_space<vmem>>, vector<16x16xf32>
    %486 = vector.broadcast %109 : vector<16x1xf32> to vector<16x16xf32>
    %487 = arith.mulf %485, %486 : vector<16x16xf32>
    %488 = arith.addf %484, %487 : vector<16x16xf32>
    %c0_220 = arith.constant 0 : index
    %c144_221 = arith.constant 144 : index
    %489 = vector.load %arg17[%c0_220, %c144_221] : memref<16x256xf32, #tpu.memory_space<vmem>>, vector<16x16xf32>
    tpu.vector_store %arg17[%c0_220, %c144_221], %488 {strides = array<i32>} : memref<16x256xf32, #tpu.memory_space<vmem>>, vector<16x16xf32>,
    %cst_222 = arith.constant 0.000000e+00 : f32
    %490 = vector.broadcast %cst_222 : f32 to vector<16x16xf32>
    %c0_223 = arith.constant 0 : index
    %c180_224 = arith.constant 180 : index
    %491 = vector.load %arg16[%c0_223, %c180_224] : memref<16x324xf32, #tpu.memory_space<vmem>>, vector<16x16xf32>
    %492 = vector.broadcast %101 : vector<16x1xf32> to vector<16x16xf32>
    %493 = arith.mulf %491, %492 : vector<16x16xf32>
    %494 = arith.addf %490, %493 : vector<16x16xf32>
    %c0_225 = arith.constant 0 : index
    %c181_226 = arith.constant 181 : index
    %495 = vector.load %arg16[%c0_225, %c181_226] : memref<16x324xf32, #tpu.memory_space<vmem>>, vector<16x16xf32>
    %496 = vector.broadcast %102 : vector<16x1xf32> to vector<16x16xf32>
    %497 = arith.mulf %495, %496 : vector<16x16xf32>
    %498 = arith.addf %494, %497 : vector<16x16xf32>
    %c0_227 = arith.constant 0 : index
    %c182_228 = arith.constant 182 : index
    %499 = vector.load %arg16[%c0_227, %c182_228] : memref<16x324xf32, #tpu.memory_space<vmem>>, vector<16x16xf32>
    %500 = vector.broadcast %103 : vector<16x1xf32> to vector<16x16xf32>
    %501 = arith.mulf %499, %500 : vector<16x16xf32>
    %502 = arith.addf %498, %501 : vector<16x16xf32>
    %c0_229 = arith.constant 0 : index
    %c198_230 = arith.constant 198 : index
    %503 = vector.load %arg16[%c0_229, %c198_230] : memref<16x324xf32, #tpu.memory_space<vmem>>, vector<16x16xf32>
    %504 = vector.broadcast %104 : vector<16x1xf32> to vector<16x16xf32>
    %505 = arith.mulf %503, %504 : vector<16x16xf32>
    %506 = arith.addf %502, %505 : vector<16x16xf32>
    %c0_231 = arith.constant 0 : index
    %c199_232 = arith.constant 199 : index
    %507 = vector.load %arg16[%c0_231, %c199_232] : memref<16x324xf32, #tpu.memory_space<vmem>>, vector<16x16xf32>
    %508 = vector.broadcast %105 : vector<16x1xf32> to vector<16x16xf32>
    %509 = arith.mulf %507, %508 : vector<16x16xf32>
    %510 = arith.addf %506, %509 : vector<16x16xf32>
    %c0_233 = arith.constant 0 : index
    %c200_234 = arith.constant 200 : index
    %511 = vector.load %arg16[%c0_233, %c200_234] : memref<16x324xf32, #tpu.memory_space<vmem>>, vector<16x16xf32>
    %512 = vector.broadcast %106 : vector<16x1xf32> to vector<16x16xf32>
    %513 = arith.mulf %511, %512 : vector<16x16xf32>
    %514 = arith.addf %510, %513 : vector<16x16xf32>
    %c0_235 = arith.constant 0 : index
    %c216 = arith.constant 216 : index
    %515 = vector.load %arg16[%c0_235, %c216] : memref<16x324xf32, #tpu.memory_space<vmem>>, vector<16x16xf32>
    %516 = vector.broadcast %107 : vector<16x1xf32> to vector<16x16xf32>
    %517 = arith.mulf %515, %516 : vector<16x16xf32>
    %518 = arith.addf %514, %517 : vector<16x16xf32>
    %c0_236 = arith.constant 0 : index
    %c217_237 = arith.constant 217 : index
    %519 = vector.load %arg16[%c0_236, %c217_237] : memref<16x324xf32, #tpu.memory_space<vmem>>, vector<16x16xf32>
    %520 = vector.broadcast %108 : vector<16x1xf32> to vector<16x16xf32>
    %521 = arith.mulf %519, %520 : vector<16x16xf32>
    %522 = arith.addf %518, %521 : vector<16x16xf32>
    %c0_238 = arith.constant 0 : index
    %c218 = arith.constant 218 : index
    %523 = vector.load %arg16[%c0_238, %c218] : memref<16x324xf32, #tpu.memory_space<vmem>>, vector<16x16xf32>
    %524 = vector.broadcast %109 : vector<16x1xf32> to vector<16x16xf32>
    %525 = arith.mulf %523, %524 : vector<16x16xf32>
    %526 = arith.addf %522, %525 : vector<16x16xf32>
    %c0_239 = arith.constant 0 : index
    %c160 = arith.constant 160 : index
    %527 = vector.load %arg17[%c0_239, %c160] : memref<16x256xf32, #tpu.memory_space<vmem>>, vector<16x16xf32>
    tpu.vector_store %arg17[%c0_239, %c160], %526 {strides = array<i32>} : memref<16x256xf32, #tpu.memory_space<vmem>>, vector<16x16xf32>,
    %cst_240 = arith.constant 0.000000e+00 : f32
    %528 = vector.broadcast %cst_240 : f32 to vector<16x16xf32>
    %c0_241 = arith.constant 0 : index
    %c198_242 = arith.constant 198 : index
    %529 = vector.load %arg16[%c0_241, %c198_242] : memref<16x324xf32, #tpu.memory_space<vmem>>, vector<16x16xf32>
    %530 = vector.broadcast %101 : vector<16x1xf32> to vector<16x16xf32>
    %531 = arith.mulf %529, %530 : vector<16x16xf32>
    %532 = arith.addf %528, %531 : vector<16x16xf32>
    %c0_243 = arith.constant 0 : index
    %c199_244 = arith.constant 199 : index
    %533 = vector.load %arg16[%c0_243, %c199_244] : memref<16x324xf32, #tpu.memory_space<vmem>>, vector<16x16xf32>
    %534 = vector.broadcast %102 : vector<16x1xf32> to vector<16x16xf32>
    %535 = arith.mulf %533, %534 : vector<16x16xf32>
    %536 = arith.addf %532, %535 : vector<16x16xf32>
    %c0_245 = arith.constant 0 : index
    %c200_246 = arith.constant 200 : index
    %537 = vector.load %arg16[%c0_245, %c200_246] : memref<16x324xf32, #tpu.memory_space<vmem>>, vector<16x16xf32>
    %538 = vector.broadcast %103 : vector<16x1xf32> to vector<16x16xf32>
    %539 = arith.mulf %537, %538 : vector<16x16xf32>
    %540 = arith.addf %536, %539 : vector<16x16xf32>
    %c0_247 = arith.constant 0 : index
    %c216_248 = arith.constant 216 : index
    %541 = vector.load %arg16[%c0_247, %c216_248] : memref<16x324xf32, #tpu.memory_space<vmem>>, vector<16x16xf32>
    %542 = vector.broadcast %104 : vector<16x1xf32> to vector<16x16xf32>
    %543 = arith.mulf %541, %542 : vector<16x16xf32>
    %544 = arith.addf %540, %543 : vector<16x16xf32>
    %c0_249 = arith.constant 0 : index
    %c217_250 = arith.constant 217 : index
    %545 = vector.load %arg16[%c0_249, %c217_250] : memref<16x324xf32, #tpu.memory_space<vmem>>, vector<16x16xf32>
    %546 = vector.broadcast %105 : vector<16x1xf32> to vector<16x16xf32>
    %547 = arith.mulf %545, %546 : vector<16x16xf32>
    %548 = arith.addf %544, %547 : vector<16x16xf32>
    %c0_251 = arith.constant 0 : index
    %c218_252 = arith.constant 218 : index
    %549 = vector.load %arg16[%c0_251, %c218_252] : memref<16x324xf32, #tpu.memory_space<vmem>>, vector<16x16xf32>
    %550 = vector.broadcast %106 : vector<16x1xf32> to vector<16x16xf32>
    %551 = arith.mulf %549, %550 : vector<16x16xf32>
    %552 = arith.addf %548, %551 : vector<16x16xf32>
    %c0_253 = arith.constant 0 : index
    %c234 = arith.constant 234 : index
    %553 = vector.load %arg16[%c0_253, %c234] : memref<16x324xf32, #tpu.memory_space<vmem>>, vector<16x16xf32>
    %554 = vector.broadcast %107 : vector<16x1xf32> to vector<16x16xf32>
    %555 = arith.mulf %553, %554 : vector<16x16xf32>
    %556 = arith.addf %552, %555 : vector<16x16xf32>
    %c0_254 = arith.constant 0 : index
    %c235_255 = arith.constant 235 : index
    %557 = vector.load %arg16[%c0_254, %c235_255] : memref<16x324xf32, #tpu.memory_space<vmem>>, vector<16x16xf32>
    %558 = vector.broadcast %108 : vector<16x1xf32> to vector<16x16xf32>
    %559 = arith.mulf %557, %558 : vector<16x16xf32>
    %560 = arith.addf %556, %559 : vector<16x16xf32>
    %c0_256 = arith.constant 0 : index
    %c236 = arith.constant 236 : index
    %561 = vector.load %arg16[%c0_256, %c236] : memref<16x324xf32, #tpu.memory_space<vmem>>, vector<16x16xf32>
    %562 = vector.broadcast %109 : vector<16x1xf32> to vector<16x16xf32>
    %563 = arith.mulf %561, %562 : vector<16x16xf32>
    %564 = arith.addf %560, %563 : vector<16x16xf32>
    %c0_257 = arith.constant 0 : index
    %c176 = arith.constant 176 : index
    %565 = vector.load %arg17[%c0_257, %c176] : memref<16x256xf32, #tpu.memory_space<vmem>>, vector<16x16xf32>
    tpu.vector_store %arg17[%c0_257, %c176], %564 {strides = array<i32>} : memref<16x256xf32, #tpu.memory_space<vmem>>, vector<16x16xf32>,
    %cst_258 = arith.constant 0.000000e+00 : f32
    %566 = vector.broadcast %cst_258 : f32 to vector<16x16xf32>
    %c0_259 = arith.constant 0 : index
    %c216_260 = arith.constant 216 : index
    %567 = vector.load %arg16[%c0_259, %c216_260] : memref<16x324xf32, #tpu.memory_space<vmem>>, vector<16x16xf32>
    %568 = vector.broadcast %101 : vector<16x1xf32> to vector<16x16xf32>
    %569 = arith.mulf %567, %568 : vector<16x16xf32>
    %570 = arith.addf %566, %569 : vector<16x16xf32>
    %c0_261 = arith.constant 0 : index
    %c217_262 = arith.constant 217 : index
    %571 = vector.load %arg16[%c0_261, %c217_262] : memref<16x324xf32, #tpu.memory_space<vmem>>, vector<16x16xf32>
    %572 = vector.broadcast %102 : vector<16x1xf32> to vector<16x16xf32>
    %573 = arith.mulf %571, %572 : vector<16x16xf32>
    %574 = arith.addf %570, %573 : vector<16x16xf32>
    %c0_263 = arith.constant 0 : index
    %c218_264 = arith.constant 218 : index
    %575 = vector.load %arg16[%c0_263, %c218_264] : memref<16x324xf32, #tpu.memory_space<vmem>>, vector<16x16xf32>
    %576 = vector.broadcast %103 : vector<16x1xf32> to vector<16x16xf32>
    %577 = arith.mulf %575, %576 : vector<16x16xf32>
    %578 = arith.addf %574, %577 : vector<16x16xf32>
    %c0_265 = arith.constant 0 : index
    %c234_266 = arith.constant 234 : index
    %579 = vector.load %arg16[%c0_265, %c234_266] : memref<16x324xf32, #tpu.memory_space<vmem>>, vector<16x16xf32>
    %580 = vector.broadcast %104 : vector<16x1xf32> to vector<16x16xf32>
    %581 = arith.mulf %579, %580 : vector<16x16xf32>
    %582 = arith.addf %578, %581 : vector<16x16xf32>
    %c0_267 = arith.constant 0 : index
    %c235_268 = arith.constant 235 : index
    %583 = vector.load %arg16[%c0_267, %c235_268] : memref<16x324xf32, #tpu.memory_space<vmem>>, vector<16x16xf32>
    %584 = vector.broadcast %105 : vector<16x1xf32> to vector<16x16xf32>
    %585 = arith.mulf %583, %584 : vector<16x16xf32>
    %586 = arith.addf %582, %585 : vector<16x16xf32>
    %c0_269 = arith.constant 0 : index
    %c236_270 = arith.constant 236 : index
    %587 = vector.load %arg16[%c0_269, %c236_270] : memref<16x324xf32, #tpu.memory_space<vmem>>, vector<16x16xf32>
    %588 = vector.broadcast %106 : vector<16x1xf32> to vector<16x16xf32>
    %589 = arith.mulf %587, %588 : vector<16x16xf32>
    %590 = arith.addf %586, %589 : vector<16x16xf32>
    %c0_271 = arith.constant 0 : index
    %c252 = arith.constant 252 : index
    %591 = vector.load %arg16[%c0_271, %c252] : memref<16x324xf32, #tpu.memory_space<vmem>>, vector<16x16xf32>
    %592 = vector.broadcast %107 : vector<16x1xf32> to vector<16x16xf32>
    %593 = arith.mulf %591, %592 : vector<16x16xf32>
    %594 = arith.addf %590, %593 : vector<16x16xf32>
    %c0_272 = arith.constant 0 : index
    %c253_273 = arith.constant 253 : index
    %595 = vector.load %arg16[%c0_272, %c253_273] : memref<16x324xf32, #tpu.memory_space<vmem>>, vector<16x16xf32>
    %596 = vector.broadcast %108 : vector<16x1xf32> to vector<16x16xf32>
    %597 = arith.mulf %595, %596 : vector<16x16xf32>
    %598 = arith.addf %594, %597 : vector<16x16xf32>
    %c0_274 = arith.constant 0 : index
    %c254 = arith.constant 254 : index
    %599 = vector.load %arg16[%c0_274, %c254] : memref<16x324xf32, #tpu.memory_space<vmem>>, vector<16x16xf32>
    %600 = vector.broadcast %109 : vector<16x1xf32> to vector<16x16xf32>
    %601 = arith.mulf %599, %600 : vector<16x16xf32>
    %602 = arith.addf %598, %601 : vector<16x16xf32>
    %c0_275 = arith.constant 0 : index
    %c192 = arith.constant 192 : index
    %603 = vector.load %arg17[%c0_275, %c192] : memref<16x256xf32, #tpu.memory_space<vmem>>, vector<16x16xf32>
    tpu.vector_store %arg17[%c0_275, %c192], %602 {strides = array<i32>} : memref<16x256xf32, #tpu.memory_space<vmem>>, vector<16x16xf32>,
    %cst_276 = arith.constant 0.000000e+00 : f32
    %604 = vector.broadcast %cst_276 : f32 to vector<16x16xf32>
    %c0_277 = arith.constant 0 : index
    %c234_278 = arith.constant 234 : index
    %605 = vector.load %arg16[%c0_277, %c234_278] : memref<16x324xf32, #tpu.memory_space<vmem>>, vector<16x16xf32>
    %606 = vector.broadcast %101 : vector<16x1xf32> to vector<16x16xf32>
    %607 = arith.mulf %605, %606 : vector<16x16xf32>
    %608 = arith.addf %604, %607 : vector<16x16xf32>
    %c0_279 = arith.constant 0 : index
    %c235_280 = arith.constant 235 : index
    %609 = vector.load %arg16[%c0_279, %c235_280] : memref<16x324xf32, #tpu.memory_space<vmem>>, vector<16x16xf32>
    %610 = vector.broadcast %102 : vector<16x1xf32> to vector<16x16xf32>
    %611 = arith.mulf %609, %610 : vector<16x16xf32>
    %612 = arith.addf %608, %611 : vector<16x16xf32>
    %c0_281 = arith.constant 0 : index
    %c236_282 = arith.constant 236 : index
    %613 = vector.load %arg16[%c0_281, %c236_282] : memref<16x324xf32, #tpu.memory_space<vmem>>, vector<16x16xf32>
    %614 = vector.broadcast %103 : vector<16x1xf32> to vector<16x16xf32>
    %615 = arith.mulf %613, %614 : vector<16x16xf32>
    %616 = arith.addf %612, %615 : vector<16x16xf32>
    %c0_283 = arith.constant 0 : index
    %c252_284 = arith.constant 252 : index
    %617 = vector.load %arg16[%c0_283, %c252_284] : memref<16x324xf32, #tpu.memory_space<vmem>>, vector<16x16xf32>
    %618 = vector.broadcast %104 : vector<16x1xf32> to vector<16x16xf32>
    %619 = arith.mulf %617, %618 : vector<16x16xf32>
    %620 = arith.addf %616, %619 : vector<16x16xf32>
    %c0_285 = arith.constant 0 : index
    %c253_286 = arith.constant 253 : index
    %621 = vector.load %arg16[%c0_285, %c253_286] : memref<16x324xf32, #tpu.memory_space<vmem>>, vector<16x16xf32>
    %622 = vector.broadcast %105 : vector<16x1xf32> to vector<16x16xf32>
    %623 = arith.mulf %621, %622 : vector<16x16xf32>
    %624 = arith.addf %620, %623 : vector<16x16xf32>
    %c0_287 = arith.constant 0 : index
    %c254_288 = arith.constant 254 : index
    %625 = vector.load %arg16[%c0_287, %c254_288] : memref<16x324xf32, #tpu.memory_space<vmem>>, vector<16x16xf32>
    %626 = vector.broadcast %106 : vector<16x1xf32> to vector<16x16xf32>
    %627 = arith.mulf %625, %626 : vector<16x16xf32>
    %628 = arith.addf %624, %627 : vector<16x16xf32>
    %c0_289 = arith.constant 0 : index
    %c270 = arith.constant 270 : index
    %629 = vector.load %arg16[%c0_289, %c270] : memref<16x324xf32, #tpu.memory_space<vmem>>, vector<16x16xf32>
    %630 = vector.broadcast %107 : vector<16x1xf32> to vector<16x16xf32>
    %631 = arith.mulf %629, %630 : vector<16x16xf32>
    %632 = arith.addf %628, %631 : vector<16x16xf32>
    %c0_290 = arith.constant 0 : index
    %c271_291 = arith.constant 271 : index
    %633 = vector.load %arg16[%c0_290, %c271_291] : memref<16x324xf32, #tpu.memory_space<vmem>>, vector<16x16xf32>
    %634 = vector.broadcast %108 : vector<16x1xf32> to vector<16x16xf32>
    %635 = arith.mulf %633, %634 : vector<16x16xf32>
    %636 = arith.addf %632, %635 : vector<16x16xf32>
    %c0_292 = arith.constant 0 : index
    %c272 = arith.constant 272 : index
    %637 = vector.load %arg16[%c0_292, %c272] : memref<16x324xf32, #tpu.memory_space<vmem>>, vector<16x16xf32>
    %638 = vector.broadcast %109 : vector<16x1xf32> to vector<16x16xf32>
    %639 = arith.mulf %637, %638 : vector<16x16xf32>
    %640 = arith.addf %636, %639 : vector<16x16xf32>
    %c0_293 = arith.constant 0 : index
    %c208 = arith.constant 208 : index
    %641 = vector.load %arg17[%c0_293, %c208] : memref<16x256xf32, #tpu.memory_space<vmem>>, vector<16x16xf32>
    tpu.vector_store %arg17[%c0_293, %c208], %640 {strides = array<i32>} : memref<16x256xf32, #tpu.memory_space<vmem>>, vector<16x16xf32>,
    %cst_294 = arith.constant 0.000000e+00 : f32
    %642 = vector.broadcast %cst_294 : f32 to vector<16x16xf32>
    %c0_295 = arith.constant 0 : index
    %c252_296 = arith.constant 252 : index
    %643 = vector.load %arg16[%c0_295, %c252_296] : memref<16x324xf32, #tpu.memory_space<vmem>>, vector<16x16xf32>
    %644 = vector.broadcast %101 : vector<16x1xf32> to vector<16x16xf32>
    %645 = arith.mulf %643, %644 : vector<16x16xf32>
    %646 = arith.addf %642, %645 : vector<16x16xf32>
    %c0_297 = arith.constant 0 : index
    %c253_298 = arith.constant 253 : index
    %647 = vector.load %arg16[%c0_297, %c253_298] : memref<16x324xf32, #tpu.memory_space<vmem>>, vector<16x16xf32>
    %648 = vector.broadcast %102 : vector<16x1xf32> to vector<16x16xf32>
    %649 = arith.mulf %647, %648 : vector<16x16xf32>
    %650 = arith.addf %646, %649 : vector<16x16xf32>
    %c0_299 = arith.constant 0 : index
    %c254_300 = arith.constant 254 : index
    %651 = vector.load %arg16[%c0_299, %c254_300] : memref<16x324xf32, #tpu.memory_space<vmem>>, vector<16x16xf32>
    %652 = vector.broadcast %103 : vector<16x1xf32> to vector<16x16xf32>
    %653 = arith.mulf %651, %652 : vector<16x16xf32>
    %654 = arith.addf %650, %653 : vector<16x16xf32>
    %c0_301 = arith.constant 0 : index
    %c270_302 = arith.constant 270 : index
    %655 = vector.load %arg16[%c0_301, %c270_302] : memref<16x324xf32, #tpu.memory_space<vmem>>, vector<16x16xf32>
    %656 = vector.broadcast %104 : vector<16x1xf32> to vector<16x16xf32>
    %657 = arith.mulf %655, %656 : vector<16x16xf32>
    %658 = arith.addf %654, %657 : vector<16x16xf32>
    %c0_303 = arith.constant 0 : index
    %c271_304 = arith.constant 271 : index
    %659 = vector.load %arg16[%c0_303, %c271_304] : memref<16x324xf32, #tpu.memory_space<vmem>>, vector<16x16xf32>
    %660 = vector.broadcast %105 : vector<16x1xf32> to vector<16x16xf32>
    %661 = arith.mulf %659, %660 : vector<16x16xf32>
    %662 = arith.addf %658, %661 : vector<16x16xf32>
    %c0_305 = arith.constant 0 : index
    %c272_306 = arith.constant 272 : index
    %663 = vector.load %arg16[%c0_305, %c272_306] : memref<16x324xf32, #tpu.memory_space<vmem>>, vector<16x16xf32>
    %664 = vector.broadcast %106 : vector<16x1xf32> to vector<16x16xf32>
    %665 = arith.mulf %663, %664 : vector<16x16xf32>
    %666 = arith.addf %662, %665 : vector<16x16xf32>
    %c0_307 = arith.constant 0 : index
    %c288 = arith.constant 288 : index
    %667 = vector.load %arg16[%c0_307, %c288] : memref<16x324xf32, #tpu.memory_space<vmem>>, vector<16x16xf32>
    %668 = vector.broadcast %107 : vector<16x1xf32> to vector<16x16xf32>
    %669 = arith.mulf %667, %668 : vector<16x16xf32>
    %670 = arith.addf %666, %669 : vector<16x16xf32>
    %c0_308 = arith.constant 0 : index
    %c289_309 = arith.constant 289 : index
    %671 = vector.load %arg16[%c0_308, %c289_309] : memref<16x324xf32, #tpu.memory_space<vmem>>, vector<16x16xf32>
    %672 = vector.broadcast %108 : vector<16x1xf32> to vector<16x16xf32>
    %673 = arith.mulf %671, %672 : vector<16x16xf32>
    %674 = arith.addf %670, %673 : vector<16x16xf32>
    %c0_310 = arith.constant 0 : index
    %c290 = arith.constant 290 : index
    %675 = vector.load %arg16[%c0_310, %c290] : memref<16x324xf32, #tpu.memory_space<vmem>>, vector<16x16xf32>
    %676 = vector.broadcast %109 : vector<16x1xf32> to vector<16x16xf32>
    %677 = arith.mulf %675, %676 : vector<16x16xf32>
    %678 = arith.addf %674, %677 : vector<16x16xf32>
    %c0_311 = arith.constant 0 : index
    %c224 = arith.constant 224 : index
    %679 = vector.load %arg17[%c0_311, %c224] : memref<16x256xf32, #tpu.memory_space<vmem>>, vector<16x16xf32>
    tpu.vector_store %arg17[%c0_311, %c224], %678 {strides = array<i32>} : memref<16x256xf32, #tpu.memory_space<vmem>>, vector<16x16xf32>,
    %cst_312 = arith.constant 0.000000e+00 : f32
    %680 = vector.broadcast %cst_312 : f32 to vector<16x16xf32>
    %c0_313 = arith.constant 0 : index
    %c270_314 = arith.constant 270 : index
    %681 = vector.load %arg16[%c0_313, %c270_314] : memref<16x324xf32, #tpu.memory_space<vmem>>, vector<16x16xf32>
    %682 = vector.broadcast %101 : vector<16x1xf32> to vector<16x16xf32>
    %683 = arith.mulf %681, %682 : vector<16x16xf32>
    %684 = arith.addf %680, %683 : vector<16x16xf32>
    %c0_315 = arith.constant 0 : index
    %c271_316 = arith.constant 271 : index
    %685 = vector.load %arg16[%c0_315, %c271_316] : memref<16x324xf32, #tpu.memory_space<vmem>>, vector<16x16xf32>
    %686 = vector.broadcast %102 : vector<16x1xf32> to vector<16x16xf32>
    %687 = arith.mulf %685, %686 : vector<16x16xf32>
    %688 = arith.addf %684, %687 : vector<16x16xf32>
    %c0_317 = arith.constant 0 : index
    %c272_318 = arith.constant 272 : index
    %689 = vector.load %arg16[%c0_317, %c272_318] : memref<16x324xf32, #tpu.memory_space<vmem>>, vector<16x16xf32>
    %690 = vector.broadcast %103 : vector<16x1xf32> to vector<16x16xf32>
    %691 = arith.mulf %689, %690 : vector<16x16xf32>
    %692 = arith.addf %688, %691 : vector<16x16xf32>
    %c0_319 = arith.constant 0 : index
    %c288_320 = arith.constant 288 : index
    %693 = vector.load %arg16[%c0_319, %c288_320] : memref<16x324xf32, #tpu.memory_space<vmem>>, vector<16x16xf32>
    %694 = vector.broadcast %104 : vector<16x1xf32> to vector<16x16xf32>
    %695 = arith.mulf %693, %694 : vector<16x16xf32>
    %696 = arith.addf %692, %695 : vector<16x16xf32>
    %c0_321 = arith.constant 0 : index
    %c289_322 = arith.constant 289 : index
    %697 = vector.load %arg16[%c0_321, %c289_322] : memref<16x324xf32, #tpu.memory_space<vmem>>, vector<16x16xf32>
    %698 = vector.broadcast %105 : vector<16x1xf32> to vector<16x16xf32>
    %699 = arith.mulf %697, %698 : vector<16x16xf32>
    %700 = arith.addf %696, %699 : vector<16x16xf32>
    %c0_323 = arith.constant 0 : index
    %c290_324 = arith.constant 290 : index
    %701 = vector.load %arg16[%c0_323, %c290_324] : memref<16x324xf32, #tpu.memory_space<vmem>>, vector<16x16xf32>
    %702 = vector.broadcast %106 : vector<16x1xf32> to vector<16x16xf32>
    %703 = arith.mulf %701, %702 : vector<16x16xf32>
    %704 = arith.addf %700, %703 : vector<16x16xf32>
    %c0_325 = arith.constant 0 : index
    %c306 = arith.constant 306 : index
    %705 = vector.load %arg16[%c0_325, %c306] : memref<16x324xf32, #tpu.memory_space<vmem>>, vector<16x16xf32>
    %706 = vector.broadcast %107 : vector<16x1xf32> to vector<16x16xf32>
    %707 = arith.mulf %705, %706 : vector<16x16xf32>
    %708 = arith.addf %704, %707 : vector<16x16xf32>
    %c0_326 = arith.constant 0 : index
    %c307 = arith.constant 307 : index
    %709 = vector.load %arg16[%c0_326, %c307] : memref<16x324xf32, #tpu.memory_space<vmem>>, vector<16x16xf32>
    %710 = vector.broadcast %108 : vector<16x1xf32> to vector<16x16xf32>
    %711 = arith.mulf %709, %710 : vector<16x16xf32>
    %712 = arith.addf %708, %711 : vector<16x16xf32>
    %c0_327 = arith.constant 0 : index
    %c308 = arith.constant 308 : index
    %713 = vector.load %arg16[%c0_327, %c308] : memref<16x324xf32, #tpu.memory_space<vmem>>, vector<16x16xf32>
    %714 = vector.broadcast %109 : vector<16x1xf32> to vector<16x16xf32>
    %715 = arith.mulf %713, %714 : vector<16x16xf32>
    %716 = arith.addf %712, %715 : vector<16x16xf32>
    %c0_328 = arith.constant 0 : index
    %c240 = arith.constant 240 : index
    %717 = vector.load %arg17[%c0_328, %c240] : memref<16x256xf32, #tpu.memory_space<vmem>>, vector<16x16xf32>
    tpu.vector_store %arg17[%c0_328, %c240], %716 {strides = array<i32>} : memref<16x256xf32, #tpu.memory_space<vmem>>, vector<16x16xf32>,
    %c0_329 = arith.constant 0 : index
    %c0_330 = arith.constant 0 : index
    %718 = vector.load %arg17[%c0_329, %c0_330] : memref<16x256xf32, #tpu.memory_space<vmem>>, vector<16x256xf32>
    %c0_331 = arith.constant 0 : index
    %c0_332 = arith.constant 0 : index
    %719 = vector.load %arg6[%c0_331, %c0_332] : memref<16x1xf32, #tpu.memory_space<vmem>>, vector<16x1xf32>
    %720 = vector.broadcast %719 : vector<16x1xf32> to vector<16x256xf32>
    %721 = arith.mulf %718, %720 : vector<16x256xf32>
    %c0_333 = arith.constant 0 : index
    %c0_334 = arith.constant 0 : index
    %722 = vector.load %arg7[%c0_333, %c0_334] : memref<16x1xf32, #tpu.memory_space<vmem>>, vector<16x1xf32>
    %723 = vector.broadcast %722 : vector<16x1xf32> to vector<16x256xf32>
    %724 = arith.addf %721, %723 : vector<16x256xf32>
    %cst_335 = arith.constant 3.000000e+00 : f32
    %725 = vector.broadcast %cst_335 : f32 to vector<16x256xf32>
    %726 = arith.addf %724, %725 : vector<16x256xf32>
    %cst_336 = arith.constant 0.000000e+00 : f32
    %cst_337 = arith.constant 6.000000e+00 : f32
    %727 = vector.broadcast %cst_336 : f32 to vector<16x256xf32>
    %728 = arith.maximumf %727, %726 : vector<16x256xf32>
    %729 = vector.broadcast %cst_337 : f32 to vector<16x256xf32>
    %730 = arith.minimumf %729, %728 : vector<16x256xf32>
    %731 = arith.mulf %724, %730 : vector<16x256xf32>
    %cst_338 = arith.constant 0.166666672 : f32
    %732 = vector.broadcast %cst_338 : f32 to vector<16x256xf32>
    %733 = arith.mulf %731, %732 : vector<16x256xf32>
    %cst_339 = arith.constant dense<0.000000e+00> : vector<16xf32>
    %734 = vector.multi_reduction <add>, %733, %cst_339 [1] : vector<16x256xf32> to vector<16xf32>
    %735 = vector.shape_cast %734 : vector<16xf32> to vector<16x1xf32>
    %cst_340 = arith.constant 2.560000e+02 : f32
    %736 = vector.broadcast %cst_340 : f32 to vector<16x1xf32>
    %737 = arith.divf %735, %736 : vector<16x1xf32>
    %c0_341 = arith.constant 0 : index
    %c0_342 = arith.constant 0 : index
    %738 = vector.load %arg8[%c0_341, %c0_342] : memref<16x4xf32, #tpu.memory_space<vmem>>, vector<16x4xf32>
    %739 = vector.broadcast %737 : vector<16x1xf32> to vector<16x4xf32>
    %740 = arith.mulf %738, %739 : vector<16x4xf32>
    %cst_343 = arith.constant dense<0.000000e+00> : vector<4xf32>
    %741 = vector.multi_reduction <add>, %740, %cst_343 [0] : vector<16x4xf32> to vector<4xf32>
    %742 = vector.shape_cast %741 : vector<4xf32> to vector<1x4xf32>
    %c0_344 = arith.constant 0 : index
    %c0_345 = arith.constant 0 : index
    %743 = vector.load %arg9[%c0_344, %c0_345] : memref<1x4xf32, #tpu.memory_space<vmem>>, vector<1x4xf32>
    %744 = arith.addf %742, %743 : vector<1x4xf32>
    %cst_346 = arith.constant 0.000000e+00 : f32
    %745 = vector.broadcast %cst_346 : f32 to vector<1x4xf32>
    %746 = arith.maximumf %744, %745 : vector<1x4xf32>
    %c0_347 = arith.constant 0 : index
    %c0_348 = arith.constant 0 : index
    %747 = vector.load %arg10[%c0_347, %c0_348] : memref<16x4xf32, #tpu.memory_space<vmem>>, vector<16x4xf32>
    %748 = vector.broadcast %746 : vector<1x4xf32> to vector<16x4xf32>
    %749 = arith.mulf %747, %748 : vector<16x4xf32>
    %cst_349 = arith.constant dense<0.000000e+00> : vector<16xf32>
    %750 = vector.multi_reduction <add>, %749, %cst_349 [1] : vector<16x4xf32> to vector<16xf32>
    %751 = vector.shape_cast %750 : vector<16xf32> to vector<16x1xf32>
    %c0_350 = arith.constant 0 : index
    %c0_351 = arith.constant 0 : index
    %752 = vector.load %arg11[%c0_350, %c0_351] : memref<16x1xf32, #tpu.memory_space<vmem>>, vector<16x1xf32>
    %753 = arith.addf %751, %752 : vector<16x1xf32>
    %cst_352 = arith.constant 3.000000e+00 : f32
    %754 = vector.broadcast %cst_352 : f32 to vector<16x1xf32>
    %755 = arith.addf %753, %754 : vector<16x1xf32>
    %cst_353 = arith.constant 0.000000e+00 : f32
    %cst_354 = arith.constant 6.000000e+00 : f32
    %756 = vector.broadcast %cst_353 : f32 to vector<16x1xf32>
    %757 = arith.maximumf %756, %755 : vector<16x1xf32>
    %758 = vector.broadcast %cst_354 : f32 to vector<16x1xf32>
    %759 = arith.minimumf %758, %757 : vector<16x1xf32>
    %cst_355 = arith.constant 0.166666672 : f32
    %760 = vector.broadcast %cst_355 : f32 to vector<16x1xf32>
    %761 = arith.mulf %759, %760 : vector<16x1xf32>
    %762 = vector.broadcast %761 : vector<16x1xf32> to vector<16x256xf32>
    %763 = arith.mulf %733, %762 : vector<16x256xf32>
    %c0_356 = arith.constant 0 : index
    %c0_357 = arith.constant 0 : index
    %764 = vector.load %arg12[%c0_356, %c0_357] : memref<8x16xf32, #tpu.memory_space<vmem>>, vector<8x16xf32>
    %cst_358 = arith.constant 0.000000e+00 : f32
    %765 = vector.broadcast %cst_358 : f32 to vector<8x256xf32>
    %766 = vector.extract_strided_slice %764 {offsets = [0, 0], sizes = [8, 1], strides = [1, 1]} : vector<8x16xf32> to vector<8x1xf32>
    %767 = vector.extract_strided_slice %763 {offsets = [0, 0], sizes = [1, 256], strides = [1, 1]} : vector<16x256xf32> to vector<1x256xf32>
    %768 = vector.broadcast %766 : vector<8x1xf32> to vector<8x256xf32>
    %769 = vector.broadcast %767 : vector<1x256xf32> to vector<8x256xf32>
    %770 = arith.mulf %768, %769 : vector<8x256xf32>
    %771 = arith.addf %765, %770 : vector<8x256xf32>
    %772 = vector.extract_strided_slice %764 {offsets = [0, 1], sizes = [8, 1], strides = [1, 1]} : vector<8x16xf32> to vector<8x1xf32>
    %773 = vector.extract_strided_slice %763 {offsets = [1, 0], sizes = [1, 256], strides = [1, 1]} : vector<16x256xf32> to vector<1x256xf32>
    %774 = vector.broadcast %772 : vector<8x1xf32> to vector<8x256xf32>
    %775 = vector.broadcast %773 : vector<1x256xf32> to vector<8x256xf32>
    %776 = arith.mulf %774, %775 : vector<8x256xf32>
    %777 = arith.addf %771, %776 : vector<8x256xf32>
    %778 = vector.extract_strided_slice %764 {offsets = [0, 2], sizes = [8, 1], strides = [1, 1]} : vector<8x16xf32> to vector<8x1xf32>
    %779 = vector.extract_strided_slice %763 {offsets = [2, 0], sizes = [1, 256], strides = [1, 1]} : vector<16x256xf32> to vector<1x256xf32>
    %780 = vector.broadcast %778 : vector<8x1xf32> to vector<8x256xf32>
    %781 = vector.broadcast %779 : vector<1x256xf32> to vector<8x256xf32>
    %782 = arith.mulf %780, %781 : vector<8x256xf32>
    %783 = arith.addf %777, %782 : vector<8x256xf32>
    %784 = vector.extract_strided_slice %764 {offsets = [0, 3], sizes = [8, 1], strides = [1, 1]} : vector<8x16xf32> to vector<8x1xf32>
    %785 = vector.extract_strided_slice %763 {offsets = [3, 0], sizes = [1, 256], strides = [1, 1]} : vector<16x256xf32> to vector<1x256xf32>
    %786 = vector.broadcast %784 : vector<8x1xf32> to vector<8x256xf32>
    %787 = vector.broadcast %785 : vector<1x256xf32> to vector<8x256xf32>
    %788 = arith.mulf %786, %787 : vector<8x256xf32>
    %789 = arith.addf %783, %788 : vector<8x256xf32>
    %790 = vector.extract_strided_slice %764 {offsets = [0, 4], sizes = [8, 1], strides = [1, 1]} : vector<8x16xf32> to vector<8x1xf32>
    %791 = vector.extract_strided_slice %763 {offsets = [4, 0], sizes = [1, 256], strides = [1, 1]} : vector<16x256xf32> to vector<1x256xf32>
    %792 = vector.broadcast %790 : vector<8x1xf32> to vector<8x256xf32>
    %793 = vector.broadcast %791 : vector<1x256xf32> to vector<8x256xf32>
    %794 = arith.mulf %792, %793 : vector<8x256xf32>
    %795 = arith.addf %789, %794 : vector<8x256xf32>
    %796 = vector.extract_strided_slice %764 {offsets = [0, 5], sizes = [8, 1], strides = [1, 1]} : vector<8x16xf32> to vector<8x1xf32>
    %797 = vector.extract_strided_slice %763 {offsets = [5, 0], sizes = [1, 256], strides = [1, 1]} : vector<16x256xf32> to vector<1x256xf32>
    %798 = vector.broadcast %796 : vector<8x1xf32> to vector<8x256xf32>
    %799 = vector.broadcast %797 : vector<1x256xf32> to vector<8x256xf32>
    %800 = arith.mulf %798, %799 : vector<8x256xf32>
    %801 = arith.addf %795, %800 : vector<8x256xf32>
    %802 = vector.extract_strided_slice %764 {offsets = [0, 6], sizes = [8, 1], strides = [1, 1]} : vector<8x16xf32> to vector<8x1xf32>
    %803 = vector.extract_strided_slice %763 {offsets = [6, 0], sizes = [1, 256], strides = [1, 1]} : vector<16x256xf32> to vector<1x256xf32>
    %804 = vector.broadcast %802 : vector<8x1xf32> to vector<8x256xf32>
    %805 = vector.broadcast %803 : vector<1x256xf32> to vector<8x256xf32>
    %806 = arith.mulf %804, %805 : vector<8x256xf32>
    %807 = arith.addf %801, %806 : vector<8x256xf32>
    %808 = vector.extract_strided_slice %764 {offsets = [0, 7], sizes = [8, 1], strides = [1, 1]} : vector<8x16xf32> to vector<8x1xf32>
    %809 = vector.extract_strided_slice %763 {offsets = [7, 0], sizes = [1, 256], strides = [1, 1]} : vector<16x256xf32> to vector<1x256xf32>
    %810 = vector.broadcast %808 : vector<8x1xf32> to vector<8x256xf32>
    %811 = vector.broadcast %809 : vector<1x256xf32> to vector<8x256xf32>
    %812 = arith.mulf %810, %811 : vector<8x256xf32>
    %813 = arith.addf %807, %812 : vector<8x256xf32>
    %814 = vector.extract_strided_slice %764 {offsets = [0, 8], sizes = [8, 1], strides = [1, 1]} : vector<8x16xf32> to vector<8x1xf32>
    %815 = vector.extract_strided_slice %763 {offsets = [8, 0], sizes = [1, 256], strides = [1, 1]} : vector<16x256xf32> to vector<1x256xf32>
    %816 = vector.broadcast %814 : vector<8x1xf32> to vector<8x256xf32>
    %817 = vector.broadcast %815 : vector<1x256xf32> to vector<8x256xf32>
    %818 = arith.mulf %816, %817 : vector<8x256xf32>
    %819 = arith.addf %813, %818 : vector<8x256xf32>
    %820 = vector.extract_strided_slice %764 {offsets = [0, 9], sizes = [8, 1], strides = [1, 1]} : vector<8x16xf32> to vector<8x1xf32>
    %821 = vector.extract_strided_slice %763 {offsets = [9, 0], sizes = [1, 256], strides = [1, 1]} : vector<16x256xf32> to vector<1x256xf32>
    %822 = vector.broadcast %820 : vector<8x1xf32> to vector<8x256xf32>
    %823 = vector.broadcast %821 : vector<1x256xf32> to vector<8x256xf32>
    %824 = arith.mulf %822, %823 : vector<8x256xf32>
    %825 = arith.addf %819, %824 : vector<8x256xf32>
    %826 = vector.extract_strided_slice %764 {offsets = [0, 10], sizes = [8, 1], strides = [1, 1]} : vector<8x16xf32> to vector<8x1xf32>
    %827 = vector.extract_strided_slice %763 {offsets = [10, 0], sizes = [1, 256], strides = [1, 1]} : vector<16x256xf32> to vector<1x256xf32>
    %828 = vector.broadcast %826 : vector<8x1xf32> to vector<8x256xf32>
    %829 = vector.broadcast %827 : vector<1x256xf32> to vector<8x256xf32>
    %830 = arith.mulf %828, %829 : vector<8x256xf32>
    %831 = arith.addf %825, %830 : vector<8x256xf32>
    %832 = vector.extract_strided_slice %764 {offsets = [0, 11], sizes = [8, 1], strides = [1, 1]} : vector<8x16xf32> to vector<8x1xf32>
    %833 = vector.extract_strided_slice %763 {offsets = [11, 0], sizes = [1, 256], strides = [1, 1]} : vector<16x256xf32> to vector<1x256xf32>
    %834 = vector.broadcast %832 : vector<8x1xf32> to vector<8x256xf32>
    %835 = vector.broadcast %833 : vector<1x256xf32> to vector<8x256xf32>
    %836 = arith.mulf %834, %835 : vector<8x256xf32>
    %837 = arith.addf %831, %836 : vector<8x256xf32>
    %838 = vector.extract_strided_slice %764 {offsets = [0, 12], sizes = [8, 1], strides = [1, 1]} : vector<8x16xf32> to vector<8x1xf32>
    %839 = vector.extract_strided_slice %763 {offsets = [12, 0], sizes = [1, 256], strides = [1, 1]} : vector<16x256xf32> to vector<1x256xf32>
    %840 = vector.broadcast %838 : vector<8x1xf32> to vector<8x256xf32>
    %841 = vector.broadcast %839 : vector<1x256xf32> to vector<8x256xf32>
    %842 = arith.mulf %840, %841 : vector<8x256xf32>
    %843 = arith.addf %837, %842 : vector<8x256xf32>
    %844 = vector.extract_strided_slice %764 {offsets = [0, 13], sizes = [8, 1], strides = [1, 1]} : vector<8x16xf32> to vector<8x1xf32>
    %845 = vector.extract_strided_slice %763 {offsets = [13, 0], sizes = [1, 256], strides = [1, 1]} : vector<16x256xf32> to vector<1x256xf32>
    %846 = vector.broadcast %844 : vector<8x1xf32> to vector<8x256xf32>
    %847 = vector.broadcast %845 : vector<1x256xf32> to vector<8x256xf32>
    %848 = arith.mulf %846, %847 : vector<8x256xf32>
    %849 = arith.addf %843, %848 : vector<8x256xf32>
    %850 = vector.extract_strided_slice %764 {offsets = [0, 14], sizes = [8, 1], strides = [1, 1]} : vector<8x16xf32> to vector<8x1xf32>
    %851 = vector.extract_strided_slice %763 {offsets = [14, 0], sizes = [1, 256], strides = [1, 1]} : vector<16x256xf32> to vector<1x256xf32>
    %852 = vector.broadcast %850 : vector<8x1xf32> to vector<8x256xf32>
    %853 = vector.broadcast %851 : vector<1x256xf32> to vector<8x256xf32>
    %854 = arith.mulf %852, %853 : vector<8x256xf32>
    %855 = arith.addf %849, %854 : vector<8x256xf32>
    %856 = vector.extract_strided_slice %764 {offsets = [0, 15], sizes = [8, 1], strides = [1, 1]} : vector<8x16xf32> to vector<8x1xf32>
    %857 = vector.extract_strided_slice %763 {offsets = [15, 0], sizes = [1, 256], strides = [1, 1]} : vector<16x256xf32> to vector<1x256xf32>
    %858 = vector.broadcast %856 : vector<8x1xf32> to vector<8x256xf32>
    %859 = vector.broadcast %857 : vector<1x256xf32> to vector<8x256xf32>
    %860 = arith.mulf %858, %859 : vector<8x256xf32>
    %861 = arith.addf %855, %860 : vector<8x256xf32>
    %c0_359 = arith.constant 0 : index
    %c0_360 = arith.constant 0 : index
    %862 = vector.load %arg13[%c0_359, %c0_360] : memref<8x1xf32, #tpu.memory_space<vmem>>, vector<8x1xf32>
    %863 = vector.broadcast %862 : vector<8x1xf32> to vector<8x256xf32>
    %864 = arith.mulf %861, %863 : vector<8x256xf32>
    %c0_361 = arith.constant 0 : index
    %c0_362 = arith.constant 0 : index
    %865 = vector.load %arg14[%c0_361, %c0_362] : memref<8x1xf32, #tpu.memory_space<vmem>>, vector<8x1xf32>
    %866 = vector.broadcast %865 : vector<8x1xf32> to vector<8x256xf32>
    %867 = arith.addf %864, %866 : vector<8x256xf32>
    %868 = arith.addf %867, %1 : vector<8x256xf32>
    %c0_363 = arith.constant 0 : index
    %c0_364 = arith.constant 0 : index
    %c0_365 = arith.constant 0 : index
    %869 = vector.load %arg15[%c0_363, %c0_364, %c0_365] : memref<1x8x256xf32, #tpu.memory_space<vmem>>, vector<1x8x256xf32>
    %870 = vector.shape_cast %869 : vector<1x8x256xf32> to vector<8x256xf32>
    %871 = vector.shape_cast %868 : vector<8x256xf32> to vector<1x8x256xf32>
    tpu.vector_store %arg15[%c0_363, %c0_364, %c0_365], %871 {strides = array<i32>} : memref<1x8x256xf32, #tpu.memory_space<vmem>>, vector<1x8x256xf32>,
    return
  }
  func.func @transform_0(%arg0: i32) -> (i32, i32, i32) {
    %c0_i32 = arith.constant 0 : i32
    %c0_i32_0 = arith.constant 0 : i32
    %c0_i32_1 = arith.constant 0 : i32
    return %arg0, %c0_i32, %c0_i32_0 : i32, i32, i32
  }
  func.func @transform_1(%arg0: i32) -> (i32, i32) {
    %c0_i32 = arith.constant 0 : i32
    %c0_i32_0 = arith.constant 0 : i32
    %c0_i32_1 = arith.constant 0 : i32
    return %c0_i32, %c0_i32_0 : i32, i32
  }
  func.func @transform_2(%arg0: i32) -> (i32, i32) {
    %c0_i32 = arith.constant 0 : i32
    %c0_i32_0 = arith.constant 0 : i32
    %c0_i32_1 = arith.constant 0 : i32
    return %c0_i32, %c0_i32_0 : i32, i32
  }
  func.func @transform_3(%arg0: i32) -> (i32, i32) {
    %c0_i32 = arith.constant 0 : i32
    %c0_i32_0 = arith.constant 0 : i32
    %c0_i32_1 = arith.constant 0 : i32
    return %c0_i32, %c0_i32_0 : i32, i32
  }
  func.func @transform_4(%arg0: i32) -> (i32, i32) {
    %c0_i32 = arith.constant 0 : i32
    %c0_i32_0 = arith.constant 0 : i32
    %c0_i32_1 = arith.constant 0 : i32
    return %c0_i32, %c0_i32_0 : i32, i32
  }
  func.func @transform_5(%arg0: i32) -> (i32, i32) {
    %c0_i32 = arith.constant 0 : i32
    %c0_i32_0 = arith.constant 0 : i32
    %c0_i32_1 = arith.constant 0 : i32
    return %c0_i32, %c0_i32_0 : i32, i32
  }
  func.func @transform_6(%arg0: i32) -> (i32, i32) {
    %c0_i32 = arith.constant 0 : i32
    %c0_i32_0 = arith.constant 0 : i32
    %c0_i32_1 = arith.constant 0 : i32
    return %c0_i32, %c0_i32_0 : i32, i32
  }
  func.func @transform_7(%arg0: i32) -> (i32, i32) {
    %c0_i32 = arith.constant 0 : i32
    %c0_i32_0 = arith.constant 0 : i32
    %c0_i32_1 = arith.constant 0 : i32
    return %c0_i32, %c0_i32_0 : i32, i32
  }
  func.func @transform_8(%arg0: i32) -> (i32, i32) {
    %c0_i32 = arith.constant 0 : i32
    %c0_i32_0 = arith.constant 0 : i32
    %c0_i32_1 = arith.constant 0 : i32
    return %c0_i32, %c0_i32_0 : i32, i32
  }
  func.func @transform_9(%arg0: i32) -> (i32, i32) {
    %c0_i32 = arith.constant 0 : i32
    %c0_i32_0 = arith.constant 0 : i32
    %c0_i32_1 = arith.constant 0 : i32
    return %c0_i32, %c0_i32_0 : i32, i32
  }
  func.func @transform_10(%arg0: i32) -> (i32, i32) {
    %c0_i32 = arith.constant 0 : i32
    %c0_i32_0 = arith.constant 0 : i32
    %c0_i32_1 = arith.constant 0 : i32
    return %c0_i32, %c0_i32_0 : i32, i32
  }
  func.func @transform_11(%arg0: i32) -> (i32, i32) {
    %c0_i32 = arith.constant 0 : i32
    %c0_i32_0 = arith.constant 0 : i32
    %c0_i32_1 = arith.constant 0 : i32
    return %c0_i32, %c0_i32_0 : i32, i32
  }
  func.func @transform_12(%arg0: i32) -> (i32, i32) {
    %c0_i32 = arith.constant 0 : i32
    %c0_i32_0 = arith.constant 0 : i32
    %c0_i32_1 = arith.constant 0 : i32
    return %c0_i32, %c0_i32_0 : i32, i32
  }
  func.func @transform_13(%arg0: i32) -> (i32, i32) {
    %c0_i32 = arith.constant 0 : i32
    %c0_i32_0 = arith.constant 0 : i32
    %c0_i32_1 = arith.constant 0 : i32
    return %c0_i32, %c0_i32_0 : i32, i32
  }
  func.func @transform_14(%arg0: i32) -> (i32, i32, i32) {
    %c0_i32 = arith.constant 0 : i32
    %c0_i32_0 = arith.constant 0 : i32
    %c0_i32_1 = arith.constant 0 : i32
    return %arg0, %c0_i32, %c0_i32_0 : i32, i32, i32
  }
}

</mosaic_0001>

<llo_original>
// kernel: tpu_custom_call.1
$region0: #{tpu_custom_call.1}
  #allocation0 [shape = 'u32[]', space=smem, size = 0x4, offset = 0x4, fixed_abs, tag = 'smem constant byte address 0x4 - core index']
  #allocation1 [shape = 'u32[144,128]{1,0:T(1,128)}', space=vmem, size = 0x12000, scoped, tag = 'internal scratch']
  #allocation2 [shape = 'f32[16,324]{1,0:T(8,128)}', space=vmem, size = 0x6000, scoped, tag = 'scratch operand']
  #allocation3 [shape = 'f32[16,256]{1,0:T(8,128)}', space=vmem, size = 0x4000, scoped, tag = 'scratch operand']
  %s0 = inlined_call_operand.vmem [shape: f32[2,8,256], index: 0, kind: input, shape index: {}]
  %s1 = inlined_call_operand.vmem [shape: f32[16,8], index: 1, kind: input, shape index: {}]
  %s2 = inlined_call_operand.vmem [shape: f32[16,1], index: 2, kind: input, shape index: {}]
  %s3 = inlined_call_operand.vmem [shape: f32[16,1], index: 3, kind: input, shape index: {}]
  %s4 = inlined_call_operand.vmem [shape: f32[16,9], index: 4, kind: input, shape index: {}]
  %s5 = inlined_call_operand.vmem [shape: f32[16,1], index: 5, kind: input, shape index: {}]
  %s6 = inlined_call_operand.vmem [shape: f32[16,1], index: 6, kind: input, shape index: {}]
  %s7 = inlined_call_operand.vmem [shape: f32[16,4], index: 7, kind: input, shape index: {}]
  %s8 = inlined_call_operand.vmem [shape: f32[1,4], index: 8, kind: input, shape index: {}]
  %s9 = inlined_call_operand.vmem [shape: f32[16,4], index: 9, kind: input, shape index: {}]
  %s10 = inlined_call_operand.vmem [shape: f32[16,1], index: 10, kind: input, shape index: {}]
  %s11 = inlined_call_operand.vmem [shape: f32[8,16], index: 11, kind: input, shape index: {}]
  %s12 = inlined_call_operand.vmem [shape: f32[8,1], index: 12, kind: input, shape index: {}]
  %s13 = inlined_call_operand.vmem [shape: f32[8,1], index: 13, kind: input, shape index: {}]
  %s14 = inlined_call_operand.hbm [shape: f32[2,8,256], index: 14, kind: output, shape index: {}]
  %s15 = sld [smem:[#allocation0]]
  $region89: #{tpu_custom_call.1} parent=0
    _
  %s17 = ssub.s32 1, %s15
  %s18 = scalar_select 0, %s17, %s15
  $region1: #{tpu_custom_call.1} parent=0
    #allocation4 [shape = 'u8[16384]{0}', space=vmem, size = 0x4000, scoped, tag = 'output window, operand 0']
    #allocation5 [shape = 's32[2]{0}', space=sflag, size = 0x8, scoped, tag = 'scoped memory for tpu_custom_call.1']
    %19 = vsyncpa [#allocation5], 0
    %s20 = scalar_lea.sflag [#allocation5], 1
    %21 = vsyncpa %s20, 0
    loop: start=0, step=1, limit=4
    $region2: #{tpu_custom_call.1} parent=1 // loop_pre_header
      _
    $region3: #{tpu_custom_call.1} parent=1 // loop_header
      %s23 = sphi 0, %s27
      %p24 = scmp.ge.s32.totalorder %s23, 4
      %s33 = sphi 0, %s35
      %s36 = sphi 0, %s33
      %s37 = sphi 0, %s36
      %s53 = sphi 0, %s37
      %s57 = sphi 0, %s57
      %s59 = sphi 0, %s57
      %s60 = sphi 0, %s59
      %s74 = sphi 0, %s60
      %s78 = sphi 0, %s78
      %s80 = sphi 0, %s78
      %s81 = sphi 0, %s80
      %s95 = sphi 0, %s81
      %s99 = sphi 0, %s99
      %s101 = sphi 0, %s99
      %s102 = sphi 0, %s101
      %s116 = sphi 0, %s102
      %s120 = sphi 0, %s120
      %s122 = sphi 0, %s120
      %s123 = sphi 0, %s122
      %s137 = sphi 0, %s123
      %s141 = sphi 0, %s141
      %s143 = sphi 0, %s141
      %s144 = sphi 0, %s143
      %s158 = sphi 0, %s144
      %s162 = sphi 0, %s162
      %s164 = sphi 0, %s162
      %s165 = sphi 0, %s164
      %s179 = sphi 0, %s165
      %s183 = sphi 0, %s183
      %s185 = sphi 0, %s183
      %s186 = sphi 0, %s185
      %s200 = sphi 0, %s186
      %s204 = sphi 0, %s204
      %s206 = sphi 0, %s204
      %s207 = sphi 0, %s206
      %s221 = sphi 0, %s207
      %s225 = sphi 0, %s225
      %s227 = sphi 0, %s225
      %s228 = sphi 0, %s227
      %s242 = sphi 0, %s228
      %s246 = sphi 0, %s246
      %s248 = sphi 0, %s246
      %s249 = sphi 0, %s248
      %s263 = sphi 0, %s249
      %s267 = sphi 0, %s267
      %s269 = sphi 0, %s267
      %s270 = sphi 0, %s269
      %s284 = sphi 0, %s270
      %s288 = sphi 0, %s288
      %s290 = sphi 0, %s288
      %s291 = sphi 0, %s290
      %s305 = sphi 0, %s291
      %s309 = sphi 0, %s309
      %s311 = sphi 0, %s309
      %s312 = sphi 0, %s311
      %s326 = sphi 0, %s312
      %s332 = sphi 0, %s334
      %s335 = sphi 0, %s332
      %s336 = sphi 0, %s335
      %s352 = sphi 0, %s336
    $region4: #{tpu_custom_call.1} parent=1 // loop_header_branch
      %26 = sbr.rel (%p24) target = $region8
    $region5: #{tpu_custom_call.1} parent=1 // loop_body
      %s28 = ssub.s32 %s23, 1
      %s29 = ssub.s32 %s23, 2
      %s30 = sadd.s32 %s23, 1
      %s31 = ssub.s32 %s23, %s30
      %p32 = scmp.eq.s32.totalorder %s31, 0
      %s34 = sadd.s32 %s33, 1
      %s35 = scalar_select %p32, %s33, %s34
      %p38 = pneg %p32
      %p39 = scmp.eq.s32.totalorder %s23, 1
      %p40 = por %p38, %p39
      %p41 = scmp.ne.s32.totalorder %s33, %s36
      %p42 = scmp.eq.s32.totalorder %s23, 0
      %p43 = por %p41, %p42
      %p44 = scmp.ne.s32.totalorder %s33, %s36
      %p45 = scmp.eq.s32.totalorder %s28, 1
      %p46 = por %p44, %p45
      %p47 = scmp.ne.s32.totalorder %s36, %s37
      %p48 = scmp.eq.s32.totalorder %s28, 0
      %p49 = por %p47, %p48
      %p50 = scmp.ne.s32.totalorder %s36, %s37
      %p51 = scmp.eq.s32.totalorder %s29, 1
      %p52 = por %p50, %p51
      %p54 = scmp.ne.s32.totalorder %s37, %s53
      %p55 = scmp.eq.s32.totalorder %s29, 0
      %p56 = por %p54, %p55
      %s58 = sadd.s32 %s57, 1
      %p61 = scmp.eq.s32.totalorder %s23, 1
      %p62 = scmp.ne.s32.totalorder %s57, %s59
      %p63 = scmp.eq.s32.totalorder %s23, 0
      %p64 = por %p62, %p63
      %p65 = scmp.ne.s32.totalorder %s57, %s59
      %p66 = scmp.eq.s32.totalorder %s28, 1
      %p67 = por %p65, %p66
      %p68 = scmp.ne.s32.totalorder %s59, %s60
      %p69 = scmp.eq.s32.totalorder %s28, 0
      %p70 = por %p68, %p69
      %p71 = scmp.ne.s32.totalorder %s59, %s60
      %p72 = scmp.eq.s32.totalorder %s29, 1
      %p73 = por %p71, %p72
      %p75 = scmp.ne.s32.totalorder %s60, %s74
      %p76 = scmp.eq.s32.totalorder %s29, 0
      %p77 = por %p75, %p76
      %s79 = sadd.s32 %s78, 1
      %p82 = scmp.eq.s32.totalorder %s23, 1
      %p83 = scmp.ne.s32.totalorder %s78, %s80
      %p84 = scmp.eq.s32.totalorder %s23, 0
      %p85 = por %p83, %p84
      %p86 = scmp.ne.s32.totalorder %s78, %s80
      %p87 = scmp.eq.s32.totalorder %s28, 1
      %p88 = por %p86, %p87
      %p89 = scmp.ne.s32.totalorder %s80, %s81
      %p90 = scmp.eq.s32.totalorder %s28, 0
      %p91 = por %p89, %p90
      %p92 = scmp.ne.s32.totalorder %s80, %s81
      %p93 = scmp.eq.s32.totalorder %s29, 1
      %p94 = por %p92, %p93
      %p96 = scmp.ne.s32.totalorder %s81, %s95
      %p97 = scmp.eq.s32.totalorder %s29, 0
      %p98 = por %p96, %p97
      %s100 = sadd.s32 %s99, 1
      %p103 = scmp.eq.s32.totalorder %s23, 1
      %p104 = scmp.ne.s32.totalorder %s99, %s101
      %p105 = scmp.eq.s32.totalorder %s23, 0
      %p106 = por %p104, %p105
      %p107 = scmp.ne.s32.totalorder %s99, %s101
      %p108 = scmp.eq.s32.totalorder %s28, 1
      %p109 = por %p107, %p108
      %p110 = scmp.ne.s32.totalorder %s101, %s102
      %p111 = scmp.eq.s32.totalorder %s28, 0
      %p112 = por %p110, %p111
      %p113 = scmp.ne.s32.totalorder %s101, %s102
      %p114 = scmp.eq.s32.totalorder %s29, 1
      %p115 = por %p113, %p114
      %p117 = scmp.ne.s32.totalorder %s102, %s116
      %p118 = scmp.eq.s32.totalorder %s29, 0
      %p119 = por %p117, %p118
      %s121 = sadd.s32 %s120, 1
      %p124 = scmp.eq.s32.totalorder %s23, 1
      %p125 = scmp.ne.s32.totalorder %s120, %s122
      %p126 = scmp.eq.s32.totalorder %s23, 0
      %p127 = por %p125, %p126
      %p128 = scmp.ne.s32.totalorder %s120, %s122
      %p129 = scmp.eq.s32.totalorder %s28, 1
      %p130 = por %p128, %p129
      %p131 = scmp.ne.s32.totalorder %s122, %s123
      %p132 = scmp.eq.s32.totalorder %s28, 0
      %p133 = por %p131, %p132
      %p134 = scmp.ne.s32.totalorder %s122, %s123
      %p135 = scmp.eq.s32.totalorder %s29, 1
      %p136 = por %p134, %p135
      %p138 = scmp.ne.s32.totalorder %s123, %s137
      %p139 = scmp.eq.s32.totalorder %s29, 0
      %p140 = por %p138, %p139
      %s142 = sadd.s32 %s141, 1
      %p145 = scmp.eq.s32.totalorder %s23, 1
      %p146 = scmp.ne.s32.totalorder %s141, %s143
      %p147 = scmp.eq.s32.totalorder %s23, 0
      %p148 = por %p146, %p147
      %p149 = scmp.ne.s32.totalorder %s141, %s143
      %p150 = scmp.eq.s32.totalorder %s28, 1
      %p151 = por %p149, %p150
      %p152 = scmp.ne.s32.totalorder %s143, %s144
      %p153 = scmp.eq.s32.totalorder %s28, 0
      %p154 = por %p152, %p153
      %p155 = scmp.ne.s32.totalorder %s143, %s144
      %p156 = scmp.eq.s32.totalorder %s29, 1
      %p157 = por %p155, %p156
      %p159 = scmp.ne.s32.totalorder %s144, %s158
      %p160 = scmp.eq.s32.totalorder %s29, 0
      %p161 = por %p159, %p160
      %s163 = sadd.s32 %s162, 1
      %p166 = scmp.eq.s32.totalorder %s23, 1
      %p167 = scmp.ne.s32.totalorder %s162, %s164
      %p168 = scmp.eq.s32.totalorder %s23, 0
      %p169 = por %p167, %p168
      %p170 = scmp.ne.s32.totalorder %s162, %s164
      %p171 = scmp.eq.s32.totalorder %s28, 1
      %p172 = por %p170, %p171
      %p173 = scmp.ne.s32.totalorder %s164, %s165
      %p174 = scmp.eq.s32.totalorder %s28, 0
      %p175 = por %p173, %p174
      %p176 = scmp.ne.s32.totalorder %s164, %s165
      %p177 = scmp.eq.s32.totalorder %s29, 1
      %p178 = por %p176, %p177
      %p180 = scmp.ne.s32.totalorder %s165, %s179
      %p181 = scmp.eq.s32.totalorder %s29, 0
      %p182 = por %p180, %p181
      %s184 = sadd.s32 %s183, 1
      %p187 = scmp.eq.s32.totalorder %s23, 1
      %p188 = scmp.ne.s32.totalorder %s183, %s185
      %p189 = scmp.eq.s32.totalorder %s23, 0
      %p190 = por %p188, %p189
      %p191 = scmp.ne.s32.totalorder %s183, %s185
      %p192 = scmp.eq.s32.totalorder %s28, 1
      %p193 = por %p191, %p192
      %p194 = scmp.ne.s32.totalorder %s185, %s186
      %p195 = scmp.eq.s32.totalorder %s28, 0
      %p196 = por %p194, %p195
      %p197 = scmp.ne.s32.totalorder %s185, %s186
      %p198 = scmp.eq.s32.totalorder %s29, 1
      %p199 = por %p197, %p198
      %p201 = scmp.ne.s32.totalorder %s186, %s200
      %p202 = scmp.eq.s32.totalorder %s29, 0
      %p203 = por %p201, %p202
      %s205 = sadd.s32 %s204, 1
      %p208 = scmp.eq.s32.totalorder %s23, 1
      %p209 = scmp.ne.s32.totalorder %s204, %s206
      %p210 = scmp.eq.s32.totalorder %s23, 0
      %p211 = por %p209, %p210
      %p212 = scmp.ne.s32.totalorder %s204, %s206
      %p213 = scmp.eq.s32.totalorder %s28, 1
      %p214 = por %p212, %p213
      %p215 = scmp.ne.s32.totalorder %s206, %s207
      %p216 = scmp.eq.s32.totalorder %s28, 0
      %p217 = por %p215, %p216
      %p218 = scmp.ne.s32.totalorder %s206, %s207
      %p219 = scmp.eq.s32.totalorder %s29, 1
      %p220 = por %p218, %p219
      %p222 = scmp.ne.s32.totalorder %s207, %s221
      %p223 = scmp.eq.s32.totalorder %s29, 0
      %p224 = por %p222, %p223
      %s226 = sadd.s32 %s225, 1
      %p229 = scmp.eq.s32.totalorder %s23, 1
      %p230 = scmp.ne.s32.totalorder %s225, %s227
      %p231 = scmp.eq.s32.totalorder %s23, 0
      %p232 = por %p230, %p231
      %p233 = scmp.ne.s32.totalorder %s225, %s227
      %p234 = scmp.eq.s32.totalorder %s28, 1
      %p235 = por %p233, %p234
      %p236 = scmp.ne.s32.totalorder %s227, %s228
      %p237 = scmp.eq.s32.totalorder %s28, 0
      %p238 = por %p236, %p237
      %p239 = scmp.ne.s32.totalorder %s227, %s228
      %p240 = scmp.eq.s32.totalorder %s29, 1
      %p241 = por %p239, %p240
      %p243 = scmp.ne.s32.totalorder %s228, %s242
      %p244 = scmp.eq.s32.totalorder %s29, 0
      %p245 = por %p243, %p244
      %s247 = sadd.s32 %s246, 1
      %p250 = scmp.eq.s32.totalorder %s23, 1
      %p251 = scmp.ne.s32.totalorder %s246, %s248
      %p252 = scmp.eq.s32.totalorder %s23, 0
      %p253 = por %p251, %p252
      %p254 = scmp.ne.s32.totalorder %s246, %s248
      %p255 = scmp.eq.s32.totalorder %s28, 1
      %p256 = por %p254, %p255
      %p257 = scmp.ne.s32.totalorder %s248, %s249
      %p258 = scmp.eq.s32.totalorder %s28, 0
      %p259 = por %p257, %p258
      %p260 = scmp.ne.s32.totalorder %s248, %s249
      %p261 = scmp.eq.s32.totalorder %s29, 1
      %p262 = por %p260, %p261
      %p264 = scmp.ne.s32.totalorder %s249, %s263
      %p265 = scmp.eq.s32.totalorder %s29, 0
      %p266 = por %p264, %p265
      %s268 = sadd.s32 %s267, 1
      %p271 = scmp.eq.s32.totalorder %s23, 1
      %p272 = scmp.ne.s32.totalorder %s267, %s269
      %p273 = scmp.eq.s32.totalorder %s23, 0
      %p274 = por %p272, %p273
      %p275 = scmp.ne.s32.totalorder %s267, %s269
      %p276 = scmp.eq.s32.totalorder %s28, 1
      %p277 = por %p275, %p276
      %p278 = scmp.ne.s32.totalorder %s269, %s270
      %p279 = scmp.eq.s32.totalorder %s28, 0
      %p280 = por %p278, %p279
      %p281 = scmp.ne.s32.totalorder %s269, %s270
      %p282 = scmp.eq.s32.totalorder %s29, 1
      %p283 = por %p281, %p282
      %p285 = scmp.ne.s32.totalorder %s270, %s284
      %p286 = scmp.eq.s32.totalorder %s29, 0
      %p287 = por %p285, %p286
      %s289 = sadd.s32 %s288, 1
      %p292 = scmp.eq.s32.totalorder %s23, 1
      %p293 = scmp.ne.s32.totalorder %s288, %s290
      %p294 = scmp.eq.s32.totalorder %s23, 0
      %p295 = por %p293, %p294
      %p296 = scmp.ne.s32.totalorder %s288, %s290
      %p297 = scmp.eq.s32.totalorder %s28, 1
      %p298 = por %p296, %p297
      %p299 = scmp.ne.s32.totalorder %s290, %s291
      %p300 = scmp.eq.s32.totalorder %s28, 0
      %p301 = por %p299, %p300
      %p302 = scmp.ne.s32.totalorder %s290, %s291
      %p303 = scmp.eq.s32.totalorder %s29, 1
      %p304 = por %p302, %p303
      %p306 = scmp.ne.s32.totalorder %s291, %s305
      %p307 = scmp.eq.s32.totalorder %s29, 0
      %p308 = por %p306, %p307
      %s310 = sadd.s32 %s309, 1
      %p313 = scmp.eq.s32.totalorder %s23, 1
      %p314 = scmp.ne.s32.totalorder %s309, %s311
      %p315 = scmp.eq.s32.totalorder %s23, 0
      %p316 = por %p314, %p315
      %p317 = scmp.ne.s32.totalorder %s309, %s311
      %p318 = scmp.eq.s32.totalorder %s28, 1
      %p319 = por %p317, %p318
      %p320 = scmp.ne.s32.totalorder %s311, %s312
      %p321 = scmp.eq.s32.totalorder %s28, 0
      %p322 = por %p320, %p321
      %p323 = scmp.ne.s32.totalorder %s311, %s312
      %p324 = scmp.eq.s32.totalorder %s29, 1
      %p325 = por %p323, %p324
      %p327 = scmp.ne.s32.totalorder %s312, %s326
      %p328 = scmp.eq.s32.totalorder %s29, 0
      %p329 = por %p327, %p328
      %s330 = ssub.s32 %s23, %s30
      %p331 = scmp.eq.s32.totalorder %s330, 0
      %s333 = sadd.s32 %s332, 1
      %s334 = scalar_select %p331, %s332, %s333
      %p337 = pneg %p331
      %p338 = scmp.eq.s32.totalorder %s23, 1
      %p339 = por %p337, %p338
      %p340 = scmp.ne.s32.totalorder %s332, %s335
      %p341 = scmp.eq.s32.totalorder %s23, 0
      %p342 = por %p340, %p341
      %p343 = scmp.ne.s32.totalorder %s332, %s335
      %p344 = scmp.eq.s32.totalorder %s28, 1
      %p345 = por %p343, %p344
      %p346 = scmp.ne.s32.totalorder %s335, %s336
      %p347 = scmp.eq.s32.totalorder %s28, 0
      %p348 = por %p346, %p347
      %p349 = scmp.ne.s32.totalorder %s335, %s336
      %p350 = scmp.eq.s32.totalorder %s29, 1
      %p351 = por %p349, %p350
      %p353 = scmp.ne.s32.totalorder %s336, %s352
      %p354 = scmp.eq.s32.totalorder %s29, 0
      %p355 = por %p353, %p354
      %p356 = scmp.le.s32.totalorder 1, %s23
      %p357 = scmp.lt.s32.totalorder %s23, 3
      %p358 = pnand %p356, %p357
      %p359 = pneg %p358
      // Predicated region
      $region9: #{tpu_custom_call.1} parent=5 // pred_check
        _
      $region10: #{tpu_custom_call.1} parent=5 // pred_check_branch
        %361 = sbr.rel (%p358) target = $region12
      $region11: #{tpu_custom_call.1} parent=5 // pred_region
        %s362 = ssub.s32 %s23, 1
        // Predicated region
        $region13: #{tpu_custom_call.1} parent=11 // pred_check
          %p363 = pneg %p70
        $region14: #{tpu_custom_call.1} parent=11 // pred_check_branch
          %365 = sbr.rel (%p363) target = $region16
        $region15: #{tpu_custom_call.1} parent=11 // pred_region
          _
        $region16: #{tpu_custom_call.1} parent=11 // pred_fallthru
          _
        // Predicated region
        $region17: #{tpu_custom_call.1} parent=11 // pred_check
          %p366 = pneg %p91
        $region18: #{tpu_custom_call.1} parent=11 // pred_check_branch
          %368 = sbr.rel (%p366) target = $region20
        $region19: #{tpu_custom_call.1} parent=11 // pred_region
          _
        $region20: #{tpu_custom_call.1} parent=11 // pred_fallthru
          _
        // Predicated region
        $region21: #{tpu_custom_call.1} parent=11 // pred_check
          %p369 = pneg %p112
        $region22: #{tpu_custom_call.1} parent=11 // pred_check_branch
          %371 = sbr.rel (%p369) target = $region24
        $region23: #{tpu_custom_call.1} parent=11 // pred_region
          _
        $region24: #{tpu_custom_call.1} parent=11 // pred_fallthru
          _
        // Predicated region
        $region25: #{tpu_custom_call.1} parent=11 // pred_check
          %p372 = pneg %p133
        $region26: #{tpu_custom_call.1} parent=11 // pred_check_branch
          %374 = sbr.rel (%p372) target = $region28
        $region27: #{tpu_custom_call.1} parent=11 // pred_region
          _
        $region28: #{tpu_custom_call.1} parent=11 // pred_fallthru
          _
        // Predicated region
        $region29: #{tpu_custom_call.1} parent=11 // pred_check
          %p375 = pneg %p154
        $region30: #{tpu_custom_call.1} parent=11 // pred_check_branch
          %377 = sbr.rel (%p375) target = $region32
        $region31: #{tpu_custom_call.1} parent=11 // pred_region
          _
        $region32: #{tpu_custom_call.1} parent=11 // pred_fallthru
          _
        // Predicated region
        $region33: #{tpu_custom_call.1} parent=11 // pred_check
          %p378 = pneg %p175
        $region34: #{tpu_custom_call.1} parent=11 // pred_check_branch
          %380 = sbr.rel (%p378) target = $region36
        $region35: #{tpu_custom_call.1} parent=11 // pred_region
          _
        $region36: #{tpu_custom_call.1} parent=11 // pred_fallthru
          _
        // Predicated region
        $region37: #{tpu_custom_call.1} parent=11 // pred_check
          %p381 = pneg %p196
        $region38: #{tpu_custom_call.1} parent=11 // pred_check_branch
          %383 = sbr.rel (%p381) target = $region40
        $region39: #{tpu_custom_call.1} parent=11 // pred_region
          _
        $region40: #{tpu_custom_call.1} parent=11 // pred_fallthru
          _
        // Predicated region
        $region41: #{tpu_custom_call.1} parent=11 // pred_check
          %p384 = pneg %p217
        $region42: #{tpu_custom_call.1} parent=11 // pred_check_branch
          %386 = sbr.rel (%p384) target = $region44
        $region43: #{tpu_custom_call.1} parent=11 // pred_region
          _
        $region44: #{tpu_custom_call.1} parent=11 // pred_fallthru
          _
        // Predicated region
        $region45: #{tpu_custom_call.1} parent=11 // pred_check
          %p387 = pneg %p238
        $region46: #{tpu_custom_call.1} parent=11 // pred_check_branch
          %389 = sbr.rel (%p387) target = $region48
        $region47: #{tpu_custom_call.1} parent=11 // pred_region
          _
        $region48: #{tpu_custom_call.1} parent=11 // pred_fallthru
          _
        // Predicated region
        $region49: #{tpu_custom_call.1} parent=11 // pred_check
          %p390 = pneg %p259
        $region50: #{tpu_custom_call.1} parent=11 // pred_check_branch
          %392 = sbr.rel (%p390) target = $region52
        $region51: #{tpu_custom_call.1} parent=11 // pred_region
          _
        $region52: #{tpu_custom_call.1} parent=11 // pred_fallthru
          _
        // Predicated region
        $region53: #{tpu_custom_call.1} parent=11 // pred_check
          %p393 = pneg %p280
        $region54: #{tpu_custom_call.1} parent=11 // pred_check_branch
          %395 = sbr.rel (%p393) target = $region56
        $region55: #{tpu_custom_call.1} parent=11 // pred_region
          _
        $region56: #{tpu_custom_call.1} parent=11 // pred_fallthru
          _
        // Predicated region
        $region57: #{tpu_custom_call.1} parent=11 // pred_check
          %p396 = pneg %p301
        $region58: #{tpu_custom_call.1} parent=11 // pred_check_branch
          %398 = sbr.rel (%p396) target = $region60
        $region59: #{tpu_custom_call.1} parent=11 // pred_region
          _
        $region60: #{tpu_custom_call.1} parent=11 // pred_fallthru
          _
        // Predicated region
        $region61: #{tpu_custom_call.1} parent=11 // pred_check
          %p399 = pneg %p322
        $region62: #{tpu_custom_call.1} parent=11 // pred_check_branch
          %401 = sbr.rel (%p399) target = $region64
        $region63: #{tpu_custom_call.1} parent=11 // pred_region
          _
        $region64: #{tpu_custom_call.1} parent=11 // pred_fallthru
          _
      $region12: #{tpu_custom_call.1} parent=5 // pred_fallthru
        _
      %p402 = scmp.lt.s32.totalorder %s23, 2
      // Predicated region
      $region65: #{tpu_custom_call.1} parent=5 // pred_check
        %p403 = pneg %p402
      $region66: #{tpu_custom_call.1} parent=5 // pred_check_branch
        %405 = sbr.rel (%p403) target = $region68
      $region67: #{tpu_custom_call.1} parent=5 // pred_region
        // Predicated region
        $region69: #{tpu_custom_call.1} parent=67 // pred_check
          %p406 = pneg %p43
        $region70: #{tpu_custom_call.1} parent=67 // pred_check_branch
          %408 = sbr.rel (%p406) target = $region72
        $region71: #{tpu_custom_call.1} parent=67 // pred_region
          %p409 = scmp.lt.s32.totalorder %s23, 1
          %s410 = scalar_select %p409, %s23, 1
          %s411 = smul.addr %s410, 2
          %s412 = smul.addr %s411, 8
          %s413 = scalar_lea.vmem %s0, %s412
        $region72: #{tpu_custom_call.1} parent=67 // pred_fallthru
          _
      $region68: #{tpu_custom_call.1} parent=5 // pred_fallthru
        _
      %p414 = scmp.le.s32.totalorder 1, %s23
      %p415 = scmp.lt.s32.totalorder %s23, 3
      %p416 = pnand %p414, %p415
      %p417 = pneg %p416
      // Predicated region
      $region73: #{tpu_custom_call.1} parent=5 // pred_check
        _
      $region74: #{tpu_custom_call.1} parent=5 // pred_check_branch
        %419 = sbr.rel (%p416) target = $region76
      $region75: #{tpu_custom_call.1} parent=5 // pred_region
        %s420 = ssub.s32 %s23, 1
        %p421 = scmp.lt.s32.totalorder %s28, 1
        %s422 = scalar_select %p421, %s28, 1
        %s423 = smul.addr %s422, 2
        %s424 = smul.addr %s423, 8
        %s425 = scalar_lea.vmem %s0, %s424
        %p426 = pneg %p49
        %p427 = pneg %p46
        %p428 = pneg %p70
        %p429 = pneg %p67
        %p430 = pneg %p91
        %p431 = pneg %p88
        %p432 = pneg %p112
        %p433 = pneg %p109
        %p434 = pneg %p133
        %p435 = pneg %p130
        %p436 = pneg %p154
        %p437 = pneg %p151
        %p438 = pneg %p175
        %p439 = pneg %p172
        %p440 = pneg %p196
        %p441 = pneg %p193
        %p442 = pneg %p217
        %p443 = pneg %p214
        %p444 = pneg %p238
        %p445 = pneg %p235
        %p446 = pneg %p259
        %p447 = pneg %p256
        %p448 = pneg %p280
        %p449 = pneg %p277
        %p450 = pneg %p301
        %p451 = pneg %p298
        %p452 = pneg %p322
        %p453 = pneg %p319
        %p454 = pneg %p348
        %p455 = pneg %p345
        %s456 = sand.u32 %s335, 1
        %s457 = scalar_lea.sflag [#allocation5], %s456
        %s458 = sand.u32 %s335, 1
        %s459 = smul.addr %s458, 16
        %s460 = scalar_lea.vmem [#allocation4], %s459
        %p461 = scmp.lt.s32.totalorder %s28, 1
        %s462 = scalar_select %p461, %s28, 1
        %s463 = smul.addr %s462, 2
        %s464 = smul.addr %s463, 8
        %s465 = scalar_lea.vmem %s0, %s464
        %v466 = vld [vmem:[%s465] sm:$0xff]
        %v467 = vld [vmem:[%s465 + $0x8] sm:$0xff]
        %v468 = vld [vmem:[%s1] sm:$0xff]
        %v469 = vld [vmem:[%s1 + $0x8] sm:$0xff]
        %471 = vset.pattern.permute.xlu0 0
        %472 = vperm.xlu0 %471, %v468
        %v473 = vpop.permute.xlu0 %472
        %476 = vset.pattern.permute.xlu0 0
        %477 = vperm.xlu0 %476, %v469
        %v478 = vpop.permute.xlu0 %477
        %v480 = vlaneseq
        %v481 = vshrl.u32 %v480, 7
        %v482 = vsub.s32 0, %v481
        %v483 = vrot.slane %v466, %v482
        %v484 = vlaneseq
        %v485 = vshrl.u32 %v484, 7
        %v486 = vsub.s32 0, %v485
        %v487 = vrot.slane %v467, %v486
        %v488 = vmul.f32 %v473, %v483
        %v489 = vmul.f32 %v473, %v487
        %v490 = vmul.f32 %v478, %v483
        %v491 = vmul.f32 %v478, %v487
        %v492 = vadd.f32 %v488, 0.0
        %v493 = vadd.f32 %v489, 0.0
        %v494 = vadd.f32 %v490, 0.0
        %v495 = vadd.f32 %v491, 0.0
        %496 = vset.pattern.permute.xlu0 1
        %497 = vperm.xlu0 %496, %v468
        %v498 = vpop.permute.xlu0 %497
        %500 = vset.pattern.permute.xlu0 1
        %501 = vperm.xlu0 %500, %v469
        %v502 = vpop.permute.xlu0 %501
        %v504 = vlaneseq
        %v505 = vshrl.u32 %v504, 7
        %v506 = vsub.s32 1, %v505
        %v507 = vrot.slane %v466, %v506
        %v508 = vlaneseq
        %v509 = vshrl.u32 %v508, 7
        %v510 = vsub.s32 1, %v509
        %v511 = vrot.slane %v467, %v510
        %v512 = vmul.f32 %v498, %v507
        %v513 = vmul.f32 %v498, %v511
        %v514 = vmul.f32 %v502, %v507
        %v515 = vmul.f32 %v502, %v511
        %v516 = vadd.f32 %v492, %v512
        %v517 = vadd.f32 %v493, %v513
        %v518 = vadd.f32 %v494, %v514
        %v519 = vadd.f32 %v495, %v515
        %520 = vset.pattern.permute.xlu0 2
        %521 = vperm.xlu0 %520, %v468
        %v522 = vpop.permute.xlu0 %521
        %524 = vset.pattern.permute.xlu0 2
        %525 = vperm.xlu0 %524, %v469
        %v526 = vpop.permute.xlu0 %525
        %v528 = vlaneseq
        %v529 = vshrl.u32 %v528, 7
        %v530 = vsub.s32 2, %v529
        %v531 = vrot.slane %v466, %v530
        %v532 = vlaneseq
        %v533 = vshrl.u32 %v532, 7
        %v534 = vsub.s32 2, %v533
        %v535 = vrot.slane %v467, %v534
        %v536 = vmul.f32 %v522, %v531
        %v537 = vmul.f32 %v522, %v535
        %v538 = vmul.f32 %v526, %v531
        %v539 = vmul.f32 %v526, %v535
        %v540 = vadd.f32 %v516, %v536
        %v541 = vadd.f32 %v517, %v537
        %v542 = vadd.f32 %v518, %v538
        %v543 = vadd.f32 %v519, %v539
        %544 = vset.pattern.permute.xlu0 3
        %545 = vperm.xlu0 %544, %v468
        %v546 = vpop.permute.xlu0 %545
        %548 = vset.pattern.permute.xlu0 3
        %549 = vperm.xlu0 %548, %v469
        %v550 = vpop.permute.xlu0 %549
        %v552 = vlaneseq
        %v553 = vshrl.u32 %v552, 7
        %v554 = vsub.s32 3, %v553
        %v555 = vrot.slane %v466, %v554
        %v556 = vlaneseq
        %v557 = vshrl.u32 %v556, 7
        %v558 = vsub.s32 3, %v557
        %v559 = vrot.slane %v467, %v558
        %v560 = vmul.f32 %v546, %v555
        %v561 = vmul.f32 %v546, %v559
        %v562 = vmul.f32 %v550, %v555
        %v563 = vmul.f32 %v550, %v559
        %v564 = vadd.f32 %v540, %v560
        %v565 = vadd.f32 %v541, %v561
        %v566 = vadd.f32 %v542, %v562
        %v567 = vadd.f32 %v543, %v563
        %568 = vset.pattern.permute.xlu0 4
        %569 = vperm.xlu0 %568, %v468
        %v570 = vpop.permute.xlu0 %569
        %572 = vset.pattern.permute.xlu0 4
        %573 = vperm.xlu0 %572, %v469
        %v574 = vpop.permute.xlu0 %573
        %v576 = vlaneseq
        %v577 = vshrl.u32 %v576, 7
        %v578 = vsub.s32 4, %v577
        %v579 = vrot.slane %v466, %v578
        %v580 = vlaneseq
        %v581 = vshrl.u32 %v580, 7
        %v582 = vsub.s32 4, %v581
        %v583 = vrot.slane %v467, %v582
        %v584 = vmul.f32 %v570, %v579
        %v585 = vmul.f32 %v570, %v583
        %v586 = vmul.f32 %v574, %v579
        %v587 = vmul.f32 %v574, %v583
        %v588 = vadd.f32 %v564, %v584
        %v589 = vadd.f32 %v565, %v585
        %v590 = vadd.f32 %v566, %v586
        %v591 = vadd.f32 %v567, %v587
        %592 = vset.pattern.permute.xlu0 5
        %593 = vperm.xlu0 %592, %v468
        %v594 = vpop.permute.xlu0 %593
        %596 = vset.pattern.permute.xlu0 5
        %597 = vperm.xlu0 %596, %v469
        %v598 = vpop.permute.xlu0 %597
        %v600 = vlaneseq
        %v601 = vshrl.u32 %v600, 7
        %v602 = vsub.s32 5, %v601
        %v603 = vrot.slane %v466, %v602
        %v604 = vlaneseq
        %v605 = vshrl.u32 %v604, 7
        %v606 = vsub.s32 5, %v605
        %v607 = vrot.slane %v467, %v606
        %v608 = vmul.f32 %v594, %v603
        %v609 = vmul.f32 %v594, %v607
        %v610 = vmul.f32 %v598, %v603
        %v611 = vmul.f32 %v598, %v607
        %v612 = vadd.f32 %v588, %v608
        %v613 = vadd.f32 %v589, %v609
        %v614 = vadd.f32 %v590, %v610
        %v615 = vadd.f32 %v591, %v611
        %616 = vset.pattern.permute.xlu0 6
        %617 = vperm.xlu0 %616, %v468
        %v618 = vpop.permute.xlu0 %617
        %620 = vset.pattern.permute.xlu0 6
        %621 = vperm.xlu0 %620, %v469
        %v622 = vpop.permute.xlu0 %621
        %v624 = vlaneseq
        %v625 = vshrl.u32 %v624, 7
        %v626 = vsub.s32 6, %v625
        %v627 = vrot.slane %v466, %v626
        %v628 = vlaneseq
        %v629 = vshrl.u32 %v628, 7
        %v630 = vsub.s32 6, %v629
        %v631 = vrot.slane %v467, %v630
        %v632 = vmul.f32 %v618, %v627
        %v633 = vmul.f32 %v618, %v631
        %v634 = vmul.f32 %v622, %v627
        %v635 = vmul.f32 %v622, %v631
        %v636 = vadd.f32 %v612, %v632
        %v637 = vadd.f32 %v613, %v633
        %v638 = vadd.f32 %v614, %v634
        %v639 = vadd.f32 %v615, %v635
        %640 = vset.pattern.permute.xlu0 7
        %641 = vperm.xlu0 %640, %v468
        %v642 = vpop.permute.xlu0 %641
        %644 = vset.pattern.permute.xlu0 7
        %645 = vperm.xlu0 %644, %v469
        %v646 = vpop.permute.xlu0 %645
        %v648 = vlaneseq
        %v649 = vshrl.u32 %v648, 7
        %v650 = vsub.s32 7, %v649
        %v651 = vrot.slane %v466, %v650
        %v652 = vlaneseq
        %v653 = vshrl.u32 %v652, 7
        %v654 = vsub.s32 7, %v653
        %v655 = vrot.slane %v467, %v654
        %v656 = vmul.f32 %v642, %v651
        %v657 = vmul.f32 %v642, %v655
        %v658 = vmul.f32 %v646, %v651
        %v659 = vmul.f32 %v646, %v655
        %v660 = vadd.f32 %v636, %v656
        %v661 = vadd.f32 %v637, %v657
        %v662 = vadd.f32 %v638, %v658
        %v663 = vadd.f32 %v639, %v659
        %v664 = vld [vmem:[%s2] sm:$0xff]
        %v665 = vld [vmem:[%s2 + $0x8] sm:$0xff]
        %667 = vset.pattern.permute.xlu0 0
        %668 = vperm.xlu0 %667, %v664
        %v669 = vpop.permute.xlu0 %668
        %672 = vset.pattern.permute.xlu0 0
        %673 = vperm.xlu0 %672, %v665
        %v674 = vpop.permute.xlu0 %673
        %v676 = vmul.f32 %v660, %v669
        %v677 = vmul.f32 %v661, %v669
        %v678 = vmul.f32 %v662, %v674
        %v679 = vmul.f32 %v663, %v674
        %v680 = vld [vmem:[%s3] sm:$0xff]
        %v681 = vld [vmem:[%s3 + $0x8] sm:$0xff]
        %683 = vset.pattern.permute.xlu0 0
        %684 = vperm.xlu0 %683, %v680
        %v685 = vpop.permute.xlu0 %684
        %688 = vset.pattern.permute.xlu0 0
        %689 = vperm.xlu0 %688, %v681
        %v690 = vpop.permute.xlu0 %689
        %v692 = vadd.f32 %v676, %v685
        %v693 = vadd.f32 %v677, %v685
        %v694 = vadd.f32 %v678, %v690
        %v695 = vadd.f32 %v679, %v690
        %v696 = vadd.f32 %v692, 3.0
        %v697 = vadd.f32 %v693, 3.0
        %v698 = vadd.f32 %v694, 3.0
        %v699 = vadd.f32 %v695, 3.0
        %v700 = vmax.f32 %v696, 0.0
        %v701 = vmax.f32 %v697, 0.0
        %v702 = vmax.f32 %v698, 0.0
        %v703 = vmax.f32 %v699, 0.0
        %v704 = vmin.f32 %v700, 6.0
        %v705 = vmin.f32 %v701, 6.0
        %v706 = vmin.f32 %v702, 6.0
        %v707 = vmin.f32 %v703, 6.0
        %v708 = vmul.f32 %v692, %v704
        %v709 = vmul.f32 %v693, %v705
        %v710 = vmul.f32 %v694, %v706
        %v711 = vmul.f32 %v695, %v707
        %v712 = vmul.f32 %v708, 0.16666667
        %v713 = vmul.f32 %v709, 0.16666667
        %v714 = vmul.f32 %v710, 0.16666667
        %v715 = vmul.f32 %v711, 0.16666667
        %716 = vst [vmem:[#allocation2] sm:$0xff] 0.0
        %717 = vst [vmem:[#allocation2 + $0x8] sm:$0xff] 0.0
        %vm718 = vcmask 556032
        %719 = vst.msk [vmem:[#allocation2 + $0x10] sm:$0xff] %vm718, 0.0
        %720 = vst [vmem:[#allocation2 + $0x18] sm:$0xff] 0.0
        %721 = vst [vmem:[#allocation2 + $0x20] sm:$0xff] 0.0
        %722 = vst.msk [vmem:[#allocation2 + $0x28] sm:$0xff] %vm718, 0.0
        %725 = vrot.lane.b32.xlu0 %v712, 19
        %v726 = vpop.permute.xlu0 %725
        %727 = vrot.lane.b32.xlu0 %v714, 19
        %v728 = vpop.permute.xlu0 %727
        %vm731 = vcmask 285848
        %732 = vst.msk [vmem:[#allocation2] sm:$0xff] %vm731, %v726
        %733 = vst.msk [vmem:[#allocation2 + $0x18] sm:$0xff] %vm731, %v728
        %734 = vrot.lane.b32.xlu0 %v712, 21
        %v735 = vpop.permute.xlu0 %734
        %736 = vrot.lane.b32.xlu0 %v714, 21
        %v737 = vpop.permute.xlu0 %736
        %vm740 = vcmask 433448
        %741 = vst.msk [vmem:[#allocation2] sm:$0xff] %vm740, %v735
        %742 = vst.msk [vmem:[#allocation2 + $0x18] sm:$0xff] %vm740, %v737
        %743 = vrot.lane.b32.xlu0 %v712, 23
        %v744 = vpop.permute.xlu0 %743
        %745 = vrot.lane.b32.xlu0 %v714, 23
        %v746 = vpop.permute.xlu0 %745
        %vm749 = vcmask 581048
        %750 = vst.msk [vmem:[#allocation2] sm:$0xff] %vm749, %v744
        %751 = vst.msk [vmem:[#allocation2 + $0x18] sm:$0xff] %vm749, %v746
        %752 = vrot.lane.b32.xlu0 %v712, 25
        %v753 = vpop.permute.xlu0 %752
        %754 = vrot.lane.b32.xlu0 %v714, 25
        %v755 = vpop.permute.xlu0 %754
        %vm758 = vcmask 728648
        %759 = vst.msk [vmem:[#allocation2] sm:$0xff] %vm758, %v753
        %760 = vst.msk [vmem:[#allocation2 + $0x18] sm:$0xff] %vm758, %v755
        %761 = vrot.lane.b32.xlu0 %v712, 27
        %v762 = vpop.permute.xlu0 %761
        %763 = vrot.lane.b32.xlu0 %v714, 27
        %v764 = vpop.permute.xlu0 %763
        %vm767 = vcmask 876248
        %768 = vst.msk [vmem:[#allocation2] sm:$0xff] %vm767, %v762
        %769 = vst.msk [vmem:[#allocation2 + $0x18] sm:$0xff] %vm767, %v764
        %770 = vrot.lane.b32.xlu0 %v712, 29
        %v771 = vpop.permute.xlu0 %770
        %772 = vrot.lane.b32.xlu0 %v714, 29
        %v773 = vpop.permute.xlu0 %772
        %vm776 = vcmask 1023848
        %777 = vst.msk [vmem:[#allocation2] sm:$0xff] %vm776, %v771
        %778 = vst.msk [vmem:[#allocation2 + $0x18] sm:$0xff] %vm776, %v773
        %779 = vrot.lane.b32.xlu0 %v712, 31
        %v780 = vpop.permute.xlu0 %779
        %781 = vrot.lane.b32.xlu0 %v714, 31
        %v782 = vpop.permute.xlu0 %781
        %vm785 = vcmask 1048568
        %786 = vst.msk [vmem:[#allocation2] sm:$0xff] %vm785, %v780
        %vm787 = vcmask 121856
        %788 = vst.msk [vmem:[#allocation2 + $0x8] sm:$0xff] %vm787, %v780
        %789 = vst.msk [vmem:[#allocation2 + $0x18] sm:$0xff] %vm785, %v782
        %790 = vst.msk [vmem:[#allocation2 + $0x20] sm:$0xff] %vm787, %v782
        %791 = vrot.lane.b32.xlu0 %v712, 33
        %v792 = vpop.permute.xlu0 %791
        %793 = vrot.lane.b32.xlu0 %v714, 33
        %v794 = vpop.permute.xlu0 %793
        %vm797 = vcmask 269448
        %798 = vst.msk [vmem:[#allocation2 + $0x8] sm:$0xff] %vm797, %v792
        %799 = vst.msk [vmem:[#allocation2 + $0x20] sm:$0xff] %vm797, %v794
        %802 = vrot.lane.b32.xlu0 %v713, 35
        %v803 = vpop.permute.xlu0 %802
        %804 = vrot.lane.b32.xlu0 %v715, 35
        %v805 = vpop.permute.xlu0 %804
        %vm808 = vcmask 417048
        %809 = vst.msk [vmem:[#allocation2 + $0x8] sm:$0xff] %vm808, %v803
        %810 = vst.msk [vmem:[#allocation2 + $0x20] sm:$0xff] %vm808, %v805
        %811 = vrot.lane.b32.xlu0 %v713, 37
        %v812 = vpop.permute.xlu0 %811
        %813 = vrot.lane.b32.xlu0 %v715, 37
        %v814 = vpop.permute.xlu0 %813
        %vm817 = vcmask 564648
        %818 = vst.msk [vmem:[#allocation2 + $0x8] sm:$0xff] %vm817, %v812
        %819 = vst.msk [vmem:[#allocation2 + $0x20] sm:$0xff] %vm817, %v814
        %820 = vrot.lane.b32.xlu0 %v713, 39
        %v821 = vpop.permute.xlu0 %820
        %822 = vrot.lane.b32.xlu0 %v715, 39
        %v823 = vpop.permute.xlu0 %822
        %vm826 = vcmask 712248
        %827 = vst.msk [vmem:[#allocation2 + $0x8] sm:$0xff] %vm826, %v821
        %828 = vst.msk [vmem:[#allocation2 + $0x20] sm:$0xff] %vm826, %v823
        %829 = vrot.lane.b32.xlu0 %v713, 41
        %v830 = vpop.permute.xlu0 %829
        %831 = vrot.lane.b32.xlu0 %v715, 41
        %v832 = vpop.permute.xlu0 %831
        %vm835 = vcmask 859848
        %836 = vst.msk [vmem:[#allocation2 + $0x8] sm:$0xff] %vm835, %v830
        %837 = vst.msk [vmem:[#allocation2 + $0x20] sm:$0xff] %vm835, %v832
        %838 = vrot.lane.b32.xlu0 %v713, 43
        %v839 = vpop.permute.xlu0 %838
        %840 = vrot.lane.b32.xlu0 %v715, 43
        %v841 = vpop.permute.xlu0 %840
        %vm844 = vcmask 1007448
        %845 = vst.msk [vmem:[#allocation2 + $0x8] sm:$0xff] %vm844, %v839
        %846 = vst.msk [vmem:[#allocation2 + $0x20] sm:$0xff] %vm844, %v841
        %847 = vrot.lane.b32.xlu0 %v713, 45
        %v848 = vpop.permute.xlu0 %847
        %849 = vrot.lane.b32.xlu0 %v715, 45
        %v850 = vpop.permute.xlu0 %849
        %vm853 = vcmask 1048552
        %854 = vst.msk [vmem:[#allocation2 + $0x8] sm:$0xff] %vm853, %v848
        %vm855 = vcmask 105472
        %856 = vst.msk [vmem:[#allocation2 + $0x10] sm:$0xff] %vm855, %v848
        %857 = vst.msk [vmem:[#allocation2 + $0x20] sm:$0xff] %vm853, %v850
        %858 = vst.msk [vmem:[#allocation2 + $0x28] sm:$0xff] %vm855, %v850
        %859 = vrot.lane.b32.xlu0 %v713, 47
        %v860 = vpop.permute.xlu0 %859
        %861 = vrot.lane.b32.xlu0 %v715, 47
        %v862 = vpop.permute.xlu0 %861
        %vm865 = vcmask 253048
        %866 = vst.msk [vmem:[#allocation2 + $0x10] sm:$0xff] %vm865, %v860
        %867 = vst.msk [vmem:[#allocation2 + $0x28] sm:$0xff] %vm865, %v862
        %868 = vrot.lane.b32.xlu0 %v713, 49
        %v869 = vpop.permute.xlu0 %868
        %870 = vrot.lane.b32.xlu0 %v715, 49
        %v871 = vpop.permute.xlu0 %870
        %vm874 = vcmask 400648
        %875 = vst.msk [vmem:[#allocation2 + $0x10] sm:$0xff] %vm874, %v869
        %876 = vst.msk [vmem:[#allocation2 + $0x28] sm:$0xff] %vm874, %v871
        %v877 = vld [vmem:[%s4] sm:$0xff]
        %v878 = vld [vmem:[%s4 + $0x8] sm:$0xff]
        %v879 = vld [vmem:[#allocation2] sm:$0xff]
        %v880 = vld [vmem:[#allocation2 + $0x18] sm:$0xff]
        %882 = vset.pattern.permute.xlu0 0
        %883 = vperm.xlu0 %882, %v877
        %v884 = vpop.permute.xlu0 %883
        %887 = vset.pattern.permute.xlu0 0
        %888 = vperm.xlu0 %887, %v878
        %v889 = vpop.permute.xlu0 %888
        %v891 = vmul.f32 %v879, %v884
        %v892 = vmul.f32 %v880, %v889
        %v893 = vadd.f32 %v891, 0.0
        %v894 = vadd.f32 %v892, 0.0
        %895 = vset.pattern.permute.xlu0 1
        %896 = vperm.xlu0 %895, %v877
        %v897 = vpop.permute.xlu0 %896
        %899 = vset.pattern.permute.xlu0 1
        %900 = vperm.xlu0 %899, %v878
        %v901 = vpop.permute.xlu0 %900
        %v903 = vmul.f32 %v879, %v897
        %v904 = vmul.f32 %v880, %v901
        %907 = vrot.lane.b32.xlu0 %v903, 127
        %v908 = vpop.permute.xlu0 %907
        %909 = vrot.lane.b32.xlu0 %v904, 127
        %v910 = vpop.permute.xlu0 %909
        %v913 = vadd.f32 %v893, %v908
        %v914 = vadd.f32 %v894, %v910
        %915 = vset.pattern.permute.xlu0 2
        %916 = vperm.xlu0 %915, %v877
        %v917 = vpop.permute.xlu0 %916
        %919 = vset.pattern.permute.xlu0 2
        %920 = vperm.xlu0 %919, %v878
        %v921 = vpop.permute.xlu0 %920
        %v923 = vmul.f32 %v879, %v917
        %v924 = vmul.f32 %v880, %v921
        %927 = vrot.lane.b32.xlu0 %v923, 126
        %v928 = vpop.permute.xlu0 %927
        %929 = vrot.lane.b32.xlu0 %v924, 126
        %v930 = vpop.permute.xlu0 %929
        %v933 = vadd.f32 %v913, %v928
        %v934 = vadd.f32 %v914, %v930
        %935 = vset.pattern.permute.xlu0 3
        %936 = vperm.xlu0 %935, %v877
        %v937 = vpop.permute.xlu0 %936
        %939 = vset.pattern.permute.xlu0 3
        %940 = vperm.xlu0 %939, %v878
        %v941 = vpop.permute.xlu0 %940
        %v943 = vmul.f32 %v879, %v937
        %v944 = vmul.f32 %v880, %v941
        %947 = vrot.lane.b32.xlu0 %v943, 110
        %v948 = vpop.permute.xlu0 %947
        %949 = vrot.lane.b32.xlu0 %v944, 110
        %v950 = vpop.permute.xlu0 %949
        %v953 = vadd.f32 %v933, %v948
        %v954 = vadd.f32 %v934, %v950
        %955 = vset.pattern.permute.xlu0 4
        %956 = vperm.xlu0 %955, %v877
        %v957 = vpop.permute.xlu0 %956
        %959 = vset.pattern.permute.xlu0 4
        %960 = vperm.xlu0 %959, %v878
        %v961 = vpop.permute.xlu0 %960
        %v963 = vmul.f32 %v879, %v957
        %v964 = vmul.f32 %v880, %v961
        %967 = vrot.lane.b32.xlu0 %v963, 109
        %v968 = vpop.permute.xlu0 %967
        %969 = vrot.lane.b32.xlu0 %v964, 109
        %v970 = vpop.permute.xlu0 %969
        %v973 = vadd.f32 %v953, %v968
        %v974 = vadd.f32 %v954, %v970
        %975 = vset.pattern.permute.xlu0 5
        %976 = vperm.xlu0 %975, %v877
        %v977 = vpop.permute.xlu0 %976
        %979 = vset.pattern.permute.xlu0 5
        %980 = vperm.xlu0 %979, %v878
        %v981 = vpop.permute.xlu0 %980
        %v983 = vmul.f32 %v879, %v977
        %v984 = vmul.f32 %v880, %v981
        %987 = vrot.lane.b32.xlu0 %v983, 108
        %v988 = vpop.permute.xlu0 %987
        %989 = vrot.lane.b32.xlu0 %v984, 108
        %v990 = vpop.permute.xlu0 %989
        %v993 = vadd.f32 %v973, %v988
        %v994 = vadd.f32 %v974, %v990
        %995 = vset.pattern.permute.xlu0 6
        %996 = vperm.xlu0 %995, %v877
        %v997 = vpop.permute.xlu0 %996
        %999 = vset.pattern.permute.xlu0 6
        %1000 = vperm.xlu0 %999, %v878
        %v1001 = vpop.permute.xlu0 %1000
        %v1003 = vmul.f32 %v879, %v997
        %v1004 = vmul.f32 %v880, %v1001
        %1007 = vrot.lane.b32.xlu0 %v1003, 92
        %v1008 = vpop.permute.xlu0 %1007
        %1009 = vrot.lane.b32.xlu0 %v1004, 92
        %v1010 = vpop.permute.xlu0 %1009
        %v1013 = vadd.f32 %v993, %v1008
        %v1014 = vadd.f32 %v994, %v1010
        %1015 = vset.pattern.permute.xlu0 7
        %1016 = vperm.xlu0 %1015, %v877
        %v1017 = vpop.permute.xlu0 %1016
        %1019 = vset.pattern.permute.xlu0 7
        %1020 = vperm.xlu0 %1019, %v878
        %v1021 = vpop.permute.xlu0 %1020
        %v1023 = vmul.f32 %v879, %v1017
        %v1024 = vmul.f32 %v880, %v1021
        %1027 = vrot.lane.b32.xlu0 %v1023, 91
        %v1028 = vpop.permute.xlu0 %1027
        %1029 = vrot.lane.b32.xlu0 %v1024, 91
        %v1030 = vpop.permute.xlu0 %1029
        %v1033 = vadd.f32 %v1013, %v1028
        %v1034 = vadd.f32 %v1014, %v1030
        %1035 = vset.pattern.permute.xlu0 8
        %1036 = vperm.xlu0 %1035, %v877
        %v1037 = vpop.permute.xlu0 %1036
        %1039 = vset.pattern.permute.xlu0 8
        %1040 = vperm.xlu0 %1039, %v878
        %v1041 = vpop.permute.xlu0 %1040
        %v1043 = vmul.f32 %v879, %v1037
        %v1044 = vmul.f32 %v880, %v1041
        %1047 = vrot.lane.b32.xlu0 %v1043, 90
        %v1048 = vpop.permute.xlu0 %1047
        %1049 = vrot.lane.b32.xlu0 %v1044, 90
        %v1050 = vpop.permute.xlu0 %1049
        %v1053 = vadd.f32 %v1033, %v1048
        %v1054 = vadd.f32 %v1034, %v1050
        %vm1055 = vcmask 130048
        %1056 = vst.msk [vmem:[#allocation3] sm:$0xff] %vm1055, %v1053
        %1057 = vst.msk [vmem:[#allocation3 + $0x10] sm:$0xff] %vm1055, %v1054
        %v1058 = vld [vmem:[#allocation2] sm:$0xff]
        %v1059 = vld [vmem:[#allocation2 + $0x18] sm:$0xff]
        %v1060 = vmul.f32 %v1058, %v884
        %v1061 = vmul.f32 %v1059, %v889
        %v1062 = vadd.f32 %v1060, 0.0
        %v1063 = vadd.f32 %v1061, 0.0
        %v1064 = vmul.f32 %v1058, %v897
        %v1065 = vmul.f32 %v1059, %v901
        %1068 = vrot.lane.b32.xlu0 %v1064, 127
        %v1069 = vpop.permute.xlu0 %1068
        %1070 = vrot.lane.b32.xlu0 %v1065, 127
        %v1071 = vpop.permute.xlu0 %1070
        %v1074 = vadd.f32 %v1062, %v1069
        %v1075 = vadd.f32 %v1063, %v1071
        %v1076 = vmul.f32 %v1058, %v917
        %v1077 = vmul.f32 %v1059, %v921
        %1080 = vrot.lane.b32.xlu0 %v1076, 126
        %v1081 = vpop.permute.xlu0 %1080
        %1082 = vrot.lane.b32.xlu0 %v1077, 126
        %v1083 = vpop.permute.xlu0 %1082
        %v1086 = vadd.f32 %v1074, %v1081
        %v1087 = vadd.f32 %v1075, %v1083
        %v1088 = vmul.f32 %v1058, %v937
        %v1089 = vmul.f32 %v1059, %v941
        %1092 = vrot.lane.b32.xlu0 %v1088, 110
        %v1093 = vpop.permute.xlu0 %1092
        %1094 = vrot.lane.b32.xlu0 %v1089, 110
        %v1095 = vpop.permute.xlu0 %1094
        %v1098 = vadd.f32 %v1086, %v1093
        %v1099 = vadd.f32 %v1087, %v1095
        %v1100 = vmul.f32 %v1058, %v957
        %v1101 = vmul.f32 %v1059, %v961
        %1104 = vrot.lane.b32.xlu0 %v1100, 109
        %v1105 = vpop.permute.xlu0 %1104
        %1106 = vrot.lane.b32.xlu0 %v1101, 109
        %v1107 = vpop.permute.xlu0 %1106
        %v1110 = vadd.f32 %v1098, %v1105
        %v1111 = vadd.f32 %v1099, %v1107
        %v1112 = vmul.f32 %v1058, %v977
        %v1113 = vmul.f32 %v1059, %v981
        %1116 = vrot.lane.b32.xlu0 %v1112, 108
        %v1117 = vpop.permute.xlu0 %1116
        %1118 = vrot.lane.b32.xlu0 %v1113, 108
        %v1119 = vpop.permute.xlu0 %1118
        %v1122 = vadd.f32 %v1110, %v1117
        %v1123 = vadd.f32 %v1111, %v1119
        %v1124 = vmul.f32 %v1058, %v997
        %v1125 = vmul.f32 %v1059, %v1001
        %1128 = vrot.lane.b32.xlu0 %v1124, 92
        %v1129 = vpop.permute.xlu0 %1128
        %1130 = vrot.lane.b32.xlu0 %v1125, 92
        %v1131 = vpop.permute.xlu0 %1130
        %v1134 = vadd.f32 %v1122, %v1129
        %v1135 = vadd.f32 %v1123, %v1131
        %v1136 = vmul.f32 %v1058, %v1017
        %v1137 = vmul.f32 %v1059, %v1021
        %1140 = vrot.lane.b32.xlu0 %v1136, 91
        %v1141 = vpop.permute.xlu0 %1140
        %1142 = vrot.lane.b32.xlu0 %v1137, 91
        %v1143 = vpop.permute.xlu0 %1142
        %v1146 = vadd.f32 %v1134, %v1141
        %v1147 = vadd.f32 %v1135, %v1143
        %v1148 = vmul.f32 %v1058, %v1037
        %v1149 = vmul.f32 %v1059, %v1041
        %1152 = vrot.lane.b32.xlu0 %v1148, 90
        %v1153 = vpop.permute.xlu0 %1152
        %1154 = vrot.lane.b32.xlu0 %v1149, 90
        %v1155 = vpop.permute.xlu0 %1154
        %v1158 = vadd.f32 %v1146, %v1153
        %v1159 = vadd.f32 %v1147, %v1155
        %1162 = vrot.lane.b32.xlu0 %v1158, 126
        %v1163 = vpop.permute.xlu0 %1162
        %1164 = vrot.lane.b32.xlu0 %v1159, 126
        %v1165 = vpop.permute.xlu0 %1164
        %vm1168 = vcmask 261248
        %1169 = vst.msk [vmem:[#allocation3] sm:$0xff] %vm1168, %v1163
        %1170 = vst.msk [vmem:[#allocation3 + $0x10] sm:$0xff] %vm1168, %v1165
        %v1171 = vld [vmem:[#allocation2] sm:$0xff]
        %v1172 = vld [vmem:[#allocation2 + $0x18] sm:$0xff]
        %v1173 = vmul.f32 %v1171, %v884
        %v1174 = vmul.f32 %v1172, %v889
        %v1175 = vadd.f32 %v1173, 0.0
        %v1176 = vadd.f32 %v1174, 0.0
        %v1177 = vmul.f32 %v1171, %v897
        %v1178 = vmul.f32 %v1172, %v901
        %1181 = vrot.lane.b32.xlu0 %v1177, 127
        %v1182 = vpop.permute.xlu0 %1181
        %1183 = vrot.lane.b32.xlu0 %v1178, 127
        %v1184 = vpop.permute.xlu0 %1183
        %v1187 = vadd.f32 %v1175, %v1182
        %v1188 = vadd.f32 %v1176, %v1184
        %v1189 = vmul.f32 %v1171, %v917
        %v1190 = vmul.f32 %v1172, %v921
        %1193 = vrot.lane.b32.xlu0 %v1189, 126
        %v1194 = vpop.permute.xlu0 %1193
        %1195 = vrot.lane.b32.xlu0 %v1190, 126
        %v1196 = vpop.permute.xlu0 %1195
        %v1199 = vadd.f32 %v1187, %v1194
        %v1200 = vadd.f32 %v1188, %v1196
        %v1201 = vmul.f32 %v1171, %v937
        %v1202 = vmul.f32 %v1172, %v941
        %1205 = vrot.lane.b32.xlu0 %v1201, 110
        %v1206 = vpop.permute.xlu0 %1205
        %1207 = vrot.lane.b32.xlu0 %v1202, 110
        %v1208 = vpop.permute.xlu0 %1207
        %v1211 = vadd.f32 %v1199, %v1206
        %v1212 = vadd.f32 %v1200, %v1208
        %v1213 = vmul.f32 %v1171, %v957
        %v1214 = vmul.f32 %v1172, %v961
        %1217 = vrot.lane.b32.xlu0 %v1213, 109
        %v1218 = vpop.permute.xlu0 %1217
        %1219 = vrot.lane.b32.xlu0 %v1214, 109
        %v1220 = vpop.permute.xlu0 %1219
        %v1223 = vadd.f32 %v1211, %v1218
        %v1224 = vadd.f32 %v1212, %v1220
        %v1225 = vmul.f32 %v1171, %v977
        %v1226 = vmul.f32 %v1172, %v981
        %1229 = vrot.lane.b32.xlu0 %v1225, 108
        %v1230 = vpop.permute.xlu0 %1229
        %1231 = vrot.lane.b32.xlu0 %v1226, 108
        %v1232 = vpop.permute.xlu0 %1231
        %v1235 = vadd.f32 %v1223, %v1230
        %v1236 = vadd.f32 %v1224, %v1232
        %v1237 = vmul.f32 %v1171, %v997
        %v1238 = vmul.f32 %v1172, %v1001
        %1241 = vrot.lane.b32.xlu0 %v1237, 92
        %v1242 = vpop.permute.xlu0 %1241
        %1243 = vrot.lane.b32.xlu0 %v1238, 92
        %v1244 = vpop.permute.xlu0 %1243
        %v1247 = vadd.f32 %v1235, %v1242
        %v1248 = vadd.f32 %v1236, %v1244
        %v1249 = vmul.f32 %v1171, %v1017
        %v1250 = vmul.f32 %v1172, %v1021
        %1253 = vrot.lane.b32.xlu0 %v1249, 91
        %v1254 = vpop.permute.xlu0 %1253
        %1255 = vrot.lane.b32.xlu0 %v1250, 91
        %v1256 = vpop.permute.xlu0 %1255
        %v1259 = vadd.f32 %v1247, %v1254
        %v1260 = vadd.f32 %v1248, %v1256
        %v1261 = vmul.f32 %v1171, %v1037
        %v1262 = vmul.f32 %v1172, %v1041
        %1265 = vrot.lane.b32.xlu0 %v1261, 90
        %v1266 = vpop.permute.xlu0 %1265
        %1267 = vrot.lane.b32.xlu0 %v1262, 90
        %v1268 = vpop.permute.xlu0 %1267
        %v1271 = vadd.f32 %v1259, %v1266
        %v1272 = vadd.f32 %v1260, %v1268
        %1275 = vrot.lane.b32.xlu0 %v1271, 124
        %v1276 = vpop.permute.xlu0 %1275
        %1277 = vrot.lane.b32.xlu0 %v1272, 124
        %v1278 = vpop.permute.xlu0 %1277
        %vm1281 = vcmask 392448
        %1282 = vst.msk [vmem:[#allocation3] sm:$0xff] %vm1281, %v1276
        %1283 = vst.msk [vmem:[#allocation3 + $0x10] sm:$0xff] %vm1281, %v1278
        %v1284 = vld [vmem:[#allocation2] sm:$0xff]
        %v1285 = vld [vmem:[#allocation2 + $0x18] sm:$0xff]
        %v1286 = vmul.f32 %v1284, %v884
        %v1287 = vmul.f32 %v1285, %v889
        %v1288 = vadd.f32 %v1286, 0.0
        %v1289 = vadd.f32 %v1287, 0.0
        %v1290 = vmul.f32 %v1284, %v897
        %v1291 = vmul.f32 %v1285, %v901
        %1294 = vrot.lane.b32.xlu0 %v1290, 127
        %v1295 = vpop.permute.xlu0 %1294
        %1296 = vrot.lane.b32.xlu0 %v1291, 127
        %v1297 = vpop.permute.xlu0 %1296
        %v1300 = vadd.f32 %v1288, %v1295
        %v1301 = vadd.f32 %v1289, %v1297
        %v1302 = vmul.f32 %v1284, %v917
        %v1303 = vmul.f32 %v1285, %v921
        %1306 = vrot.lane.b32.xlu0 %v1302, 126
        %v1307 = vpop.permute.xlu0 %1306
        %1308 = vrot.lane.b32.xlu0 %v1303, 126
        %v1309 = vpop.permute.xlu0 %1308
        %v1312 = vadd.f32 %v1300, %v1307
        %v1313 = vadd.f32 %v1301, %v1309
        %v1314 = vmul.f32 %v1284, %v937
        %v1315 = vmul.f32 %v1285, %v941
        %1318 = vrot.lane.b32.xlu0 %v1314, 110
        %v1319 = vpop.permute.xlu0 %1318
        %1320 = vrot.lane.b32.xlu0 %v1315, 110
        %v1321 = vpop.permute.xlu0 %1320
        %v1324 = vadd.f32 %v1312, %v1319
        %v1325 = vadd.f32 %v1313, %v1321
        %v1326 = vmul.f32 %v1284, %v957
        %v1327 = vmul.f32 %v1285, %v961
        %1330 = vrot.lane.b32.xlu0 %v1326, 109
        %v1331 = vpop.permute.xlu0 %1330
        %1332 = vrot.lane.b32.xlu0 %v1327, 109
        %v1333 = vpop.permute.xlu0 %1332
        %v1336 = vadd.f32 %v1324, %v1331
        %v1337 = vadd.f32 %v1325, %v1333
        %v1338 = vmul.f32 %v1284, %v977
        %v1339 = vmul.f32 %v1285, %v981
        %1342 = vrot.lane.b32.xlu0 %v1338, 108
        %v1343 = vpop.permute.xlu0 %1342
        %1344 = vrot.lane.b32.xlu0 %v1339, 108
        %v1345 = vpop.permute.xlu0 %1344
        %v1348 = vadd.f32 %v1336, %v1343
        %v1349 = vadd.f32 %v1337, %v1345
        %v1350 = vmul.f32 %v1284, %v997
        %v1351 = vmul.f32 %v1285, %v1001
        %1354 = vrot.lane.b32.xlu0 %v1350, 92
        %v1355 = vpop.permute.xlu0 %1354
        %1356 = vrot.lane.b32.xlu0 %v1351, 92
        %v1357 = vpop.permute.xlu0 %1356
        %v1360 = vadd.f32 %v1348, %v1355
        %v1361 = vadd.f32 %v1349, %v1357
        %v1362 = vmul.f32 %v1284, %v1017
        %v1363 = vmul.f32 %v1285, %v1021
        %1366 = vrot.lane.b32.xlu0 %v1362, 91
        %v1367 = vpop.permute.xlu0 %1366
        %1368 = vrot.lane.b32.xlu0 %v1363, 91
        %v1369 = vpop.permute.xlu0 %1368
        %v1372 = vadd.f32 %v1360, %v1367
        %v1373 = vadd.f32 %v1361, %v1369
        %v1374 = vmul.f32 %v1284, %v1037
        %v1375 = vmul.f32 %v1285, %v1041
        %1378 = vrot.lane.b32.xlu0 %v1374, 90
        %v1379 = vpop.permute.xlu0 %1378
        %1380 = vrot.lane.b32.xlu0 %v1375, 90
        %v1381 = vpop.permute.xlu0 %1380
        %v1384 = vadd.f32 %v1372, %v1379
        %v1385 = vadd.f32 %v1373, %v1381
        %1388 = vrot.lane.b32.xlu0 %v1384, 122
        %v1389 = vpop.permute.xlu0 %1388
        %1390 = vrot.lane.b32.xlu0 %v1385, 122
        %v1391 = vpop.permute.xlu0 %1390
        %vm1394 = vcmask 523648
        %1395 = vst.msk [vmem:[#allocation3] sm:$0xff] %vm1394, %v1389
        %1396 = vst.msk [vmem:[#allocation3 + $0x10] sm:$0xff] %vm1394, %v1391
        %v1397 = vld [vmem:[#allocation2] sm:$0xff]
        %v1398 = vld [vmem:[#allocation2 + $0x18] sm:$0xff]
        %v1399 = vmul.f32 %v1397, %v884
        %v1400 = vmul.f32 %v1398, %v889
        %v1401 = vadd.f32 %v1399, 0.0
        %v1402 = vadd.f32 %v1400, 0.0
        %v1403 = vmul.f32 %v1397, %v897
        %v1404 = vmul.f32 %v1398, %v901
        %1407 = vrot.lane.b32.xlu0 %v1403, 127
        %v1408 = vpop.permute.xlu0 %1407
        %1409 = vrot.lane.b32.xlu0 %v1404, 127
        %v1410 = vpop.permute.xlu0 %1409
        %v1413 = vadd.f32 %v1401, %v1408
        %v1414 = vadd.f32 %v1402, %v1410
        %v1415 = vmul.f32 %v1397, %v917
        %v1416 = vmul.f32 %v1398, %v921
        %1419 = vrot.lane.b32.xlu0 %v1415, 126
        %v1420 = vpop.permute.xlu0 %1419
        %1421 = vrot.lane.b32.xlu0 %v1416, 126
        %v1422 = vpop.permute.xlu0 %1421
        %v1425 = vadd.f32 %v1413, %v1420
        %v1426 = vadd.f32 %v1414, %v1422
        %v1427 = vmul.f32 %v1397, %v937
        %v1428 = vmul.f32 %v1398, %v941
        %1431 = vrot.lane.b32.xlu0 %v1427, 110
        %v1432 = vpop.permute.xlu0 %1431
        %1433 = vrot.lane.b32.xlu0 %v1428, 110
        %v1434 = vpop.permute.xlu0 %1433
        %v1437 = vadd.f32 %v1425, %v1432
        %v1438 = vadd.f32 %v1426, %v1434
        %v1439 = vmul.f32 %v1397, %v957
        %v1440 = vmul.f32 %v1398, %v961
        %1443 = vrot.lane.b32.xlu0 %v1439, 109
        %v1444 = vpop.permute.xlu0 %1443
        %1445 = vrot.lane.b32.xlu0 %v1440, 109
        %v1446 = vpop.permute.xlu0 %1445
        %v1449 = vadd.f32 %v1437, %v1444
        %v1450 = vadd.f32 %v1438, %v1446
        %v1451 = vmul.f32 %v1397, %v977
        %v1452 = vmul.f32 %v1398, %v981
        %1455 = vrot.lane.b32.xlu0 %v1451, 108
        %v1456 = vpop.permute.xlu0 %1455
        %1457 = vrot.lane.b32.xlu0 %v1452, 108
        %v1458 = vpop.permute.xlu0 %1457
        %v1461 = vadd.f32 %v1449, %v1456
        %v1462 = vadd.f32 %v1450, %v1458
        %v1463 = vmul.f32 %v1397, %v997
        %v1464 = vmul.f32 %v1398, %v1001
        %1467 = vrot.lane.b32.xlu0 %v1463, 92
        %v1468 = vpop.permute.xlu0 %1467
        %1469 = vrot.lane.b32.xlu0 %v1464, 92
        %v1470 = vpop.permute.xlu0 %1469
        %v1473 = vadd.f32 %v1461, %v1468
        %v1474 = vadd.f32 %v1462, %v1470
        %v1475 = vmul.f32 %v1397, %v1017
        %v1476 = vmul.f32 %v1398, %v1021
        %1479 = vrot.lane.b32.xlu0 %v1475, 91
        %v1480 = vpop.permute.xlu0 %1479
        %1481 = vrot.lane.b32.xlu0 %v1476, 91
        %v1482 = vpop.permute.xlu0 %1481
        %v1485 = vadd.f32 %v1473, %v1480
        %v1486 = vadd.f32 %v1474, %v1482
        %v1487 = vmul.f32 %v1397, %v1037
        %v1488 = vmul.f32 %v1398, %v1041
        %1491 = vrot.lane.b32.xlu0 %v1487, 90
        %v1492 = vpop.permute.xlu0 %1491
        %1493 = vrot.lane.b32.xlu0 %v1488, 90
        %v1494 = vpop.permute.xlu0 %1493
        %v1497 = vadd.f32 %v1485, %v1492
        %v1498 = vadd.f32 %v1486, %v1494
        %1501 = vrot.lane.b32.xlu0 %v1497, 120
        %v1502 = vpop.permute.xlu0 %1501
        %1503 = vrot.lane.b32.xlu0 %v1498, 120
        %v1504 = vpop.permute.xlu0 %1503
        %vm1507 = vcmask 654848
        %1508 = vst.msk [vmem:[#allocation3] sm:$0xff] %vm1507, %v1502
        %1509 = vst.msk [vmem:[#allocation3 + $0x10] sm:$0xff] %vm1507, %v1504
        %v1510 = vld [vmem:[#allocation2] sm:$0xff]
        %v1511 = vld [vmem:[#allocation2 + $0x18] sm:$0xff]
        %v1512 = vmul.f32 %v1510, %v884
        %v1513 = vmul.f32 %v1511, %v889
        %v1514 = vadd.f32 %v1512, 0.0
        %v1515 = vadd.f32 %v1513, 0.0
        %v1516 = vmul.f32 %v1510, %v897
        %v1517 = vmul.f32 %v1511, %v901
        %1520 = vrot.lane.b32.xlu0 %v1516, 127
        %v1521 = vpop.permute.xlu0 %1520
        %1522 = vrot.lane.b32.xlu0 %v1517, 127
        %v1523 = vpop.permute.xlu0 %1522
        %v1526 = vadd.f32 %v1514, %v1521
        %v1527 = vadd.f32 %v1515, %v1523
        %v1528 = vmul.f32 %v1510, %v917
        %v1529 = vmul.f32 %v1511, %v921
        %1532 = vrot.lane.b32.xlu0 %v1528, 126
        %v1533 = vpop.permute.xlu0 %1532
        %1534 = vrot.lane.b32.xlu0 %v1529, 126
        %v1535 = vpop.permute.xlu0 %1534
        %v1538 = vadd.f32 %v1526, %v1533
        %v1539 = vadd.f32 %v1527, %v1535
        %v1540 = vmul.f32 %v1510, %v937
        %v1541 = vmul.f32 %v1511, %v941
        %1544 = vrot.lane.b32.xlu0 %v1540, 110
        %v1545 = vpop.permute.xlu0 %1544
        %1546 = vrot.lane.b32.xlu0 %v1541, 110
        %v1547 = vpop.permute.xlu0 %1546
        %v1550 = vadd.f32 %v1538, %v1545
        %v1551 = vadd.f32 %v1539, %v1547
        %v1552 = vmul.f32 %v1510, %v957
        %v1553 = vmul.f32 %v1511, %v961
        %1556 = vrot.lane.b32.xlu0 %v1552, 109
        %v1557 = vpop.permute.xlu0 %1556
        %1558 = vrot.lane.b32.xlu0 %v1553, 109
        %v1559 = vpop.permute.xlu0 %1558
        %v1562 = vadd.f32 %v1550, %v1557
        %v1563 = vadd.f32 %v1551, %v1559
        %v1564 = vmul.f32 %v1510, %v977
        %v1565 = vmul.f32 %v1511, %v981
        %1568 = vrot.lane.b32.xlu0 %v1564, 108
        %v1569 = vpop.permute.xlu0 %1568
        %1570 = vrot.lane.b32.xlu0 %v1565, 108
        %v1571 = vpop.permute.xlu0 %1570
        %v1574 = vadd.f32 %v1562, %v1569
        %v1575 = vadd.f32 %v1563, %v1571
        %v1576 = vld [vmem:[#allocation2 + $0x8] sm:$0xff]
        %v1577 = vld [vmem:[#allocation2 + $0x20] sm:$0xff]
        %v1578 = vmul.f32 %v1510, %v997
        %v1579 = vmul.f32 %v1576, %v997
        %v1580 = vmul.f32 %v1511, %v1001
        %v1581 = vmul.f32 %v1577, %v1001
        %1586 = vrot.lane.b32.xlu0 %v1578, 92
        %v1587 = vpop.permute.xlu0 %1586
        %1588 = vrot.lane.b32.xlu0 %v1579, 92
        %v1589 = vpop.permute.xlu0 %1588
        %1590 = vrot.lane.b32.xlu0 %v1580, 92
        %v1591 = vpop.permute.xlu0 %1590
        %1592 = vrot.lane.b32.xlu0 %v1581, 92
        %v1593 = vpop.permute.xlu0 %1592
        %vm1594 = vcmask 752640
        %v1595 = vsel %vm1594, %v1587, %v1589
        %v1596 = vsel %vm1594, %v1591, %v1593
        %v1599 = vadd.f32 %v1574, %v1595
        %v1600 = vadd.f32 %v1575, %v1596
        %v1601 = vmul.f32 %v1510, %v1017
        %v1602 = vmul.f32 %v1576, %v1017
        %v1603 = vmul.f32 %v1511, %v1021
        %v1604 = vmul.f32 %v1577, %v1021
        %1609 = vrot.lane.b32.xlu0 %v1601, 91
        %v1610 = vpop.permute.xlu0 %1609
        %1611 = vrot.lane.b32.xlu0 %v1602, 91
        %v1612 = vpop.permute.xlu0 %1611
        %1613 = vrot.lane.b32.xlu0 %v1603, 91
        %v1614 = vpop.permute.xlu0 %1613
        %1615 = vrot.lane.b32.xlu0 %v1604, 91
        %v1616 = vpop.permute.xlu0 %1615
        %vm1617 = vcmask 744448
        %v1618 = vsel %vm1617, %v1610, %v1612
        %v1619 = vsel %vm1617, %v1614, %v1616
        %v1622 = vadd.f32 %v1599, %v1618
        %v1623 = vadd.f32 %v1600, %v1619
        %v1624 = vmul.f32 %v1576, %v1037
        %v1625 = vmul.f32 %v1577, %v1041
        %1628 = vrot.lane.b32.xlu0 %v1624, 90
        %v1629 = vpop.permute.xlu0 %1628
        %1630 = vrot.lane.b32.xlu0 %v1625, 90
        %v1631 = vpop.permute.xlu0 %1630
        %v1634 = vadd.f32 %v1622, %v1629
        %v1635 = vadd.f32 %v1623, %v1631
        %1638 = vrot.lane.b32.xlu0 %v1634, 118
        %v1639 = vpop.permute.xlu0 %1638
        %1640 = vrot.lane.b32.xlu0 %v1635, 118
        %v1641 = vpop.permute.xlu0 %1640
        %vm1644 = vcmask 786048
        %1645 = vst.msk [vmem:[#allocation3] sm:$0xff] %vm1644, %v1639
        %1646 = vst.msk [vmem:[#allocation3 + $0x10] sm:$0xff] %vm1644, %v1641
        %v1647 = vld [vmem:[#allocation2] sm:$0xff]
        %v1648 = vld [vmem:[#allocation2 + $0x18] sm:$0xff]
        %v1649 = vmul.f32 %v1647, %v884
        %v1650 = vmul.f32 %v1648, %v889
        %v1651 = vadd.f32 %v1649, 0.0
        %v1652 = vadd.f32 %v1650, 0.0
        %v1653 = vmul.f32 %v1647, %v897
        %v1654 = vmul.f32 %v1648, %v901
        %1657 = vrot.lane.b32.xlu0 %v1653, 127
        %v1658 = vpop.permute.xlu0 %1657
        %1659 = vrot.lane.b32.xlu0 %v1654, 127
        %v1660 = vpop.permute.xlu0 %1659
        %v1663 = vadd.f32 %v1651, %v1658
        %v1664 = vadd.f32 %v1652, %v1660
        %v1665 = vmul.f32 %v1647, %v917
        %v1666 = vmul.f32 %v1648, %v921
        %1669 = vrot.lane.b32.xlu0 %v1665, 126
        %v1670 = vpop.permute.xlu0 %1669
        %1671 = vrot.lane.b32.xlu0 %v1666, 126
        %v1672 = vpop.permute.xlu0 %1671
        %v1675 = vadd.f32 %v1663, %v1670
        %v1676 = vadd.f32 %v1664, %v1672
        %v1677 = vld [vmem:[#allocation2 + $0x8] sm:$0xff]
        %v1678 = vld [vmem:[#allocation2 + $0x20] sm:$0xff]
        %v1679 = vmul.f32 %v1647, %v937
        %v1680 = vmul.f32 %v1677, %v937
        %v1681 = vmul.f32 %v1648, %v941
        %v1682 = vmul.f32 %v1678, %v941
        %1687 = vrot.lane.b32.xlu0 %v1679, 110
        %v1688 = vpop.permute.xlu0 %1687
        %1689 = vrot.lane.b32.xlu0 %v1680, 110
        %v1690 = vpop.permute.xlu0 %1689
        %1691 = vrot.lane.b32.xlu0 %v1681, 110
        %v1692 = vpop.permute.xlu0 %1691
        %1693 = vrot.lane.b32.xlu0 %v1682, 110
        %v1694 = vpop.permute.xlu0 %1693
        %vm1695 = vcmask 900096
        %v1696 = vsel %vm1695, %v1688, %v1690
        %v1697 = vsel %vm1695, %v1692, %v1694
        %v1700 = vadd.f32 %v1675, %v1696
        %v1701 = vadd.f32 %v1676, %v1697
        %v1702 = vmul.f32 %v1647, %v957
        %v1703 = vmul.f32 %v1677, %v957
        %v1704 = vmul.f32 %v1648, %v961
        %v1705 = vmul.f32 %v1678, %v961
        %1710 = vrot.lane.b32.xlu0 %v1702, 109
        %v1711 = vpop.permute.xlu0 %1710
        %1712 = vrot.lane.b32.xlu0 %v1703, 109
        %v1713 = vpop.permute.xlu0 %1712
        %1714 = vrot.lane.b32.xlu0 %v1704, 109
        %v1715 = vpop.permute.xlu0 %1714
        %1716 = vrot.lane.b32.xlu0 %v1705, 109
        %v1717 = vpop.permute.xlu0 %1716
        %vm1718 = vcmask 891904
        %v1719 = vsel %vm1718, %v1711, %v1713
        %v1720 = vsel %vm1718, %v1715, %v1717
        %v1723 = vadd.f32 %v1700, %v1719
        %v1724 = vadd.f32 %v1701, %v1720
        %v1725 = vmul.f32 %v1677, %v977
        %v1726 = vmul.f32 %v1678, %v981
        %1729 = vrot.lane.b32.xlu0 %v1725, 108
        %v1730 = vpop.permute.xlu0 %1729
        %1731 = vrot.lane.b32.xlu0 %v1726, 108
        %v1732 = vpop.permute.xlu0 %1731
        %v1735 = vadd.f32 %v1723, %v1730
        %v1736 = vadd.f32 %v1724, %v1732
        %v1737 = vmul.f32 %v1677, %v997
        %v1738 = vmul.f32 %v1678, %v1001
        %1741 = vrot.lane.b32.xlu0 %v1737, 92
        %v1742 = vpop.permute.xlu0 %1741
        %1743 = vrot.lane.b32.xlu0 %v1738, 92
        %v1744 = vpop.permute.xlu0 %1743
        %v1747 = vadd.f32 %v1735, %v1742
        %v1748 = vadd.f32 %v1736, %v1744
        %v1749 = vmul.f32 %v1677, %v1017
        %v1750 = vmul.f32 %v1678, %v1021
        %1753 = vrot.lane.b32.xlu0 %v1749, 91
        %v1754 = vpop.permute.xlu0 %1753
        %1755 = vrot.lane.b32.xlu0 %v1750, 91
        %v1756 = vpop.permute.xlu0 %1755
        %v1759 = vadd.f32 %v1747, %v1754
        %v1760 = vadd.f32 %v1748, %v1756
        %v1761 = vmul.f32 %v1677, %v1037
        %v1762 = vmul.f32 %v1678, %v1041
        %1765 = vrot.lane.b32.xlu0 %v1761, 90
        %v1766 = vpop.permute.xlu0 %1765
        %1767 = vrot.lane.b32.xlu0 %v1762, 90
        %v1768 = vpop.permute.xlu0 %1767
        %v1771 = vadd.f32 %v1759, %v1766
        %v1772 = vadd.f32 %v1760, %v1768
        %1775 = vrot.lane.b32.xlu0 %v1771, 116
        %v1776 = vpop.permute.xlu0 %1775
        %1777 = vrot.lane.b32.xlu0 %v1772, 116
        %v1778 = vpop.permute.xlu0 %1777
        %vm1781 = vcmask 917248
        %1782 = vst.msk [vmem:[#allocation3] sm:$0xff] %vm1781, %v1776
        %1783 = vst.msk [vmem:[#allocation3 + $0x10] sm:$0xff] %vm1781, %v1778
        %v1784 = vld [vmem:[#allocation2] sm:$0xff]
        %v1785 = vld [vmem:[#allocation2 + $0x8] sm:$0xff]
        %v1786 = vld [vmem:[#allocation2 + $0x18] sm:$0xff]
        %v1787 = vld [vmem:[#allocation2 + $0x20] sm:$0xff]
        %v1788 = vmul.f32 %v1784, %v884
        %v1789 = vmul.f32 %v1785, %v884
        %v1790 = vmul.f32 %v1786, %v889
        %v1791 = vmul.f32 %v1787, %v889
        %v1792 = vadd.f32 %v1788, 0.0
        %v1793 = vadd.f32 %v1789, 0.0
        %v1794 = vadd.f32 %v1790, 0.0
        %v1795 = vadd.f32 %v1791, 0.0
        %v1796 = vmul.f32 %v1784, %v897
        %v1797 = vmul.f32 %v1785, %v897
        %v1798 = vmul.f32 %v1786, %v901
        %v1799 = vmul.f32 %v1787, %v901
        %1804 = vrot.lane.b32.xlu0 %v1796, 127
        %v1805 = vpop.permute.xlu0 %1804
        %1806 = vrot.lane.b32.xlu0 %v1797, 127
        %v1807 = vpop.permute.xlu0 %1806
        %1808 = vrot.lane.b32.xlu0 %v1798, 127
        %v1809 = vpop.permute.xlu0 %1808
        %1810 = vrot.lane.b32.xlu0 %v1799, 127
        %v1811 = vpop.permute.xlu0 %1810
        %vm1812 = vcmask 1039360
        %v1813 = vsel %vm1812, %v1805, %v1807
        %v1814 = vsel %vm1812, %v1809, %v1811
        %v1819 = vadd.f32 %v1792, %v1813
        %v1820 = vadd.f32 %v1793, %v1807
        %v1821 = vadd.f32 %v1794, %v1814
        %v1822 = vadd.f32 %v1795, %v1811
        %v1823 = vmul.f32 %v1785, %v917
        %v1824 = vmul.f32 %v1787, %v921
        %1827 = vrot.lane.b32.xlu0 %v1823, 126
        %v1828 = vpop.permute.xlu0 %1827
        %1829 = vrot.lane.b32.xlu0 %v1824, 126
        %v1830 = vpop.permute.xlu0 %1829
        %v1833 = vadd.f32 %v1819, %v1828
        %v1834 = vadd.f32 %v1820, %v1828
        %v1835 = vadd.f32 %v1821, %v1830
        %v1836 = vadd.f32 %v1822, %v1830
        %v1837 = vmul.f32 %v1785, %v937
        %v1838 = vmul.f32 %v1787, %v941
        %1841 = vrot.lane.b32.xlu0 %v1837, 110
        %v1842 = vpop.permute.xlu0 %1841
        %1843 = vrot.lane.b32.xlu0 %v1838, 110
        %v1844 = vpop.permute.xlu0 %1843
        %v1847 = vadd.f32 %v1833, %v1842
        %v1848 = vadd.f32 %v1834, %v1842
        %v1849 = vadd.f32 %v1835, %v1844
        %v1850 = vadd.f32 %v1836, %v1844
        %v1851 = vmul.f32 %v1785, %v957
        %v1852 = vmul.f32 %v1787, %v961
        %1855 = vrot.lane.b32.xlu0 %v1851, 109
        %v1856 = vpop.permute.xlu0 %1855
        %1857 = vrot.lane.b32.xlu0 %v1852, 109
        %v1858 = vpop.permute.xlu0 %1857
        %v1861 = vadd.f32 %v1847, %v1856
        %v1862 = vadd.f32 %v1848, %v1856
        %v1863 = vadd.f32 %v1849, %v1858
        %v1864 = vadd.f32 %v1850, %v1858
        %v1865 = vmul.f32 %v1785, %v977
        %v1866 = vmul.f32 %v1787, %v981
        %1869 = vrot.lane.b32.xlu0 %v1865, 108
        %v1870 = vpop.permute.xlu0 %1869
        %1871 = vrot.lane.b32.xlu0 %v1866, 108
        %v1872 = vpop.permute.xlu0 %1871
        %v1875 = vadd.f32 %v1861, %v1870
        %v1876 = vadd.f32 %v1862, %v1870
        %v1877 = vadd.f32 %v1863, %v1872
        %v1878 = vadd.f32 %v1864, %v1872
        %v1879 = vmul.f32 %v1785, %v997
        %v1880 = vmul.f32 %v1787, %v1001
        %1883 = vrot.lane.b32.xlu0 %v1879, 92
        %v1884 = vpop.permute.xlu0 %1883
        %1885 = vrot.lane.b32.xlu0 %v1880, 92
        %v1886 = vpop.permute.xlu0 %1885
        %v1889 = vadd.f32 %v1875, %v1884
        %v1890 = vadd.f32 %v1876, %v1884
        %v1891 = vadd.f32 %v1877, %v1886
        %v1892 = vadd.f32 %v1878, %v1886
        %v1893 = vmul.f32 %v1785, %v1017
        %v1894 = vmul.f32 %v1787, %v1021
        %1897 = vrot.lane.b32.xlu0 %v1893, 91
        %v1898 = vpop.permute.xlu0 %1897
        %1899 = vrot.lane.b32.xlu0 %v1894, 91
        %v1900 = vpop.permute.xlu0 %1899
        %v1903 = vadd.f32 %v1889, %v1898
        %v1904 = vadd.f32 %v1890, %v1898
        %v1905 = vadd.f32 %v1891, %v1900
        %v1906 = vadd.f32 %v1892, %v1900
        %v1907 = vmul.f32 %v1785, %v1037
        %v1908 = vmul.f32 %v1787, %v1041
        %1911 = vrot.lane.b32.xlu0 %v1907, 90
        %v1912 = vpop.permute.xlu0 %1911
        %1913 = vrot.lane.b32.xlu0 %v1908, 90
        %v1914 = vpop.permute.xlu0 %1913
        %v1917 = vadd.f32 %v1903, %v1912
        %v1918 = vadd.f32 %v1904, %v1912
        %v1919 = vadd.f32 %v1905, %v1914
        %v1920 = vadd.f32 %v1906, %v1914
        %1925 = vrot.lane.b32.xlu0 %v1917, 114
        %v1926 = vpop.permute.xlu0 %1925
        %1927 = vrot.lane.b32.xlu0 %v1918, 114
        %v1928 = vpop.permute.xlu0 %1927
        %1929 = vrot.lane.b32.xlu0 %v1919, 114
        %v1930 = vpop.permute.xlu0 %1929
        %1931 = vrot.lane.b32.xlu0 %v1920, 114
        %v1932 = vpop.permute.xlu0 %1931
        %vm1933 = vcmask 932864
        %v1934 = vsel %vm1933, %v1926, %v1928
        %v1935 = vsel %vm1933, %v1930, %v1932
        %vm1938 = vcmask 1048448
        %1939 = vst.msk [vmem:[#allocation3] sm:$0xff] %vm1938, %v1934
        %1940 = vst.msk [vmem:[#allocation3 + $0x10] sm:$0xff] %vm1938, %v1935
        %v1941 = vld [vmem:[#allocation2 + $0x8] sm:$0xff]
        %v1942 = vld [vmem:[#allocation2 + $0x20] sm:$0xff]
        %v1943 = vmul.f32 %v1941, %v884
        %v1944 = vmul.f32 %v1942, %v889
        %v1945 = vadd.f32 %v1943, 0.0
        %v1946 = vadd.f32 %v1944, 0.0
        %v1947 = vmul.f32 %v1941, %v897
        %v1948 = vmul.f32 %v1942, %v901
        %1951 = vrot.lane.b32.xlu0 %v1947, 127
        %v1952 = vpop.permute.xlu0 %1951
        %1953 = vrot.lane.b32.xlu0 %v1948, 127
        %v1954 = vpop.permute.xlu0 %1953
        %v1957 = vadd.f32 %v1945, %v1952
        %v1958 = vadd.f32 %v1946, %v1954
        %v1959 = vmul.f32 %v1941, %v917
        %v1960 = vmul.f32 %v1942, %v921
        %1963 = vrot.lane.b32.xlu0 %v1959, 126
        %v1964 = vpop.permute.xlu0 %1963
        %1965 = vrot.lane.b32.xlu0 %v1960, 126
        %v1966 = vpop.permute.xlu0 %1965
        %v1969 = vadd.f32 %v1957, %v1964
        %v1970 = vadd.f32 %v1958, %v1966
        %v1971 = vmul.f32 %v1941, %v937
        %v1972 = vmul.f32 %v1942, %v941
        %1975 = vrot.lane.b32.xlu0 %v1971, 110
        %v1976 = vpop.permute.xlu0 %1975
        %1977 = vrot.lane.b32.xlu0 %v1972, 110
        %v1978 = vpop.permute.xlu0 %1977
        %v1981 = vadd.f32 %v1969, %v1976
        %v1982 = vadd.f32 %v1970, %v1978
        %v1983 = vmul.f32 %v1941, %v957
        %v1984 = vmul.f32 %v1942, %v961
        %1987 = vrot.lane.b32.xlu0 %v1983, 109
        %v1988 = vpop.permute.xlu0 %1987
        %1989 = vrot.lane.b32.xlu0 %v1984, 109
        %v1990 = vpop.permute.xlu0 %1989
        %v1993 = vadd.f32 %v1981, %v1988
        %v1994 = vadd.f32 %v1982, %v1990
        %v1995 = vmul.f32 %v1941, %v977
        %v1996 = vmul.f32 %v1942, %v981
        %1999 = vrot.lane.b32.xlu0 %v1995, 108
        %v2000 = vpop.permute.xlu0 %1999
        %2001 = vrot.lane.b32.xlu0 %v1996, 108
        %v2002 = vpop.permute.xlu0 %2001
        %v2005 = vadd.f32 %v1993, %v2000
        %v2006 = vadd.f32 %v1994, %v2002
        %v2007 = vmul.f32 %v1941, %v997
        %v2008 = vmul.f32 %v1942, %v1001
        %2011 = vrot.lane.b32.xlu0 %v2007, 92
        %v2012 = vpop.permute.xlu0 %2011
        %2013 = vrot.lane.b32.xlu0 %v2008, 92
        %v2014 = vpop.permute.xlu0 %2013
        %v2017 = vadd.f32 %v2005, %v2012
        %v2018 = vadd.f32 %v2006, %v2014
        %v2019 = vmul.f32 %v1941, %v1017
        %v2020 = vmul.f32 %v1942, %v1021
        %2023 = vrot.lane.b32.xlu0 %v2019, 91
        %v2024 = vpop.permute.xlu0 %2023
        %2025 = vrot.lane.b32.xlu0 %v2020, 91
        %v2026 = vpop.permute.xlu0 %2025
        %v2029 = vadd.f32 %v2017, %v2024
        %v2030 = vadd.f32 %v2018, %v2026
        %v2031 = vmul.f32 %v1941, %v1037
        %v2032 = vmul.f32 %v1942, %v1041
        %2035 = vrot.lane.b32.xlu0 %v2031, 90
        %v2036 = vpop.permute.xlu0 %2035
        %2037 = vrot.lane.b32.xlu0 %v2032, 90
        %v2038 = vpop.permute.xlu0 %2037
        %v2041 = vadd.f32 %v2029, %v2036
        %v2042 = vadd.f32 %v2030, %v2038
        %2045 = vrot.lane.b32.xlu0 %v2041, 112
        %v2046 = vpop.permute.xlu0 %2045
        %2047 = vrot.lane.b32.xlu0 %v2042, 112
        %v2048 = vpop.permute.xlu0 %2047
        %2051 = vst.msk [vmem:[#allocation3 + $0x8] sm:$0xff] %vm1055, %v2046
        %2052 = vst.msk [vmem:[#allocation3 + $0x18] sm:$0xff] %vm1055, %v2048
        %v2053 = vld [vmem:[#allocation2 + $0x8] sm:$0xff]
        %v2054 = vld [vmem:[#allocation2 + $0x20] sm:$0xff]
        %v2055 = vmul.f32 %v2053, %v884
        %v2056 = vmul.f32 %v2054, %v889
        %v2057 = vadd.f32 %v2055, 0.0
        %v2058 = vadd.f32 %v2056, 0.0
        %v2059 = vmul.f32 %v2053, %v897
        %v2060 = vmul.f32 %v2054, %v901
        %2063 = vrot.lane.b32.xlu0 %v2059, 127
        %v2064 = vpop.permute.xlu0 %2063
        %2065 = vrot.lane.b32.xlu0 %v2060, 127
        %v2066 = vpop.permute.xlu0 %2065
        %v2069 = vadd.f32 %v2057, %v2064
        %v2070 = vadd.f32 %v2058, %v2066
        %v2071 = vmul.f32 %v2053, %v917
        %v2072 = vmul.f32 %v2054, %v921
        %2075 = vrot.lane.b32.xlu0 %v2071, 126
        %v2076 = vpop.permute.xlu0 %2075
        %2077 = vrot.lane.b32.xlu0 %v2072, 126
        %v2078 = vpop.permute.xlu0 %2077
        %v2081 = vadd.f32 %v2069, %v2076
        %v2082 = vadd.f32 %v2070, %v2078
        %v2083 = vmul.f32 %v2053, %v937
        %v2084 = vmul.f32 %v2054, %v941
        %2087 = vrot.lane.b32.xlu0 %v2083, 110
        %v2088 = vpop.permute.xlu0 %2087
        %2089 = vrot.lane.b32.xlu0 %v2084, 110
        %v2090 = vpop.permute.xlu0 %2089
        %v2093 = vadd.f32 %v2081, %v2088
        %v2094 = vadd.f32 %v2082, %v2090
        %v2095 = vmul.f32 %v2053, %v957
        %v2096 = vmul.f32 %v2054, %v961
        %2099 = vrot.lane.b32.xlu0 %v2095, 109
        %v2100 = vpop.permute.xlu0 %2099
        %2101 = vrot.lane.b32.xlu0 %v2096, 109
        %v2102 = vpop.permute.xlu0 %2101
        %v2105 = vadd.f32 %v2093, %v2100
        %v2106 = vadd.f32 %v2094, %v2102
        %v2107 = vmul.f32 %v2053, %v977
        %v2108 = vmul.f32 %v2054, %v981
        %2111 = vrot.lane.b32.xlu0 %v2107, 108
        %v2112 = vpop.permute.xlu0 %2111
        %2113 = vrot.lane.b32.xlu0 %v2108, 108
        %v2114 = vpop.permute.xlu0 %2113
        %v2117 = vadd.f32 %v2105, %v2112
        %v2118 = vadd.f32 %v2106, %v2114
        %v2119 = vmul.f32 %v2053, %v997
        %v2120 = vmul.f32 %v2054, %v1001
        %2123 = vrot.lane.b32.xlu0 %v2119, 92
        %v2124 = vpop.permute.xlu0 %2123
        %2125 = vrot.lane.b32.xlu0 %v2120, 92
        %v2126 = vpop.permute.xlu0 %2125
        %v2129 = vadd.f32 %v2117, %v2124
        %v2130 = vadd.f32 %v2118, %v2126
        %v2131 = vmul.f32 %v2053, %v1017
        %v2132 = vmul.f32 %v2054, %v1021
        %2135 = vrot.lane.b32.xlu0 %v2131, 91
        %v2136 = vpop.permute.xlu0 %2135
        %2137 = vrot.lane.b32.xlu0 %v2132, 91
        %v2138 = vpop.permute.xlu0 %2137
        %v2141 = vadd.f32 %v2129, %v2136
        %v2142 = vadd.f32 %v2130, %v2138
        %v2143 = vmul.f32 %v2053, %v1037
        %v2144 = vmul.f32 %v2054, %v1041
        %2147 = vrot.lane.b32.xlu0 %v2143, 90
        %v2148 = vpop.permute.xlu0 %2147
        %2149 = vrot.lane.b32.xlu0 %v2144, 90
        %v2150 = vpop.permute.xlu0 %2149
        %v2153 = vadd.f32 %v2141, %v2148
        %v2154 = vadd.f32 %v2142, %v2150
        %2157 = vrot.lane.b32.xlu0 %v2153, 110
        %v2158 = vpop.permute.xlu0 %2157
        %2159 = vrot.lane.b32.xlu0 %v2154, 110
        %v2160 = vpop.permute.xlu0 %2159
        %2163 = vst.msk [vmem:[#allocation3 + $0x8] sm:$0xff] %vm1168, %v2158
        %2164 = vst.msk [vmem:[#allocation3 + $0x18] sm:$0xff] %vm1168, %v2160
        %v2165 = vld [vmem:[#allocation2 + $0x8] sm:$0xff]
        %v2166 = vld [vmem:[#allocation2 + $0x20] sm:$0xff]
        %v2167 = vmul.f32 %v2165, %v884
        %v2168 = vmul.f32 %v2166, %v889
        %v2169 = vadd.f32 %v2167, 0.0
        %v2170 = vadd.f32 %v2168, 0.0
        %v2171 = vmul.f32 %v2165, %v897
        %v2172 = vmul.f32 %v2166, %v901
        %2175 = vrot.lane.b32.xlu0 %v2171, 127
        %v2176 = vpop.permute.xlu0 %2175
        %2177 = vrot.lane.b32.xlu0 %v2172, 127
        %v2178 = vpop.permute.xlu0 %2177
        %v2181 = vadd.f32 %v2169, %v2176
        %v2182 = vadd.f32 %v2170, %v2178
        %v2183 = vmul.f32 %v2165, %v917
        %v2184 = vmul.f32 %v2166, %v921
        %2187 = vrot.lane.b32.xlu0 %v2183, 126
        %v2188 = vpop.permute.xlu0 %2187
        %2189 = vrot.lane.b32.xlu0 %v2184, 126
        %v2190 = vpop.permute.xlu0 %2189
        %v2193 = vadd.f32 %v2181, %v2188
        %v2194 = vadd.f32 %v2182, %v2190
        %v2195 = vmul.f32 %v2165, %v937
        %v2196 = vmul.f32 %v2166, %v941
        %2199 = vrot.lane.b32.xlu0 %v2195, 110
        %v2200 = vpop.permute.xlu0 %2199
        %2201 = vrot.lane.b32.xlu0 %v2196, 110
        %v2202 = vpop.permute.xlu0 %2201
        %v2205 = vadd.f32 %v2193, %v2200
        %v2206 = vadd.f32 %v2194, %v2202
        %v2207 = vmul.f32 %v2165, %v957
        %v2208 = vmul.f32 %v2166, %v961
        %2211 = vrot.lane.b32.xlu0 %v2207, 109
        %v2212 = vpop.permute.xlu0 %2211
        %2213 = vrot.lane.b32.xlu0 %v2208, 109
        %v2214 = vpop.permute.xlu0 %2213
        %v2217 = vadd.f32 %v2205, %v2212
        %v2218 = vadd.f32 %v2206, %v2214
        %v2219 = vmul.f32 %v2165, %v977
        %v2220 = vmul.f32 %v2166, %v981
        %2223 = vrot.lane.b32.xlu0 %v2219, 108
        %v2224 = vpop.permute.xlu0 %2223
        %2225 = vrot.lane.b32.xlu0 %v2220, 108
        %v2226 = vpop.permute.xlu0 %2225
        %v2229 = vadd.f32 %v2217, %v2224
        %v2230 = vadd.f32 %v2218, %v2226
        %v2231 = vmul.f32 %v2165, %v997
        %v2232 = vmul.f32 %v2166, %v1001
        %2235 = vrot.lane.b32.xlu0 %v2231, 92
        %v2236 = vpop.permute.xlu0 %2235
        %2237 = vrot.lane.b32.xlu0 %v2232, 92
        %v2238 = vpop.permute.xlu0 %2237
        %v2241 = vadd.f32 %v2229, %v2236
        %v2242 = vadd.f32 %v2230, %v2238
        %v2243 = vmul.f32 %v2165, %v1017
        %v2244 = vmul.f32 %v2166, %v1021
        %2247 = vrot.lane.b32.xlu0 %v2243, 91
        %v2248 = vpop.permute.xlu0 %2247
        %2249 = vrot.lane.b32.xlu0 %v2244, 91
        %v2250 = vpop.permute.xlu0 %2249
        %v2253 = vadd.f32 %v2241, %v2248
        %v2254 = vadd.f32 %v2242, %v2250
        %v2255 = vmul.f32 %v2165, %v1037
        %v2256 = vmul.f32 %v2166, %v1041
        %2259 = vrot.lane.b32.xlu0 %v2255, 90
        %v2260 = vpop.permute.xlu0 %2259
        %2261 = vrot.lane.b32.xlu0 %v2256, 90
        %v2262 = vpop.permute.xlu0 %2261
        %v2265 = vadd.f32 %v2253, %v2260
        %v2266 = vadd.f32 %v2254, %v2262
        %2269 = vrot.lane.b32.xlu0 %v2265, 108
        %v2270 = vpop.permute.xlu0 %2269
        %2271 = vrot.lane.b32.xlu0 %v2266, 108
        %v2272 = vpop.permute.xlu0 %2271
        %2275 = vst.msk [vmem:[#allocation3 + $0x8] sm:$0xff] %vm1281, %v2270
        %2276 = vst.msk [vmem:[#allocation3 + $0x18] sm:$0xff] %vm1281, %v2272
        %v2277 = vld [vmem:[#allocation2 + $0x8] sm:$0xff]
        %v2278 = vld [vmem:[#allocation2 + $0x20] sm:$0xff]
        %v2279 = vmul.f32 %v2277, %v884
        %v2280 = vmul.f32 %v2278, %v889
        %v2281 = vadd.f32 %v2279, 0.0
        %v2282 = vadd.f32 %v2280, 0.0
        %v2283 = vmul.f32 %v2277, %v897
        %v2284 = vmul.f32 %v2278, %v901
        %2287 = vrot.lane.b32.xlu0 %v2283, 127
        %v2288 = vpop.permute.xlu0 %2287
        %2289 = vrot.lane.b32.xlu0 %v2284, 127
        %v2290 = vpop.permute.xlu0 %2289
        %v2293 = vadd.f32 %v2281, %v2288
        %v2294 = vadd.f32 %v2282, %v2290
        %v2295 = vmul.f32 %v2277, %v917
        %v2296 = vmul.f32 %v2278, %v921
        %2299 = vrot.lane.b32.xlu0 %v2295, 126
        %v2300 = vpop.permute.xlu0 %2299
        %2301 = vrot.lane.b32.xlu0 %v2296, 126
        %v2302 = vpop.permute.xlu0 %2301
        %v2305 = vadd.f32 %v2293, %v2300
        %v2306 = vadd.f32 %v2294, %v2302
        %v2307 = vmul.f32 %v2277, %v937
        %v2308 = vmul.f32 %v2278, %v941
        %2311 = vrot.lane.b32.xlu0 %v2307, 110
        %v2312 = vpop.permute.xlu0 %2311
        %2313 = vrot.lane.b32.xlu0 %v2308, 110
        %v2314 = vpop.permute.xlu0 %2313
        %v2317 = vadd.f32 %v2305, %v2312
        %v2318 = vadd.f32 %v2306, %v2314
        %v2319 = vmul.f32 %v2277, %v957
        %v2320 = vmul.f32 %v2278, %v961
        %2323 = vrot.lane.b32.xlu0 %v2319, 109
        %v2324 = vpop.permute.xlu0 %2323
        %2325 = vrot.lane.b32.xlu0 %v2320, 109
        %v2326 = vpop.permute.xlu0 %2325
        %v2329 = vadd.f32 %v2317, %v2324
        %v2330 = vadd.f32 %v2318, %v2326
        %v2331 = vmul.f32 %v2277, %v977
        %v2332 = vmul.f32 %v2278, %v981
        %2335 = vrot.lane.b32.xlu0 %v2331, 108
        %v2336 = vpop.permute.xlu0 %2335
        %2337 = vrot.lane.b32.xlu0 %v2332, 108
        %v2338 = vpop.permute.xlu0 %2337
        %v2341 = vadd.f32 %v2329, %v2336
        %v2342 = vadd.f32 %v2330, %v2338
        %v2343 = vmul.f32 %v2277, %v997
        %v2344 = vmul.f32 %v2278, %v1001
        %2347 = vrot.lane.b32.xlu0 %v2343, 92
        %v2348 = vpop.permute.xlu0 %2347
        %2349 = vrot.lane.b32.xlu0 %v2344, 92
        %v2350 = vpop.permute.xlu0 %2349
        %v2353 = vadd.f32 %v2341, %v2348
        %v2354 = vadd.f32 %v2342, %v2350
        %v2355 = vmul.f32 %v2277, %v1017
        %v2356 = vmul.f32 %v2278, %v1021
        %2359 = vrot.lane.b32.xlu0 %v2355, 91
        %v2360 = vpop.permute.xlu0 %2359
        %2361 = vrot.lane.b32.xlu0 %v2356, 91
        %v2362 = vpop.permute.xlu0 %2361
        %v2365 = vadd.f32 %v2353, %v2360
        %v2366 = vadd.f32 %v2354, %v2362
        %v2367 = vmul.f32 %v2277, %v1037
        %v2368 = vmul.f32 %v2278, %v1041
        %2371 = vrot.lane.b32.xlu0 %v2367, 90
        %v2372 = vpop.permute.xlu0 %2371
        %2373 = vrot.lane.b32.xlu0 %v2368, 90
        %v2374 = vpop.permute.xlu0 %2373
        %v2377 = vadd.f32 %v2365, %v2372
        %v2378 = vadd.f32 %v2366, %v2374
        %2381 = vrot.lane.b32.xlu0 %v2377, 106
        %v2382 = vpop.permute.xlu0 %2381
        %2383 = vrot.lane.b32.xlu0 %v2378, 106
        %v2384 = vpop.permute.xlu0 %2383
        %2387 = vst.msk [vmem:[#allocation3 + $0x8] sm:$0xff] %vm1394, %v2382
        %2388 = vst.msk [vmem:[#allocation3 + $0x18] sm:$0xff] %vm1394, %v2384
        %v2389 = vld [vmem:[#allocation2 + $0x8] sm:$0xff]
        %v2390 = vld [vmem:[#allocation2 + $0x20] sm:$0xff]
        %v2391 = vmul.f32 %v2389, %v884
        %v2392 = vmul.f32 %v2390, %v889
        %v2393 = vadd.f32 %v2391, 0.0
        %v2394 = vadd.f32 %v2392, 0.0
        %v2395 = vmul.f32 %v2389, %v897
        %v2396 = vmul.f32 %v2390, %v901
        %2399 = vrot.lane.b32.xlu0 %v2395, 127
        %v2400 = vpop.permute.xlu0 %2399
        %2401 = vrot.lane.b32.xlu0 %v2396, 127
        %v2402 = vpop.permute.xlu0 %2401
        %v2405 = vadd.f32 %v2393, %v2400
        %v2406 = vadd.f32 %v2394, %v2402
        %v2407 = vmul.f32 %v2389, %v917
        %v2408 = vmul.f32 %v2390, %v921
        %2411 = vrot.lane.b32.xlu0 %v2407, 126
        %v2412 = vpop.permute.xlu0 %2411
        %2413 = vrot.lane.b32.xlu0 %v2408, 126
        %v2414 = vpop.permute.xlu0 %2413
        %v2417 = vadd.f32 %v2405, %v2412
        %v2418 = vadd.f32 %v2406, %v2414
        %v2419 = vmul.f32 %v2389, %v937
        %v2420 = vmul.f32 %v2390, %v941
        %2423 = vrot.lane.b32.xlu0 %v2419, 110
        %v2424 = vpop.permute.xlu0 %2423
        %2425 = vrot.lane.b32.xlu0 %v2420, 110
        %v2426 = vpop.permute.xlu0 %2425
        %v2429 = vadd.f32 %v2417, %v2424
        %v2430 = vadd.f32 %v2418, %v2426
        %v2431 = vmul.f32 %v2389, %v957
        %v2432 = vmul.f32 %v2390, %v961
        %2435 = vrot.lane.b32.xlu0 %v2431, 109
        %v2436 = vpop.permute.xlu0 %2435
        %2437 = vrot.lane.b32.xlu0 %v2432, 109
        %v2438 = vpop.permute.xlu0 %2437
        %v2441 = vadd.f32 %v2429, %v2436
        %v2442 = vadd.f32 %v2430, %v2438
        %v2443 = vmul.f32 %v2389, %v977
        %v2444 = vmul.f32 %v2390, %v981
        %2447 = vrot.lane.b32.xlu0 %v2443, 108
        %v2448 = vpop.permute.xlu0 %2447
        %2449 = vrot.lane.b32.xlu0 %v2444, 108
        %v2450 = vpop.permute.xlu0 %2449
        %v2453 = vadd.f32 %v2441, %v2448
        %v2454 = vadd.f32 %v2442, %v2450
        %v2455 = vld [vmem:[#allocation2 + $0x10] sm:$0xff]
        %v2456 = vld [vmem:[#allocation2 + $0x28] sm:$0xff]
        %v2457 = vmul.f32 %v2389, %v997
        %v2458 = vmul.f32 %v2455, %v997
        %v2459 = vmul.f32 %v2390, %v1001
        %v2460 = vmul.f32 %v2456, %v1001
        %2465 = vrot.lane.b32.xlu0 %v2457, 92
        %v2466 = vpop.permute.xlu0 %2465
        %2467 = vrot.lane.b32.xlu0 %v2458, 92
        %v2468 = vpop.permute.xlu0 %2467
        %2469 = vrot.lane.b32.xlu0 %v2459, 92
        %v2470 = vpop.permute.xlu0 %2469
        %2471 = vrot.lane.b32.xlu0 %v2460, 92
        %v2472 = vpop.permute.xlu0 %2471
        %v2473 = vsel %vm1594, %v2466, %v2468
        %v2474 = vsel %vm1594, %v2470, %v2472
        %v2477 = vadd.f32 %v2453, %v2473
        %v2478 = vadd.f32 %v2454, %v2474
        %v2479 = vmul.f32 %v2389, %v1017
        %v2480 = vmul.f32 %v2455, %v1017
        %v2481 = vmul.f32 %v2390, %v1021
        %v2482 = vmul.f32 %v2456, %v1021
        %2487 = vrot.lane.b32.xlu0 %v2479, 91
        %v2488 = vpop.permute.xlu0 %2487
        %2489 = vrot.lane.b32.xlu0 %v2480, 91
        %v2490 = vpop.permute.xlu0 %2489
        %2491 = vrot.lane.b32.xlu0 %v2481, 91
        %v2492 = vpop.permute.xlu0 %2491
        %2493 = vrot.lane.b32.xlu0 %v2482, 91
        %v2494 = vpop.permute.xlu0 %2493
        %v2495 = vsel %vm1617, %v2488, %v2490
        %v2496 = vsel %vm1617, %v2492, %v2494
        %v2499 = vadd.f32 %v2477, %v2495
        %v2500 = vadd.f32 %v2478, %v2496
        %v2501 = vmul.f32 %v2389, %v1037
        %v2502 = vmul.f32 %v2455, %v1037
        %v2503 = vmul.f32 %v2390, %v1041
        %v2504 = vmul.f32 %v2456, %v1041
        %2509 = vrot.lane.b32.xlu0 %v2501, 90
        %v2510 = vpop.permute.xlu0 %2509
        %2511 = vrot.lane.b32.xlu0 %v2502, 90
        %v2512 = vpop.permute.xlu0 %2511
        %2513 = vrot.lane.b32.xlu0 %v2503, 90
        %v2514 = vpop.permute.xlu0 %2513
        %2515 = vrot.lane.b32.xlu0 %v2504, 90
        %v2516 = vpop.permute.xlu0 %2515
        %vm2517 = vcmask 736256
        %v2518 = vsel %vm2517, %v2510, %v2512
        %v2519 = vsel %vm2517, %v2514, %v2516
        %v2522 = vadd.f32 %v2499, %v2518
        %v2523 = vadd.f32 %v2500, %v2519
        %2526 = vrot.lane.b32.xlu0 %v2522, 104
        %v2527 = vpop.permute.xlu0 %2526
        %2528 = vrot.lane.b32.xlu0 %v2523, 104
        %v2529 = vpop.permute.xlu0 %2528
        %2532 = vst.msk [vmem:[#allocation3 + $0x8] sm:$0xff] %vm1507, %v2527
        %2533 = vst.msk [vmem:[#allocation3 + $0x18] sm:$0xff] %vm1507, %v2529
        %v2534 = vld [vmem:[#allocation2 + $0x8] sm:$0xff]
        %v2535 = vld [vmem:[#allocation2 + $0x20] sm:$0xff]
        %v2536 = vmul.f32 %v2534, %v884
        %v2537 = vmul.f32 %v2535, %v889
        %v2538 = vadd.f32 %v2536, 0.0
        %v2539 = vadd.f32 %v2537, 0.0
        %v2540 = vmul.f32 %v2534, %v897
        %v2541 = vmul.f32 %v2535, %v901
        %2544 = vrot.lane.b32.xlu0 %v2540, 127
        %v2545 = vpop.permute.xlu0 %2544
        %2546 = vrot.lane.b32.xlu0 %v2541, 127
        %v2547 = vpop.permute.xlu0 %2546
        %v2550 = vadd.f32 %v2538, %v2545
        %v2551 = vadd.f32 %v2539, %v2547
        %v2552 = vmul.f32 %v2534, %v917
        %v2553 = vmul.f32 %v2535, %v921
        %2556 = vrot.lane.b32.xlu0 %v2552, 126
        %v2557 = vpop.permute.xlu0 %2556
        %2558 = vrot.lane.b32.xlu0 %v2553, 126
        %v2559 = vpop.permute.xlu0 %2558
        %v2562 = vadd.f32 %v2550, %v2557
        %v2563 = vadd.f32 %v2551, %v2559
        %v2564 = vld [vmem:[#allocation2 + $0x10] sm:$0xff]
        %v2565 = vld [vmem:[#allocation2 + $0x28] sm:$0xff]
        %v2566 = vmul.f32 %v2534, %v937
        %v2567 = vmul.f32 %v2564, %v937
        %v2568 = vmul.f32 %v2535, %v941
        %v2569 = vmul.f32 %v2565, %v941
        %2574 = vrot.lane.b32.xlu0 %v2566, 110
        %v2575 = vpop.permute.xlu0 %2574
        %2576 = vrot.lane.b32.xlu0 %v2567, 110
        %v2577 = vpop.permute.xlu0 %2576
        %2578 = vrot.lane.b32.xlu0 %v2568, 110
        %v2579 = vpop.permute.xlu0 %2578
        %2580 = vrot.lane.b32.xlu0 %v2569, 110
        %v2581 = vpop.permute.xlu0 %2580
        %v2582 = vsel %vm1695, %v2575, %v2577
        %v2583 = vsel %vm1695, %v2579, %v2581
        %v2586 = vadd.f32 %v2562, %v2582
        %v2587 = vadd.f32 %v2563, %v2583
        %v2588 = vmul.f32 %v2534, %v957
        %v2589 = vmul.f32 %v2564, %v957
        %v2590 = vmul.f32 %v2535, %v961
        %v2591 = vmul.f32 %v2565, %v961
        %2596 = vrot.lane.b32.xlu0 %v2588, 109
        %v2597 = vpop.permute.xlu0 %2596
        %2598 = vrot.lane.b32.xlu0 %v2589, 109
        %v2599 = vpop.permute.xlu0 %2598
        %2600 = vrot.lane.b32.xlu0 %v2590, 109
        %v2601 = vpop.permute.xlu0 %2600
        %2602 = vrot.lane.b32.xlu0 %v2591, 109
        %v2603 = vpop.permute.xlu0 %2602
        %v2604 = vsel %vm1718, %v2597, %v2599
        %v2605 = vsel %vm1718, %v2601, %v2603
        %v2608 = vadd.f32 %v2586, %v2604
        %v2609 = vadd.f32 %v2587, %v2605
        %v2610 = vmul.f32 %v2534, %v977
        %v2611 = vmul.f32 %v2564, %v977
        %v2612 = vmul.f32 %v2535, %v981
        %v2613 = vmul.f32 %v2565, %v981
        %2618 = vrot.lane.b32.xlu0 %v2610, 108
        %v2619 = vpop.permute.xlu0 %2618
        %2620 = vrot.lane.b32.xlu0 %v2611, 108
        %v2621 = vpop.permute.xlu0 %2620
        %2622 = vrot.lane.b32.xlu0 %v2612, 108
        %v2623 = vpop.permute.xlu0 %2622
        %2624 = vrot.lane.b32.xlu0 %v2613, 108
        %v2625 = vpop.permute.xlu0 %2624
        %vm2626 = vcmask 883712
        %v2627 = vsel %vm2626, %v2619, %v2621
        %v2628 = vsel %vm2626, %v2623, %v2625
        %v2631 = vadd.f32 %v2608, %v2627
        %v2632 = vadd.f32 %v2609, %v2628
        %v2633 = vmul.f32 %v2564, %v997
        %v2634 = vmul.f32 %v2565, %v1001
        %2637 = vrot.lane.b32.xlu0 %v2633, 92
        %v2638 = vpop.permute.xlu0 %2637
        %2639 = vrot.lane.b32.xlu0 %v2634, 92
        %v2640 = vpop.permute.xlu0 %2639
        %v2643 = vadd.f32 %v2631, %v2638
        %v2644 = vadd.f32 %v2632, %v2640
        %v2645 = vmul.f32 %v2564, %v1017
        %v2646 = vmul.f32 %v2565, %v1021
        %2649 = vrot.lane.b32.xlu0 %v2645, 91
        %v2650 = vpop.permute.xlu0 %2649
        %2651 = vrot.lane.b32.xlu0 %v2646, 91
        %v2652 = vpop.permute.xlu0 %2651
        %v2655 = vadd.f32 %v2643, %v2650
        %v2656 = vadd.f32 %v2644, %v2652
        %v2657 = vmul.f32 %v2564, %v1037
        %v2658 = vmul.f32 %v2565, %v1041
        %2661 = vrot.lane.b32.xlu0 %v2657, 90
        %v2662 = vpop.permute.xlu0 %2661
        %2663 = vrot.lane.b32.xlu0 %v2658, 90
        %v2664 = vpop.permute.xlu0 %2663
        %v2667 = vadd.f32 %v2655, %v2662
        %v2668 = vadd.f32 %v2656, %v2664
        %2671 = vrot.lane.b32.xlu0 %v2667, 102
        %v2672 = vpop.permute.xlu0 %2671
        %2673 = vrot.lane.b32.xlu0 %v2668, 102
        %v2674 = vpop.permute.xlu0 %2673
        %2677 = vst.msk [vmem:[#allocation3 + $0x8] sm:$0xff] %vm1644, %v2672
        %2678 = vst.msk [vmem:[#allocation3 + $0x18] sm:$0xff] %vm1644, %v2674
        %v2679 = vld [vmem:[#allocation2 + $0x8] sm:$0xff]
        %v2680 = vld [vmem:[#allocation2 + $0x10] sm:$0xff]
        %v2681 = vld [vmem:[#allocation2 + $0x20] sm:$0xff]
        %v2682 = vld [vmem:[#allocation2 + $0x28] sm:$0xff]
        %v2683 = vmul.f32 %v2679, %v884
        %v2684 = vmul.f32 %v2680, %v884
        %v2685 = vmul.f32 %v2681, %v889
        %v2686 = vmul.f32 %v2682, %v889
        %v2687 = vadd.f32 %v2683, 0.0
        %v2688 = vadd.f32 %v2684, 0.0
        %v2689 = vadd.f32 %v2685, 0.0
        %v2690 = vadd.f32 %v2686, 0.0
        %v2691 = vmul.f32 %v2679, %v897
        %v2692 = vmul.f32 %v2680, %v897
        %v2693 = vmul.f32 %v2681, %v901
        %v2694 = vmul.f32 %v2682, %v901
        %2699 = vrot.lane.b32.xlu0 %v2691, 127
        %v2700 = vpop.permute.xlu0 %2699
        %2701 = vrot.lane.b32.xlu0 %v2692, 127
        %v2702 = vpop.permute.xlu0 %2701
        %2703 = vrot.lane.b32.xlu0 %v2693, 127
        %v2704 = vpop.permute.xlu0 %2703
        %2705 = vrot.lane.b32.xlu0 %v2694, 127
        %v2706 = vpop.permute.xlu0 %2705
        %v2707 = vsel %vm1812, %v2700, %v2702
        %v2708 = vsel %vm1812, %v2704, %v2706
        %v2713 = vadd.f32 %v2687, %v2707
        %v2714 = vadd.f32 %v2688, %v2702
        %v2715 = vadd.f32 %v2689, %v2708
        %v2716 = vadd.f32 %v2690, %v2706
        %v2717 = vmul.f32 %v2679, %v917
        %v2718 = vmul.f32 %v2680, %v917
        %v2719 = vmul.f32 %v2681, %v921
        %v2720 = vmul.f32 %v2682, %v921
        %2725 = vrot.lane.b32.xlu0 %v2717, 126
        %v2726 = vpop.permute.xlu0 %2725
        %2727 = vrot.lane.b32.xlu0 %v2718, 126
        %v2728 = vpop.permute.xlu0 %2727
        %2729 = vrot.lane.b32.xlu0 %v2719, 126
        %v2730 = vpop.permute.xlu0 %2729
        %2731 = vrot.lane.b32.xlu0 %v2720, 126
        %v2732 = vpop.permute.xlu0 %2731
        %vm2733 = vcmask 1031168
        %v2734 = vsel %vm2733, %v2726, %v2728
        %v2735 = vsel %vm2733, %v2730, %v2732
        %v2740 = vadd.f32 %v2713, %v2734
        %v2741 = vadd.f32 %v2714, %v2728
        %v2742 = vadd.f32 %v2715, %v2735
        %v2743 = vadd.f32 %v2716, %v2732
        %v2744 = vmul.f32 %v2680, %v937
        %v2745 = vmul.f32 %v2682, %v941
        %2748 = vrot.lane.b32.xlu0 %v2744, 110
        %v2749 = vpop.permute.xlu0 %2748
        %2750 = vrot.lane.b32.xlu0 %v2745, 110
        %v2751 = vpop.permute.xlu0 %2750
        %v2754 = vadd.f32 %v2740, %v2749
        %v2755 = vadd.f32 %v2741, %v2749
        %v2756 = vadd.f32 %v2742, %v2751
        %v2757 = vadd.f32 %v2743, %v2751
        %v2758 = vmul.f32 %v2680, %v957
        %v2759 = vmul.f32 %v2682, %v961
        %2762 = vrot.lane.b32.xlu0 %v2758, 109
        %v2763 = vpop.permute.xlu0 %2762
        %2764 = vrot.lane.b32.xlu0 %v2759, 109
        %v2765 = vpop.permute.xlu0 %2764
        %v2768 = vadd.f32 %v2754, %v2763
        %v2769 = vadd.f32 %v2755, %v2763
        %v2770 = vadd.f32 %v2756, %v2765
        %v2771 = vadd.f32 %v2757, %v2765
        %v2772 = vmul.f32 %v2680, %v977
        %v2773 = vmul.f32 %v2682, %v981
        %2776 = vrot.lane.b32.xlu0 %v2772, 108
        %v2777 = vpop.permute.xlu0 %2776
        %2778 = vrot.lane.b32.xlu0 %v2773, 108
        %v2779 = vpop.permute.xlu0 %2778
        %v2782 = vadd.f32 %v2768, %v2777
        %v2783 = vadd.f32 %v2769, %v2777
        %v2784 = vadd.f32 %v2770, %v2779
        %v2785 = vadd.f32 %v2771, %v2779
        %v2786 = vmul.f32 %v2680, %v997
        %v2787 = vmul.f32 %v2682, %v1001
        %2790 = vrot.lane.b32.xlu0 %v2786, 92
        %v2791 = vpop.permute.xlu0 %2790
        %2792 = vrot.lane.b32.xlu0 %v2787, 92
        %v2793 = vpop.permute.xlu0 %2792
        %v2796 = vadd.f32 %v2782, %v2791
        %v2797 = vadd.f32 %v2783, %v2791
        %v2798 = vadd.f32 %v2784, %v2793
        %v2799 = vadd.f32 %v2785, %v2793
        %v2800 = vmul.f32 %v2680, %v1017
        %v2801 = vmul.f32 %v2682, %v1021
        %2804 = vrot.lane.b32.xlu0 %v2800, 91
        %v2805 = vpop.permute.xlu0 %2804
        %2806 = vrot.lane.b32.xlu0 %v2801, 91
        %v2807 = vpop.permute.xlu0 %2806
        %v2810 = vadd.f32 %v2796, %v2805
        %v2811 = vadd.f32 %v2797, %v2805
        %v2812 = vadd.f32 %v2798, %v2807
        %v2813 = vadd.f32 %v2799, %v2807
        %v2814 = vmul.f32 %v2680, %v1037
        %v2815 = vmul.f32 %v2682, %v1041
        %2818 = vrot.lane.b32.xlu0 %v2814, 90
        %v2819 = vpop.permute.xlu0 %2818
        %2820 = vrot.lane.b32.xlu0 %v2815, 90
        %v2821 = vpop.permute.xlu0 %2820
        %v2824 = vadd.f32 %v2810, %v2819
        %v2825 = vadd.f32 %v2811, %v2819
        %v2826 = vadd.f32 %v2812, %v2821
        %v2827 = vadd.f32 %v2813, %v2821
        %2832 = vrot.lane.b32.xlu0 %v2824, 100
        %v2833 = vpop.permute.xlu0 %2832
        %2834 = vrot.lane.b32.xlu0 %v2825, 100
        %v2835 = vpop.permute.xlu0 %2834
        %2836 = vrot.lane.b32.xlu0 %v2826, 100
        %v2837 = vpop.permute.xlu0 %2836
        %2838 = vrot.lane.b32.xlu0 %v2827, 100
        %v2839 = vpop.permute.xlu0 %2838
        %vm2840 = vcmask 818176
        %v2841 = vsel %vm2840, %v2833, %v2835
        %v2842 = vsel %vm2840, %v2837, %v2839
        %2845 = vst.msk [vmem:[#allocation3 + $0x8] sm:$0xff] %vm1781, %v2841
        %2846 = vst.msk [vmem:[#allocation3 + $0x18] sm:$0xff] %vm1781, %v2842
        %v2847 = vld [vmem:[#allocation2 + $0x10] sm:$0xff]
        %v2848 = vld [vmem:[#allocation2 + $0x28] sm:$0xff]
        %v2849 = vmul.f32 %v2847, %v884
        %v2850 = vmul.f32 %v2848, %v889
        %v2851 = vadd.f32 %v2849, 0.0
        %v2852 = vadd.f32 %v2850, 0.0
        %v2853 = vmul.f32 %v2847, %v897
        %v2854 = vmul.f32 %v2848, %v901
        %2857 = vrot.lane.b32.xlu0 %v2853, 127
        %v2858 = vpop.permute.xlu0 %2857
        %2859 = vrot.lane.b32.xlu0 %v2854, 127
        %v2860 = vpop.permute.xlu0 %2859
        %v2863 = vadd.f32 %v2851, %v2858
        %v2864 = vadd.f32 %v2852, %v2860
        %v2865 = vmul.f32 %v2847, %v917
        %v2866 = vmul.f32 %v2848, %v921
        %2869 = vrot.lane.b32.xlu0 %v2865, 126
        %v2870 = vpop.permute.xlu0 %2869
        %2871 = vrot.lane.b32.xlu0 %v2866, 126
        %v2872 = vpop.permute.xlu0 %2871
        %v2875 = vadd.f32 %v2863, %v2870
        %v2876 = vadd.f32 %v2864, %v2872
        %v2877 = vmul.f32 %v2847, %v937
        %v2878 = vmul.f32 %v2848, %v941
        %2881 = vrot.lane.b32.xlu0 %v2877, 110
        %v2882 = vpop.permute.xlu0 %2881
        %2883 = vrot.lane.b32.xlu0 %v2878, 110
        %v2884 = vpop.permute.xlu0 %2883
        %v2887 = vadd.f32 %v2875, %v2882
        %v2888 = vadd.f32 %v2876, %v2884
        %v2889 = vmul.f32 %v2847, %v957
        %v2890 = vmul.f32 %v2848, %v961
        %2893 = vrot.lane.b32.xlu0 %v2889, 109
        %v2894 = vpop.permute.xlu0 %2893
        %2895 = vrot.lane.b32.xlu0 %v2890, 109
        %v2896 = vpop.permute.xlu0 %2895
        %v2899 = vadd.f32 %v2887, %v2894
        %v2900 = vadd.f32 %v2888, %v2896
        %v2901 = vmul.f32 %v2847, %v977
        %v2902 = vmul.f32 %v2848, %v981
        %2905 = vrot.lane.b32.xlu0 %v2901, 108
        %v2906 = vpop.permute.xlu0 %2905
        %2907 = vrot.lane.b32.xlu0 %v2902, 108
        %v2908 = vpop.permute.xlu0 %2907
        %v2911 = vadd.f32 %v2899, %v2906
        %v2912 = vadd.f32 %v2900, %v2908
        %v2913 = vmul.f32 %v2847, %v997
        %v2914 = vmul.f32 %v2848, %v1001
        %2917 = vrot.lane.b32.xlu0 %v2913, 92
        %v2918 = vpop.permute.xlu0 %2917
        %2919 = vrot.lane.b32.xlu0 %v2914, 92
        %v2920 = vpop.permute.xlu0 %2919
        %v2923 = vadd.f32 %v2911, %v2918
        %v2924 = vadd.f32 %v2912, %v2920
        %v2925 = vmul.f32 %v2847, %v1017
        %v2926 = vmul.f32 %v2848, %v1021
        %2929 = vrot.lane.b32.xlu0 %v2925, 91
        %v2930 = vpop.permute.xlu0 %2929
        %2931 = vrot.lane.b32.xlu0 %v2926, 91
        %v2932 = vpop.permute.xlu0 %2931
        %v2935 = vadd.f32 %v2923, %v2930
        %v2936 = vadd.f32 %v2924, %v2932
        %v2937 = vmul.f32 %v2847, %v1037
        %v2938 = vmul.f32 %v2848, %v1041
        %2941 = vrot.lane.b32.xlu0 %v2937, 90
        %v2942 = vpop.permute.xlu0 %2941
        %2943 = vrot.lane.b32.xlu0 %v2938, 90
        %v2944 = vpop.permute.xlu0 %2943
        %v2947 = vadd.f32 %v2935, %v2942
        %v2948 = vadd.f32 %v2936, %v2944
        %2951 = vrot.lane.b32.xlu0 %v2947, 98
        %v2952 = vpop.permute.xlu0 %2951
        %2953 = vrot.lane.b32.xlu0 %v2948, 98
        %v2954 = vpop.permute.xlu0 %2953
        %2957 = vst.msk [vmem:[#allocation3 + $0x8] sm:$0xff] %vm1938, %v2952
        %2958 = vst.msk [vmem:[#allocation3 + $0x18] sm:$0xff] %vm1938, %v2954
        %v2959 = vld [vmem:[#allocation3] sm:$0xff]
        %v2960 = vld [vmem:[#allocation3 + $0x8] sm:$0xff]
        %v2961 = vld [vmem:[#allocation3 + $0x10] sm:$0xff]
        %v2962 = vld [vmem:[#allocation3 + $0x18] sm:$0xff]
        %v2963 = vld [vmem:[%s5] sm:$0xff]
        %v2964 = vld [vmem:[%s5 + $0x8] sm:$0xff]
        %2966 = vset.pattern.permute.xlu0 0
        %2967 = vperm.xlu0 %2966, %v2963
        %v2968 = vpop.permute.xlu0 %2967
        %2971 = vset.pattern.permute.xlu0 0
        %2972 = vperm.xlu0 %2971, %v2964
        %v2973 = vpop.permute.xlu0 %2972
        %v2975 = vmul.f32 %v2959, %v2968
        %v2976 = vmul.f32 %v2960, %v2968
        %v2977 = vmul.f32 %v2961, %v2973
        %v2978 = vmul.f32 %v2962, %v2973
        %v2979 = vld [vmem:[%s6] sm:$0xff]
        %v2980 = vld [vmem:[%s6 + $0x8] sm:$0xff]
        %2982 = vset.pattern.permute.xlu0 0
        %2983 = vperm.xlu0 %2982, %v2979
        %v2984 = vpop.permute.xlu0 %2983
        %2987 = vset.pattern.permute.xlu0 0
        %2988 = vperm.xlu0 %2987, %v2980
        %v2989 = vpop.permute.xlu0 %2988
        %v2991 = vadd.f32 %v2975, %v2984
        %v2992 = vadd.f32 %v2976, %v2984
        %v2993 = vadd.f32 %v2977, %v2989
        %v2994 = vadd.f32 %v2978, %v2989
        %v2995 = vadd.f32 %v2991, 3.0
        %v2996 = vadd.f32 %v2992, 3.0
        %v2997 = vadd.f32 %v2993, 3.0
        %v2998 = vadd.f32 %v2994, 3.0
        %v2999 = vmax.f32 %v2995, 0.0
        %v3000 = vmax.f32 %v2996, 0.0
        %v3001 = vmax.f32 %v2997, 0.0
        %v3002 = vmax.f32 %v2998, 0.0
        %v3003 = vmin.f32 %v2999, 6.0
        %v3004 = vmin.f32 %v3000, 6.0
        %v3005 = vmin.f32 %v3001, 6.0
        %v3006 = vmin.f32 %v3002, 6.0
        %v3007 = vmul.f32 %v2991, %v3003
        %v3008 = vmul.f32 %v2992, %v3004
        %v3009 = vmul.f32 %v2993, %v3005
        %v3010 = vmul.f32 %v2994, %v3006
        %v3011 = vmul.f32 %v3007, 0.16666667
        %v3012 = vmul.f32 %v3008, 0.16666667
        %v3013 = vmul.f32 %v3009, 0.16666667
        %v3014 = vmul.f32 %v3010, 0.16666667
        %v3015 = vadd.f32 %v3011, %v3012
        %3016 = vadd.xlane.f32.xlu0 %v3015
        %v3017 = vpop.xlane.xlu0 %3016
        %v3018 = vadd.f32 %v3013, %v3014
        %3019 = vadd.xlane.f32.xlu0 %v3018
        %v3020 = vpop.xlane.xlu0 %3019
        %v3021 = vrcp.pop 256.0
        %v3022 = vmul.f32 %v3017, %v3021
        %v3023 = vmul.f32 %v3020, %v3021
        %v3024 = vld [vmem:[%s7] sm:$0xff]
        %v3025 = vld [vmem:[%s7 + $0x8] sm:$0xff]
        %v3026 = vmul.f32 %v3024, %v3022
        %v3027 = vmul.f32 %v3025, %v3023
        %vm3028 = vcmask 31744
        %v3029 = vsel %vm3028, %v3026, 0.0
        %v3030 = vsel %vm3028, %v3027, 0.0
        %v3031 = vadd.f32 %v3029, %v3030
        %v3032 = vrot.slane %v3031, 4
        %v3033 = vadd.f32 %v3031, %v3032
        %v3034 = vrot.slane %v3033, 2
        %v3035 = vadd.f32 %v3033, %v3034
        %v3036 = vrot.slane %v3035, 1
        %v3037 = vadd.f32 %v3035, %v3036
        %v3038 = vld [vmem:[%s8] sm:$0x1]
        %v3039 = vadd.f32 %v3037, %v3038
        %v3040 = vmax.f32 %v3039, 0.0
        %v3041 = vld [vmem:[%s9] sm:$0xff]
        %v3042 = vld [vmem:[%s9 + $0x8] sm:$0xff]
        %v3043 = vlaneseq
        %v3044 = vshrl.u32 %v3043, 7
        %v3045 = vsub.s32 0, %v3044
        %v3046 = vrot.slane %v3040, %v3045
        %v3047 = vmul.f32 %v3041, %v3046
        %v3048 = vmul.f32 %v3042, %v3046
        %v3049 = vsel %vm3028, %v3047, 0.0
        %3050 = vadd.xlane.f32.xlu0 %v3049
        %v3051 = vpop.xlane.xlu0 %3050
        %v3052 = vsel %vm3028, %v3048, 0.0
        %3053 = vadd.xlane.f32.xlu0 %v3052
        %v3054 = vpop.xlane.xlu0 %3053
        %v3055 = vld [vmem:[%s10] sm:$0xff]
        %v3056 = vld [vmem:[%s10 + $0x8] sm:$0xff]
        %v3057 = vadd.f32 %v3051, %v3055
        %v3058 = vadd.f32 %v3054, %v3056
        %v3059 = vadd.f32 %v3057, 3.0
        %v3060 = vadd.f32 %v3058, 3.0
        %v3061 = vmax.f32 %v3059, 0.0
        %v3062 = vmax.f32 %v3060, 0.0
        %v3063 = vmin.f32 %v3061, 6.0
        %v3064 = vmin.f32 %v3062, 6.0
        %v3065 = vmul.f32 %v3063, 0.16666667
        %v3066 = vmul.f32 %v3064, 0.16666667
        %3068 = vset.pattern.permute.xlu0 0
        %3069 = vperm.xlu0 %3068, %v3065
        %v3070 = vpop.permute.xlu0 %3069
        %3073 = vset.pattern.permute.xlu0 0
        %3074 = vperm.xlu0 %3073, %v3066
        %v3075 = vpop.permute.xlu0 %3074
        %v3077 = vmul.f32 %v3011, %v3070
        %v3078 = vmul.f32 %v3012, %v3070
        %v3079 = vmul.f32 %v3013, %v3075
        %v3080 = vmul.f32 %v3014, %v3075
        %v3081 = vld [vmem:[%s11] sm:$0xff]
        %3083 = vset.pattern.permute.xlu0 0
        %3084 = vperm.xlu0 %3083, %v3081
        %v3085 = vpop.permute.xlu0 %3084
        %v3087 = vlaneseq
        %v3088 = vshrl.u32 %v3087, 7
        %v3089 = vsub.s32 0, %v3088
        %v3090 = vrot.slane %v3077, %v3089
        %v3091 = vlaneseq
        %v3092 = vshrl.u32 %v3091, 7
        %v3093 = vsub.s32 0, %v3092
        %v3094 = vrot.slane %v3078, %v3093
        %v3095 = vmul.f32 %v3085, %v3090
        %v3096 = vmul.f32 %v3085, %v3094
        %v3097 = vadd.f32 %v3095, 0.0
        %v3098 = vadd.f32 %v3096, 0.0
        %3099 = vset.pattern.permute.xlu0 1
        %3100 = vperm.xlu0 %3099, %v3081
        %v3101 = vpop.permute.xlu0 %3100
        %v3103 = vlaneseq
        %v3104 = vshrl.u32 %v3103, 7
        %v3105 = vsub.s32 1, %v3104
        %v3106 = vrot.slane %v3077, %v3105
        %v3107 = vlaneseq
        %v3108 = vshrl.u32 %v3107, 7
        %v3109 = vsub.s32 1, %v3108
        %v3110 = vrot.slane %v3078, %v3109
        %v3111 = vmul.f32 %v3101, %v3106
        %v3112 = vmul.f32 %v3101, %v3110
        %v3113 = vadd.f32 %v3097, %v3111
        %v3114 = vadd.f32 %v3098, %v3112
        %3115 = vset.pattern.permute.xlu0 2
        %3116 = vperm.xlu0 %3115, %v3081
        %v3117 = vpop.permute.xlu0 %3116
        %v3119 = vlaneseq
        %v3120 = vshrl.u32 %v3119, 7
        %v3121 = vsub.s32 2, %v3120
        %v3122 = vrot.slane %v3077, %v3121
        %v3123 = vlaneseq
        %v3124 = vshrl.u32 %v3123, 7
        %v3125 = vsub.s32 2, %v3124
        %v3126 = vrot.slane %v3078, %v3125
        %v3127 = vmul.f32 %v3117, %v3122
        %v3128 = vmul.f32 %v3117, %v3126
        %v3129 = vadd.f32 %v3113, %v3127
        %v3130 = vadd.f32 %v3114, %v3128
        %3131 = vset.pattern.permute.xlu0 3
        %3132 = vperm.xlu0 %3131, %v3081
        %v3133 = vpop.permute.xlu0 %3132
        %v3135 = vlaneseq
        %v3136 = vshrl.u32 %v3135, 7
        %v3137 = vsub.s32 3, %v3136
        %v3138 = vrot.slane %v3077, %v3137
        %v3139 = vlaneseq
        %v3140 = vshrl.u32 %v3139, 7
        %v3141 = vsub.s32 3, %v3140
        %v3142 = vrot.slane %v3078, %v3141
        %v3143 = vmul.f32 %v3133, %v3138
        %v3144 = vmul.f32 %v3133, %v3142
        %v3145 = vadd.f32 %v3129, %v3143
        %v3146 = vadd.f32 %v3130, %v3144
        %3147 = vset.pattern.permute.xlu0 4
        %3148 = vperm.xlu0 %3147, %v3081
        %v3149 = vpop.permute.xlu0 %3148
        %v3151 = vlaneseq
        %v3152 = vshrl.u32 %v3151, 7
        %v3153 = vsub.s32 4, %v3152
        %v3154 = vrot.slane %v3077, %v3153
        %v3155 = vlaneseq
        %v3156 = vshrl.u32 %v3155, 7
        %v3157 = vsub.s32 4, %v3156
        %v3158 = vrot.slane %v3078, %v3157
        %v3159 = vmul.f32 %v3149, %v3154
        %v3160 = vmul.f32 %v3149, %v3158
        %v3161 = vadd.f32 %v3145, %v3159
        %v3162 = vadd.f32 %v3146, %v3160
        %3163 = vset.pattern.permute.xlu0 5
        %3164 = vperm.xlu0 %3163, %v3081
        %v3165 = vpop.permute.xlu0 %3164
        %v3167 = vlaneseq
        %v3168 = vshrl.u32 %v3167, 7
        %v3169 = vsub.s32 5, %v3168
        %v3170 = vrot.slane %v3077, %v3169
        %v3171 = vlaneseq
        %v3172 = vshrl.u32 %v3171, 7
        %v3173 = vsub.s32 5, %v3172
        %v3174 = vrot.slane %v3078, %v3173
        %v3175 = vmul.f32 %v3165, %v3170
        %v3176 = vmul.f32 %v3165, %v3174
        %v3177 = vadd.f32 %v3161, %v3175
        %v3178 = vadd.f32 %v3162, %v3176
        %3179 = vset.pattern.permute.xlu0 6
        %3180 = vperm.xlu0 %3179, %v3081
        %v3181 = vpop.permute.xlu0 %3180
        %v3183 = vlaneseq
        %v3184 = vshrl.u32 %v3183, 7
        %v3185 = vsub.s32 6, %v3184
        %v3186 = vrot.slane %v3077, %v3185
        %v3187 = vlaneseq
        %v3188 = vshrl.u32 %v3187, 7
        %v3189 = vsub.s32 6, %v3188
        %v3190 = vrot.slane %v3078, %v3189
        %v3191 = vmul.f32 %v3181, %v3186
        %v3192 = vmul.f32 %v3181, %v3190
        %v3193 = vadd.f32 %v3177, %v3191
        %v3194 = vadd.f32 %v3178, %v3192
        %3195 = vset.pattern.permute.xlu0 7
        %3196 = vperm.xlu0 %3195, %v3081
        %v3197 = vpop.permute.xlu0 %3196
        %v3199 = vlaneseq
        %v3200 = vshrl.u32 %v3199, 7
        %v3201 = vsub.s32 7, %v3200
        %v3202 = vrot.slane %v3077, %v3201
        %v3203 = vlaneseq
        %v3204 = vshrl.u32 %v3203, 7
        %v3205 = vsub.s32 7, %v3204
        %v3206 = vrot.slane %v3078, %v3205
        %v3207 = vmul.f32 %v3197, %v3202
        %v3208 = vmul.f32 %v3197, %v3206
        %v3209 = vadd.f32 %v3193, %v3207
        %v3210 = vadd.f32 %v3194, %v3208
        %3211 = vset.pattern.permute.xlu0 8
        %3212 = vperm.xlu0 %3211, %v3081
        %v3213 = vpop.permute.xlu0 %3212
        %v3215 = vlaneseq
        %v3216 = vshrl.u32 %v3215, 7
        %v3217 = vsub.s32 0, %v3216
        %v3218 = vrot.slane %v3079, %v3217
        %v3219 = vlaneseq
        %v3220 = vshrl.u32 %v3219, 7
        %v3221 = vsub.s32 0, %v3220
        %v3222 = vrot.slane %v3080, %v3221
        %v3223 = vmul.f32 %v3213, %v3218
        %v3224 = vmul.f32 %v3213, %v3222
        %v3225 = vadd.f32 %v3209, %v3223
        %v3226 = vadd.f32 %v3210, %v3224
        %3227 = vset.pattern.permute.xlu0 9
        %3228 = vperm.xlu0 %3227, %v3081
        %v3229 = vpop.permute.xlu0 %3228
        %v3231 = vlaneseq
        %v3232 = vshrl.u32 %v3231, 7
        %v3233 = vsub.s32 1, %v3232
        %v3234 = vrot.slane %v3079, %v3233
        %v3235 = vlaneseq
        %v3236 = vshrl.u32 %v3235, 7
        %v3237 = vsub.s32 1, %v3236
        %v3238 = vrot.slane %v3080, %v3237
        %v3239 = vmul.f32 %v3229, %v3234
        %v3240 = vmul.f32 %v3229, %v3238
        %v3241 = vadd.f32 %v3225, %v3239
        %v3242 = vadd.f32 %v3226, %v3240
        %3243 = vset.pattern.permute.xlu0 10
        %3244 = vperm.xlu0 %3243, %v3081
        %v3245 = vpop.permute.xlu0 %3244
        %v3247 = vlaneseq
        %v3248 = vshrl.u32 %v3247, 7
        %v3249 = vsub.s32 2, %v3248
        %v3250 = vrot.slane %v3079, %v3249
        %v3251 = vlaneseq
        %v3252 = vshrl.u32 %v3251, 7
        %v3253 = vsub.s32 2, %v3252
        %v3254 = vrot.slane %v3080, %v3253
        %v3255 = vmul.f32 %v3245, %v3250
        %v3256 = vmul.f32 %v3245, %v3254
        %v3257 = vadd.f32 %v3241, %v3255
        %v3258 = vadd.f32 %v3242, %v3256
        %3259 = vset.pattern.permute.xlu0 11
        %3260 = vperm.xlu0 %3259, %v3081
        %v3261 = vpop.permute.xlu0 %3260
        %v3263 = vlaneseq
        %v3264 = vshrl.u32 %v3263, 7
        %v3265 = vsub.s32 3, %v3264
        %v3266 = vrot.slane %v3079, %v3265
        %v3267 = vlaneseq
        %v3268 = vshrl.u32 %v3267, 7
        %v3269 = vsub.s32 3, %v3268
        %v3270 = vrot.slane %v3080, %v3269
        %v3271 = vmul.f32 %v3261, %v3266
        %v3272 = vmul.f32 %v3261, %v3270
        %v3273 = vadd.f32 %v3257, %v3271
        %v3274 = vadd.f32 %v3258, %v3272
        %3275 = vset.pattern.permute.xlu0 12
        %3276 = vperm.xlu0 %3275, %v3081
        %v3277 = vpop.permute.xlu0 %3276
        %v3279 = vlaneseq
        %v3280 = vshrl.u32 %v3279, 7
        %v3281 = vsub.s32 4, %v3280
        %v3282 = vrot.slane %v3079, %v3281
        %v3283 = vlaneseq
        %v3284 = vshrl.u32 %v3283, 7
        %v3285 = vsub.s32 4, %v3284
        %v3286 = vrot.slane %v3080, %v3285
        %v3287 = vmul.f32 %v3277, %v3282
        %v3288 = vmul.f32 %v3277, %v3286
        %v3289 = vadd.f32 %v3273, %v3287
        %v3290 = vadd.f32 %v3274, %v3288
        %3291 = vset.pattern.permute.xlu0 13
        %3292 = vperm.xlu0 %3291, %v3081
        %v3293 = vpop.permute.xlu0 %3292
        %v3295 = vlaneseq
        %v3296 = vshrl.u32 %v3295, 7
        %v3297 = vsub.s32 5, %v3296
        %v3298 = vrot.slane %v3079, %v3297
        %v3299 = vlaneseq
        %v3300 = vshrl.u32 %v3299, 7
        %v3301 = vsub.s32 5, %v3300
        %v3302 = vrot.slane %v3080, %v3301
        %v3303 = vmul.f32 %v3293, %v3298
        %v3304 = vmul.f32 %v3293, %v3302
        %v3305 = vadd.f32 %v3289, %v3303
        %v3306 = vadd.f32 %v3290, %v3304
        %3307 = vset.pattern.permute.xlu0 14
        %3308 = vperm.xlu0 %3307, %v3081
        %v3309 = vpop.permute.xlu0 %3308
        %v3311 = vlaneseq
        %v3312 = vshrl.u32 %v3311, 7
        %v3313 = vsub.s32 6, %v3312
        %v3314 = vrot.slane %v3079, %v3313
        %v3315 = vlaneseq
        %v3316 = vshrl.u32 %v3315, 7
        %v3317 = vsub.s32 6, %v3316
        %v3318 = vrot.slane %v3080, %v3317
        %v3319 = vmul.f32 %v3309, %v3314
        %v3320 = vmul.f32 %v3309, %v3318
        %v3321 = vadd.f32 %v3305, %v3319
        %v3322 = vadd.f32 %v3306, %v3320
        %3323 = vset.pattern.permute.xlu0 15
        %3324 = vperm.xlu0 %3323, %v3081
        %v3325 = vpop.permute.xlu0 %3324
        %v3327 = vlaneseq
        %v3328 = vshrl.u32 %v3327, 7
        %v3329 = vsub.s32 7, %v3328
        %v3330 = vrot.slane %v3079, %v3329
        %v3331 = vlaneseq
        %v3332 = vshrl.u32 %v3331, 7
        %v3333 = vsub.s32 7, %v3332
        %v3334 = vrot.slane %v3080, %v3333
        %v3335 = vmul.f32 %v3325, %v3330
        %v3336 = vmul.f32 %v3325, %v3334
        %v3337 = vadd.f32 %v3321, %v3335
        %v3338 = vadd.f32 %v3322, %v3336
        %v3339 = vld [vmem:[%s12] sm:$0xff]
        %3341 = vset.pattern.permute.xlu0 0
        %3342 = vperm.xlu0 %3341, %v3339
        %v3343 = vpop.permute.xlu0 %3342
        %v3345 = vmul.f32 %v3337, %v3343
        %v3346 = vmul.f32 %v3338, %v3343
        %v3347 = vld [vmem:[%s13] sm:$0xff]
        %3349 = vset.pattern.permute.xlu0 0
        %3350 = vperm.xlu0 %3349, %v3347
        %v3351 = vpop.permute.xlu0 %3350
        %v3353 = vadd.f32 %v3345, %v3351
        %v3354 = vadd.f32 %v3346, %v3351
        %v3355 = vadd.f32 %v3353, %v466
        %v3356 = vadd.f32 %v3354, %v467
        %3357 = vst [vmem:[%s460] sm:$0xff] %v3355
        %3358 = vst [vmem:[%s460 + $0x8] sm:$0xff] %v3356
        %s3359 = sand.u32 %s335, 1
        %s3360 = scalar_lea.sflag [#allocation5], %s3359
        %s3361 = sand.u32 %s335, 1
        %s3362 = smul.addr %s3361, 16
        %s3363 = scalar_lea.vmem [#allocation4], %s3362
        // Predicated region
        $region77: #{tpu_custom_call.1} parent=75 // pred_check
          %p3364 = pneg %p345
        $region78: #{tpu_custom_call.1} parent=75 // pred_check_branch
          %3366 = sbr.rel (%p3364) target = $region80
        $region79: #{tpu_custom_call.1} parent=75 // pred_region
          %s3368 = ssub.s32 256, 256
          %3369 = vsyncadd %s3360, %s3368
          %s3370 = smul.addr %s28, 2
          %s3371 = smul.addr %s3370, 128
          %s3372 = scalar_lea.hbm %s14, %s3371
          %s3374 = sshll.u32 %s3363, 4
          %s3375 = int_to_ptr.vmem [resolvable:$true] %s3374
          %3377 = dma.vmem_to_hbm [thread:$0]  %s3375, 256, %s3372, %s3360
        $region80: #{tpu_custom_call.1} parent=75 // pred_fallthru
          _
      $region76: #{tpu_custom_call.1} parent=5 // pred_fallthru
        _
      %p3378 = scmp.le.s32.totalorder 2, %s23
      // Predicated region
      $region81: #{tpu_custom_call.1} parent=5 // pred_check
        %p3379 = pneg %p3378
      $region82: #{tpu_custom_call.1} parent=5 // pred_check_branch
        %3381 = sbr.rel (%p3379) target = $region84
      $region83: #{tpu_custom_call.1} parent=5 // pred_region
        %s3382 = ssub.s32 %s23, 2
        // Predicated region
        $region85: #{tpu_custom_call.1} parent=83 // pred_check
          %p3383 = pneg %p351
        $region86: #{tpu_custom_call.1} parent=83 // pred_check_branch
          %3385 = sbr.rel (%p3383) target = $region88
        $region87: #{tpu_custom_call.1} parent=83 // pred_region
          %s3386 = sand.u32 %s336, 1
          %s3387 = scalar_lea.sflag [#allocation5], %s3386
          %s3388 = sand.u32 %s336, 1
          %s3389 = smul.addr %s3388, 16
          %s3390 = scalar_lea.vmem [#allocation4], %s3389
          %3391 = dma.done %s3387, 256
        $region88: #{tpu_custom_call.1} parent=83 // pred_fallthru
          _
      $region84: #{tpu_custom_call.1} parent=5 // pred_fallthru
        _
    $region6: #{tpu_custom_call.1} parent=1 // loop_footer
      %s27 = sadd.s32 1, %s23
    $region7: #{tpu_custom_call.1} parent=1 // loop_footer_branch
      %22 = sbr.rel target = $region3
    $region8: #{tpu_custom_call.1} parent=1 // loop_exit
      _
    %3392 = vsyncpa [#allocation5], 1
    %s3393 = scalar_lea.sflag [#allocation5], 1
    %3394 = vsyncpa %s3393, 1

</llo_original>
